<compile_context>
chip_gen: v7x
topology: tpu7x:2x2x1
jax: 0.10.0
libtpu: 0.0.40
codegen_flags: <defaults>
</compile_context>

<pallas_src>
import functools

import jax
import jax.numpy as jnp
from jax import lax
from jax.experimental import pallas as pl
from jax.experimental.pallas import tpu as pltpu


def _conv_relu_pool_gemm_kernel(p_ref, w_ref, b_ref, o_ref):
    """Fused stage kernel: GEMM conv + 2x2 max-pool + bias + ReLU.

    p_ref: (tb, 4, ss, K)  stride-2 im2col patches; axis 1 indexes the 2x2
           pool offset (parity), ss = s_out*s_out rows, K = 9*cin features.
    w_ref: (K, cout)       tap-major conv weights (dy,dx,cin flattened).
    b_ref: (1, 1, cout)    bias.
    o_ref: (tb, ss, cout)  pooled NHWC output rows (row = i*s_out + j).
    """
    tb, npar, ss, K = p_ref.shape
    cout = w_ref.shape[-1]

    # One big MXU GEMM: every pool-window position of every parity is a row.
    p2d = p_ref[...].reshape(tb * npar * ss, K)
    acc = jnp.dot(p2d, w_ref[...], preferred_element_type=jnp.float32)

    # 2x2/stride-2 max-pool == max over the 4 parity row-blocks.
    acc = acc.reshape(tb, npar, ss, cout)
    pooled = jnp.max(acc, axis=1)                       # (tb, ss, cout)

    # bias + ReLU (both commute with the max above).
    o_ref[...] = jnp.maximum(pooled + b_ref[...], 0.0).astype(o_ref.dtype)


def _pool_parity_patches(x_nhwc, s_out):
    """Layout-only wrapper step: stride-2 im2col per 2x2-pool parity.

    (B, S, S, cin) -> (B, 4, s_out*s_out, 9*cin) with
    P[b, ay*2+ax, i*s_out+j, (dy*3+dx)*cin + c] = xpad[b, 2i+ay+dy, 2j+ax+dx, c]
    """
    B, S, _, cin = x_nhwc.shape
    xpad = jnp.pad(x_nhwc, ((0, 0), (1, 1), (1, 1), (0, 0)))
    parities = []
    for ay in (0, 1):
        for ax in (0, 1):
            taps = []
            for dy in range(3):
                for dx in range(3):
                    y0, x0 = ay + dy, ax + dx
                    taps.append(xpad[:, y0:y0 + 2 * s_out - 1:2,
                                        x0:x0 + 2 * s_out - 1:2, :])
            par = jnp.concatenate(taps, axis=-1)        # (B, s, s, 9*cin)
            parities.append(par.reshape(B, s_out * s_out, 9 * cin))
    return jnp.stack(parities, axis=1)                  # (B, 4, ss, 9*cin)


def _pick_batch_tile(B, cap):
    t = min(B, cap)
    while B % t:
        t -= 1
    return t


def conv3x3_relu_pool2(x_nhwc, w_mat, b_vec, *, batch_tile=8):
    """One stage: 3x3 SAME conv -> +bias -> ReLU -> 2x2 max-pool (stride 2)."""
    B, S, S2, cin = x_nhwc.shape
    assert S == S2 and S % 2 == 0
    K, cout = w_mat.shape
    assert K == 9 * cin
    s_out = S // 2
    ss = s_out * s_out
    tb = _pick_batch_tile(B, batch_tile)

    patches = _pool_parity_patches(x_nhwc, s_out)       # (B, 4, ss, K)
    bias = b_vec.reshape(1, 1, cout)

    flops = 2 * B * 4 * ss * K * cout
    bytes_accessed = 4 * (patches.size + w_mat.size + bias.size + B * ss * cout)

    out = pl.pallas_call(
        _conv_relu_pool_gemm_kernel,
        out_shape=jax.ShapeDtypeStruct((B, ss, cout), jnp.float32),
        grid=(B // tb,),
        in_specs=[
            pl.BlockSpec((tb, 4, ss, K), lambda i: (i, 0, 0, 0)),
            pl.BlockSpec((K, cout), lambda i: (0, 0)),
            pl.BlockSpec((1, 1, cout), lambda i: (0, 0, 0)),
        ],
        out_specs=pl.BlockSpec((tb, ss, cout), lambda i: (i, 0, 0)),
        compiler_params=pltpu.CompilerParams(
            dimension_semantics=("parallel",),
        ),
        cost_estimate=pl.CostEstimate(flops=flops, transcendentals=0,
                                      bytes_accessed=bytes_accessed),
    )(patches, w_mat, bias)
    return out.reshape(B, s_out, s_out, cout)            # back to NHWC 4-D


def model_part0_2node(x_nchw, w1_hwio, b1, w2_hwio, b2, *, batch_tile=8):
    """ModelPart0_2Node forward.  x_nchw: (B, 3, 32, 32) -> (B, 4096)."""
    B = x_nchw.shape[0]
    w1_mat = w1_hwio.reshape(9 * w1_hwio.shape[2], w1_hwio.shape[3])  # (27, 32)
    w2_mat = w2_hwio.reshape(9 * w2_hwio.shape[2], w2_hwio.shape[3])  # (288, 64)

    x = jnp.transpose(x_nchw, (0, 2, 3, 1))                           # -> NHWC
    h = conv3x3_relu_pool2(x, w1_mat, b1, batch_tile=batch_tile)      # (B,16,16,32)
    h = conv3x3_relu_pool2(h, w2_mat, b2, batch_tile=batch_tile)      # (B,8,8,64)
    # torch does x.view(-1, 64*8*8) on NCHW activations -> channel-major flatten
    return jnp.transpose(h, (0, 3, 1, 2)).reshape(B, 64 * 8 * 8)


def reference(x_nchw, w1_hwio, b1, w2_hwio, b2):
    """Pure-JAX reference (matches the PyTorch module)."""
    dn = ("NHWC", "HWIO", "NHWC")
    hi = lax.Precision.HIGHEST
    x = jnp.transpose(x_nchw, (0, 2, 3, 1))
    y = lax.conv_general_dilated(x, w1_hwio, (1, 1), "SAME",
                                 dimension_numbers=dn, precision=hi)
    y = jnp.maximum(y + b1, 0.0)
    y = lax.reduce_window(y, -jnp.inf, lax.max, (1, 2, 2, 1), (1, 2, 2, 1),
                          "VALID")
    y = lax.conv_general_dilated(y, w2_hwio, (1, 1), "SAME",
                                 dimension_numbers=dn, precision=hi)
    y = jnp.maximum(y + b2, 0.0)
    y = lax.reduce_window(y, -jnp.inf, lax.max, (1, 2, 2, 1), (1, 2, 2, 1),
                          "VALID")
    return jnp.transpose(y, (0, 3, 1, 2)).reshape(x_nchw.shape[0], -1)


if __name__ == "__main__":
    key = jax.random.PRNGKey(0)
    kx, k1, k2, k3, k4 = jax.random.split(key, 5)
    B = 2
    x = jax.random.normal(kx, (B, 3, 32, 32), jnp.float32)   # CIFAR-like NCHW

    # Deterministic init mimicking nn.Conv2d defaults (uniform +/- 1/sqrt(fan_in)),
    # weights stored HWIO.
    bound1 = 1.0 / (3 * 3 * 3) ** 0.5
    w1 = jax.random.uniform(k1, (3, 3, 3, 32), jnp.float32, -bound1, bound1)
    b1 = jax.random.uniform(k2, (32,), jnp.float32, -bound1, bound1)
    bound2 = 1.0 / (32 * 3 * 3) ** 0.5
    w2 = jax.random.uniform(k3, (3, 3, 32, 64), jnp.float32, -bound2, bound2)
    b2 = jax.random.uniform(k4, (64,), jnp.float32, -bound2, bound2)

    run = jax.jit(functools.partial(model_part0_2node, batch_tile=8))
    out = jax.block_until_ready(run(x, w1, b1, w2, b2))

    ref = reference(x, w1, b1, w2, b2)
    assert out.shape == (B, 64 * 8 * 8), out.shape
    max_err = float(jnp.max(jnp.abs(out - ref)))
    assert max_err < 1e-2, f"max abs error {max_err}"
    print("KERNEL_OK")
</pallas_src>

<mosaic_0001>
module attributes {stable_mosaic.version = 11 : i64} {
  func.func @_conv_relu_pool_gemm_kernel(%arg0: i32, %arg1: memref<2x4x256x27xf32, #tpu.memory_space<vmem>>, %arg2: memref<27x32xf32, #tpu.memory_space<vmem>>, %arg3: memref<1x1x32xf32, #tpu.memory_space<vmem>>, %arg4: memref<2x256x32xf32, #tpu.memory_space<vmem>>) attributes {dimension_semantics = [#tpu.dimension_semantics<parallel>], iteration_bounds = array<i64: 1>, scalar_prefetch = 0 : i64, scratch_operands = 0 : i64, tpu.core_type = #tpu.core_type<tc>, window_params = [{transform_indices = @transform_0, window_bounds = array<i64: 2, 4, 256, 27>}, {pipeline_mode = #tpu.pipeline_mode<synchronous>, transform_indices = @transform_1, window_bounds = array<i64: 27, 32>}, {pipeline_mode = #tpu.pipeline_mode<synchronous>, transform_indices = @transform_2, window_bounds = array<i64: 1, 1, 32>}, {transform_indices = @transform_3, window_bounds = array<i64: 2, 256, 32>}]} {
    %c0 = arith.constant 0 : index
    %c0_0 = arith.constant 0 : index
    %c0_1 = arith.constant 0 : index
    %c0_2 = arith.constant 0 : index
    %0 = vector.load %arg1[%c0, %c0_0, %c0_1, %c0_2] : memref<2x4x256x27xf32, #tpu.memory_space<vmem>>, vector<2x4x256x27xf32>
    %1 = vector.shape_cast %0 : vector<2x4x256x27xf32> to vector<2048x27xf32>
    %c0_3 = arith.constant 0 : index
    %c0_4 = arith.constant 0 : index
    %2 = vector.load %arg2[%c0_3, %c0_4] : memref<27x32xf32, #tpu.memory_space<vmem>>, vector<27x32xf32>
    %cst = arith.constant dense<0.000000e+00> : vector<2048x32xf32>
    %3 = tpu.matmul %1, %2, %cst {dimension_numbers = #tpu.dot_dimension_numbers<[1], [0], [0], [1], [0, 0, 1, 1], [], []>} : vector<2048x27xf32>, vector<27x32xf32>, vector<2048x32xf32> -> vector<2048x32xf32>
    %4 = vector.shape_cast %3 : vector<2048x32xf32> to vector<2x4x256x32xf32>
    %cst_5 = arith.constant dense<0xFF800000> : vector<2x256x32xf32>
    %5 = vector.multi_reduction <maximumf>, %4, %cst_5 [1] : vector<2x4x256x32xf32> to vector<2x256x32xf32>
    %c0_6 = arith.constant 0 : index
    %c0_7 = arith.constant 0 : index
    %c0_8 = arith.constant 0 : index
    %6 = vector.load %arg3[%c0_6, %c0_7, %c0_8] : memref<1x1x32xf32, #tpu.memory_space<vmem>>, vector<1x1x32xf32>
    %7 = vector.broadcast %6 : vector<1x1x32xf32> to vector<2x256x32xf32>
    %8 = arith.addf %5, %7 : vector<2x256x32xf32>
    %cst_9 = arith.constant 0.000000e+00 : f32
    %9 = vector.broadcast %cst_9 : f32 to vector<2x256x32xf32>
    %10 = arith.maximumf %8, %9 : vector<2x256x32xf32>
    %c0_10 = arith.constant 0 : index
    %c0_11 = arith.constant 0 : index
    %c0_12 = arith.constant 0 : index
    %11 = vector.load %arg4[%c0_10, %c0_11, %c0_12] : memref<2x256x32xf32, #tpu.memory_space<vmem>>, vector<2x256x32xf32>
    tpu.vector_store %arg4[%c0_10, %c0_11, %c0_12], %10 {strides = array<i32>} : memref<2x256x32xf32, #tpu.memory_space<vmem>>, vector<2x256x32xf32>,
    return
  }
  func.func @transform_0(%arg0: i32) -> (i32, i32, i32, i32) {
    %c0_i32 = arith.constant 0 : i32
    %c0_i32_0 = arith.constant 0 : i32
    %c0_i32_1 = arith.constant 0 : i32
    %c0_i32_2 = arith.constant 0 : i32
    return %arg0, %c0_i32, %c0_i32_0, %c0_i32_1 : i32, i32, i32, i32
  }
  func.func @transform_1(%arg0: i32) -> (i32, i32) {
    %c0_i32 = arith.constant 0 : i32
    %c0_i32_0 = arith.constant 0 : i32
    %c0_i32_1 = arith.constant 0 : i32
    return %c0_i32, %c0_i32_0 : i32, i32
  }
  func.func @transform_2(%arg0: i32) -> (i32, i32, i32) {
    %c0_i32 = arith.constant 0 : i32
    %c0_i32_0 = arith.constant 0 : i32
    %c0_i32_1 = arith.constant 0 : i32
    %c0_i32_2 = arith.constant 0 : i32
    return %c0_i32, %c0_i32_0, %c0_i32_1 : i32, i32, i32
  }
  func.func @transform_3(%arg0: i32) -> (i32, i32, i32) {
    %c0_i32 = arith.constant 0 : i32
    %c0_i32_0 = arith.constant 0 : i32
    %c0_i32_1 = arith.constant 0 : i32
    return %arg0, %c0_i32, %c0_i32_0 : i32, i32, i32
  }
}

module attributes {stable_mosaic.version = 11 : i64} {
  func.func @_conv_relu_pool_gemm_kernel(%arg0: i32, %arg1: memref<2x4x64x288xf32, #tpu.memory_space<vmem>>, %arg2: memref<288x64xf32, #tpu.memory_space<vmem>>, %arg3: memref<1x1x64xf32, #tpu.memory_space<vmem>>, %arg4: memref<2x64x64xf32, #tpu.memory_space<vmem>>) attributes {dimension_semantics = [#tpu.dimension_semantics<parallel>], iteration_bounds = array<i64: 1>, scalar_prefetch = 0 : i64, scratch_operands = 0 : i64, tpu.core_type = #tpu.core_type<tc>, window_params = [{transform_indices = @transform_0, window_bounds = array<i64: 2, 4, 64, 288>}, {pipeline_mode = #tpu.pipeline_mode<synchronous>, transform_indices = @transform_1, window_bounds = array<i64: 288, 64>}, {pipeline_mode = #tpu.pipeline_mode<synchronous>, transform_indices = @transform_2, window_bounds = array<i64: 1, 1, 64>}, {transform_indices = @transform_3, window_bounds = array<i64: 2, 64, 64>}]} {
    %c0 = arith.constant 0 : index
    %c0_0 = arith.constant 0 : index
    %c0_1 = arith.constant 0 : index
    %c0_2 = arith.constant 0 : index
    %0 = vector.load %arg1[%c0, %c0_0, %c0_1, %c0_2] : memref<2x4x64x288xf32, #tpu.memory_space<vmem>>, vector<2x4x64x288xf32>
    %1 = vector.shape_cast %0 : vector<2x4x64x288xf32> to vector<512x288xf32>
    %c0_3 = arith.constant 0 : index
    %c0_4 = arith.constant 0 : index
    %2 = vector.load %arg2[%c0_3, %c0_4] : memref<288x64xf32, #tpu.memory_space<vmem>>, vector<288x64xf32>
    %cst = arith.constant dense<0.000000e+00> : vector<512x64xf32>
    %3 = tpu.matmul %1, %2, %cst {dimension_numbers = #tpu.dot_dimension_numbers<[1], [0], [0], [1], [0, 0, 1, 1], [], []>} : vector<512x288xf32>, vector<288x64xf32>, vector<512x64xf32> -> vector<512x64xf32>
    %4 = vector.shape_cast %3 : vector<512x64xf32> to vector<2x4x64x64xf32>
    %cst_5 = arith.constant dense<0xFF800000> : vector<2x64x64xf32>
    %5 = vector.multi_reduction <maximumf>, %4, %cst_5 [1] : vector<2x4x64x64xf32> to vector<2x64x64xf32>
    %c0_6 = arith.constant 0 : index
    %c0_7 = arith.constant 0 : index
    %c0_8 = arith.constant 0 : index
    %6 = vector.load %arg3[%c0_6, %c0_7, %c0_8] : memref<1x1x64xf32, #tpu.memory_space<vmem>>, vector<1x1x64xf32>
    %7 = vector.broadcast %6 : vector<1x1x64xf32> to vector<2x64x64xf32>
    %8 = arith.addf %5, %7 : vector<2x64x64xf32>
    %cst_9 = arith.constant 0.000000e+00 : f32
    %9 = vector.broadcast %cst_9 : f32 to vector<2x64x64xf32>
    %10 = arith.maximumf %8, %9 : vector<2x64x64xf32>
    %c0_10 = arith.constant 0 : index
    %c0_11 = arith.constant 0 : index
    %c0_12 = arith.constant 0 : index
    %11 = vector.load %arg4[%c0_10, %c0_11, %c0_12] : memref<2x64x64xf32, #tpu.memory_space<vmem>>, vector<2x64x64xf32>
    tpu.vector_store %arg4[%c0_10, %c0_11, %c0_12], %10 {strides = array<i32>} : memref<2x64x64xf32, #tpu.memory_space<vmem>>, vector<2x64x64xf32>,
    return
  }
  func.func @transform_0(%arg0: i32) -> (i32, i32, i32, i32) {
    %c0_i32 = arith.constant 0 : i32
    %c0_i32_0 = arith.constant 0 : i32
    %c0_i32_1 = arith.constant 0 : i32
    %c0_i32_2 = arith.constant 0 : i32
    return %arg0, %c0_i32, %c0_i32_0, %c0_i32_1 : i32, i32, i32, i32
  }
  func.func @transform_1(%arg0: i32) -> (i32, i32) {
    %c0_i32 = arith.constant 0 : i32
    %c0_i32_0 = arith.constant 0 : i32
    %c0_i32_1 = arith.constant 0 : i32
    return %c0_i32, %c0_i32_0 : i32, i32
  }
  func.func @transform_2(%arg0: i32) -> (i32, i32, i32) {
    %c0_i32 = arith.constant 0 : i32
    %c0_i32_0 = arith.constant 0 : i32
    %c0_i32_1 = arith.constant 0 : i32
    %c0_i32_2 = arith.constant 0 : i32
    return %c0_i32, %c0_i32_0, %c0_i32_1 : i32, i32, i32
  }
  func.func @transform_3(%arg0: i32) -> (i32, i32, i32) {
    %c0_i32 = arith.constant 0 : i32
    %c0_i32_0 = arith.constant 0 : i32
    %c0_i32_1 = arith.constant 0 : i32
    return %arg0, %c0_i32, %c0_i32_0 : i32, i32, i32
  }
}

</mosaic_0001>

<llo_original>
// kernel: model_part0_2node.2
$region0: #{model_part0_2node.2}
  #allocation0 [shape = 'u32[]', space=smem, size = 0x4, offset = 0x4, fixed_abs, tag = 'smem constant byte address 0x4 - core index']
  #allocation1 [shape = 'u32[144,128]{1,0:T(1,128)}', space=vmem, size = 0x12000, scoped, tag = 'internal scratch']
  %s0 = inlined_call_operand.vmem [shape: f32[2,4,256,27], index: 0, kind: input, shape index: {}]
  %s1 = inlined_call_operand.vmem [shape: f32[27,32], index: 1, kind: input, shape index: {}]
  %s2 = inlined_call_operand.vmem [shape: f32[1,1,32], index: 2, kind: input, shape index: {}]
  %s3 = inlined_call_operand.vmem [shape: f32[2,256,32], index: 3, kind: output, shape index: {}]
  %s4 = sld [smem:[#allocation0]]
  $region22: #{model_part0_2node.2} parent=0
    _
  %s6 = ssub.s32 1, %s4
  %s7 = scalar_select 0, %s6, %s4
  // Predicated region
  $region2: #{model_part0_2node.2} parent=0 // pred_check
    _
  $region3: #{model_part0_2node.2} parent=0 // pred_check_branch
    %9 = sbr.rel (0) target = $region5
  $region4: #{model_part0_2node.2} parent=0 // pred_region
    _
  $region5: #{model_part0_2node.2} parent=0 // pred_fallthru
    _
  // Predicated region
  $region6: #{model_part0_2node.2} parent=0 // pred_check
    _
  $region7: #{model_part0_2node.2} parent=0 // pred_check_branch
    %11 = sbr.rel (0) target = $region9
  $region8: #{model_part0_2node.2} parent=0 // pred_region
    _
  $region9: #{model_part0_2node.2} parent=0 // pred_fallthru
    _
  // Predicated region
  $region10: #{model_part0_2node.2} parent=0 // pred_check
    _
  $region11: #{model_part0_2node.2} parent=0 // pred_check_branch
    %13 = sbr.rel (0) target = $region13
  $region12: #{model_part0_2node.2} parent=0 // pred_region
    _
  $region13: #{model_part0_2node.2} parent=0 // pred_fallthru
    _
  %v14 = vld [vmem:[%s0] sm:$0xff]
  %v15 = vld [vmem:[%s0 + $0x8] sm:$0xff]
  %v16 = vld [vmem:[%s0 + $0x10] sm:$0xff]
  %v17 = vld [vmem:[%s0 + $0x18] sm:$0xff]
  %v18 = vld [vmem:[%s0 + $0x20] sm:$0xff]
  %v19 = vld [vmem:[%s0 + $0x28] sm:$0xff]
  %v20 = vld [vmem:[%s0 + $0x30] sm:$0xff]
  %v21 = vld [vmem:[%s0 + $0x38] sm:$0xff]
  %v22 = vld [vmem:[%s0 + $0x40] sm:$0xff]
  %v23 = vld [vmem:[%s0 + $0x48] sm:$0xff]
  %v24 = vld [vmem:[%s0 + $0x50] sm:$0xff]
  %v25 = vld [vmem:[%s0 + $0x58] sm:$0xff]
  %v26 = vld [vmem:[%s0 + $0x60] sm:$0xff]
  %v27 = vld [vmem:[%s0 + $0x68] sm:$0xff]
  %v28 = vld [vmem:[%s0 + $0x70] sm:$0xff]
  %v29 = vld [vmem:[%s0 + $0x78] sm:$0xff]
  %v30 = vld [vmem:[%s0 + $0x80] sm:$0xff]
  %v31 = vld [vmem:[%s0 + $0x88] sm:$0xff]
  %v32 = vld [vmem:[%s0 + $0x90] sm:$0xff]
  %v33 = vld [vmem:[%s0 + $0x98] sm:$0xff]
  %v34 = vld [vmem:[%s0 + $0xa0] sm:$0xff]
  %v35 = vld [vmem:[%s0 + $0xa8] sm:$0xff]
  %v36 = vld [vmem:[%s0 + $0xb0] sm:$0xff]
  %v37 = vld [vmem:[%s0 + $0xb8] sm:$0xff]
  %v38 = vld [vmem:[%s0 + $0xc0] sm:$0xff]
  %v39 = vld [vmem:[%s0 + $0xc8] sm:$0xff]
  %v40 = vld [vmem:[%s0 + $0xd0] sm:$0xff]
  %v41 = vld [vmem:[%s0 + $0xd8] sm:$0xff]
  %v42 = vld [vmem:[%s0 + $0xe0] sm:$0xff]
  %v43 = vld [vmem:[%s0 + $0xe8] sm:$0xff]
  %v44 = vld [vmem:[%s0 + $0xf0] sm:$0xff]
  %v45 = vld [vmem:[%s0 + $0xf8] sm:$0xff]
  %v46 = vld [vmem:[%s0 + $0x100] sm:$0xff]
  %v47 = vld [vmem:[%s0 + $0x108] sm:$0xff]
  %v48 = vld [vmem:[%s0 + $0x110] sm:$0xff]
  %v49 = vld [vmem:[%s0 + $0x118] sm:$0xff]
  %v50 = vld [vmem:[%s0 + $0x120] sm:$0xff]
  %v51 = vld [vmem:[%s0 + $0x128] sm:$0xff]
  %v52 = vld [vmem:[%s0 + $0x130] sm:$0xff]
  %v53 = vld [vmem:[%s0 + $0x138] sm:$0xff]
  %v54 = vld [vmem:[%s0 + $0x140] sm:$0xff]
  %v55 = vld [vmem:[%s0 + $0x148] sm:$0xff]
  %v56 = vld [vmem:[%s0 + $0x150] sm:$0xff]
  %v57 = vld [vmem:[%s0 + $0x158] sm:$0xff]
  %v58 = vld [vmem:[%s0 + $0x160] sm:$0xff]
  %v59 = vld [vmem:[%s0 + $0x168] sm:$0xff]
  %v60 = vld [vmem:[%s0 + $0x170] sm:$0xff]
  %v61 = vld [vmem:[%s0 + $0x178] sm:$0xff]
  %v62 = vld [vmem:[%s0 + $0x180] sm:$0xff]
  %v63 = vld [vmem:[%s0 + $0x188] sm:$0xff]
  %v64 = vld [vmem:[%s0 + $0x190] sm:$0xff]
  %v65 = vld [vmem:[%s0 + $0x198] sm:$0xff]
  %v66 = vld [vmem:[%s0 + $0x1a0] sm:$0xff]
  %v67 = vld [vmem:[%s0 + $0x1a8] sm:$0xff]
  %v68 = vld [vmem:[%s0 + $0x1b0] sm:$0xff]
  %v69 = vld [vmem:[%s0 + $0x1b8] sm:$0xff]
  %v70 = vld [vmem:[%s0 + $0x1c0] sm:$0xff]
  %v71 = vld [vmem:[%s0 + $0x1c8] sm:$0xff]
  %v72 = vld [vmem:[%s0 + $0x1d0] sm:$0xff]
  %v73 = vld [vmem:[%s0 + $0x1d8] sm:$0xff]
  %v74 = vld [vmem:[%s0 + $0x1e0] sm:$0xff]
  %v75 = vld [vmem:[%s0 + $0x1e8] sm:$0xff]
  %v76 = vld [vmem:[%s0 + $0x1f0] sm:$0xff]
  %v77 = vld [vmem:[%s0 + $0x1f8] sm:$0xff]
  %v78 = vld [vmem:[%s0 + $0x200] sm:$0xff]
  %v79 = vld [vmem:[%s0 + $0x208] sm:$0xff]
  %v80 = vld [vmem:[%s0 + $0x210] sm:$0xff]
  %v81 = vld [vmem:[%s0 + $0x218] sm:$0xff]
  %v82 = vld [vmem:[%s0 + $0x220] sm:$0xff]
  %v83 = vld [vmem:[%s0 + $0x228] sm:$0xff]
  %v84 = vld [vmem:[%s0 + $0x230] sm:$0xff]
  %v85 = vld [vmem:[%s0 + $0x238] sm:$0xff]
  %v86 = vld [vmem:[%s0 + $0x240] sm:$0xff]
  %v87 = vld [vmem:[%s0 + $0x248] sm:$0xff]
  %v88 = vld [vmem:[%s0 + $0x250] sm:$0xff]
  %v89 = vld [vmem:[%s0 + $0x258] sm:$0xff]
  %v90 = vld [vmem:[%s0 + $0x260] sm:$0xff]
  %v91 = vld [vmem:[%s0 + $0x268] sm:$0xff]
  %v92 = vld [vmem:[%s0 + $0x270] sm:$0xff]
  %v93 = vld [vmem:[%s0 + $0x278] sm:$0xff]
  %v94 = vld [vmem:[%s0 + $0x280] sm:$0xff]
  %v95 = vld [vmem:[%s0 + $0x288] sm:$0xff]
  %v96 = vld [vmem:[%s0 + $0x290] sm:$0xff]
  %v97 = vld [vmem:[%s0 + $0x298] sm:$0xff]
  %v98 = vld [vmem:[%s0 + $0x2a0] sm:$0xff]
  %v99 = vld [vmem:[%s0 + $0x2a8] sm:$0xff]
  %v100 = vld [vmem:[%s0 + $0x2b0] sm:$0xff]
  %v101 = vld [vmem:[%s0 + $0x2b8] sm:$0xff]
  %v102 = vld [vmem:[%s0 + $0x2c0] sm:$0xff]
  %v103 = vld [vmem:[%s0 + $0x2c8] sm:$0xff]
  %v104 = vld [vmem:[%s0 + $0x2d0] sm:$0xff]
  %v105 = vld [vmem:[%s0 + $0x2d8] sm:$0xff]
  %v106 = vld [vmem:[%s0 + $0x2e0] sm:$0xff]
  %v107 = vld [vmem:[%s0 + $0x2e8] sm:$0xff]
  %v108 = vld [vmem:[%s0 + $0x2f0] sm:$0xff]
  %v109 = vld [vmem:[%s0 + $0x2f8] sm:$0xff]
  %v110 = vld [vmem:[%s0 + $0x300] sm:$0xff]
  %v111 = vld [vmem:[%s0 + $0x308] sm:$0xff]
  %v112 = vld [vmem:[%s0 + $0x310] sm:$0xff]
  %v113 = vld [vmem:[%s0 + $0x318] sm:$0xff]
  %v114 = vld [vmem:[%s0 + $0x320] sm:$0xff]
  %v115 = vld [vmem:[%s0 + $0x328] sm:$0xff]
  %v116 = vld [vmem:[%s0 + $0x330] sm:$0xff]
  %v117 = vld [vmem:[%s0 + $0x338] sm:$0xff]
  %v118 = vld [vmem:[%s0 + $0x340] sm:$0xff]
  %v119 = vld [vmem:[%s0 + $0x348] sm:$0xff]
  %v120 = vld [vmem:[%s0 + $0x350] sm:$0xff]
  %v121 = vld [vmem:[%s0 + $0x358] sm:$0xff]
  %v122 = vld [vmem:[%s0 + $0x360] sm:$0xff]
  %v123 = vld [vmem:[%s0 + $0x368] sm:$0xff]
  %v124 = vld [vmem:[%s0 + $0x370] sm:$0xff]
  %v125 = vld [vmem:[%s0 + $0x378] sm:$0xff]
  %v126 = vld [vmem:[%s0 + $0x380] sm:$0xff]
  %v127 = vld [vmem:[%s0 + $0x388] sm:$0xff]
  %v128 = vld [vmem:[%s0 + $0x390] sm:$0xff]
  %v129 = vld [vmem:[%s0 + $0x398] sm:$0xff]
  %v130 = vld [vmem:[%s0 + $0x3a0] sm:$0xff]
  %v131 = vld [vmem:[%s0 + $0x3a8] sm:$0xff]
  %v132 = vld [vmem:[%s0 + $0x3b0] sm:$0xff]
  %v133 = vld [vmem:[%s0 + $0x3b8] sm:$0xff]
  %v134 = vld [vmem:[%s0 + $0x3c0] sm:$0xff]
  %v135 = vld [vmem:[%s0 + $0x3c8] sm:$0xff]
  %v136 = vld [vmem:[%s0 + $0x3d0] sm:$0xff]
  %v137 = vld [vmem:[%s0 + $0x3d8] sm:$0xff]
  %v138 = vld [vmem:[%s0 + $0x3e0] sm:$0xff]
  %v139 = vld [vmem:[%s0 + $0x3e8] sm:$0xff]
  %v140 = vld [vmem:[%s0 + $0x3f0] sm:$0xff]
  %v141 = vld [vmem:[%s0 + $0x3f8] sm:$0xff]
  %v142 = vld [vmem:[%s0 + $0x400] sm:$0xff]
  %v143 = vld [vmem:[%s0 + $0x408] sm:$0xff]
  %v144 = vld [vmem:[%s0 + $0x410] sm:$0xff]
  %v145 = vld [vmem:[%s0 + $0x418] sm:$0xff]
  %v146 = vld [vmem:[%s0 + $0x420] sm:$0xff]
  %v147 = vld [vmem:[%s0 + $0x428] sm:$0xff]
  %v148 = vld [vmem:[%s0 + $0x430] sm:$0xff]
  %v149 = vld [vmem:[%s0 + $0x438] sm:$0xff]
  %v150 = vld [vmem:[%s0 + $0x440] sm:$0xff]
  %v151 = vld [vmem:[%s0 + $0x448] sm:$0xff]
  %v152 = vld [vmem:[%s0 + $0x450] sm:$0xff]
  %v153 = vld [vmem:[%s0 + $0x458] sm:$0xff]
  %v154 = vld [vmem:[%s0 + $0x460] sm:$0xff]
  %v155 = vld [vmem:[%s0 + $0x468] sm:$0xff]
  %v156 = vld [vmem:[%s0 + $0x470] sm:$0xff]
  %v157 = vld [vmem:[%s0 + $0x478] sm:$0xff]
  %v158 = vld [vmem:[%s0 + $0x480] sm:$0xff]
  %v159 = vld [vmem:[%s0 + $0x488] sm:$0xff]
  %v160 = vld [vmem:[%s0 + $0x490] sm:$0xff]
  %v161 = vld [vmem:[%s0 + $0x498] sm:$0xff]
  %v162 = vld [vmem:[%s0 + $0x4a0] sm:$0xff]
  %v163 = vld [vmem:[%s0 + $0x4a8] sm:$0xff]
  %v164 = vld [vmem:[%s0 + $0x4b0] sm:$0xff]
  %v165 = vld [vmem:[%s0 + $0x4b8] sm:$0xff]
  %v166 = vld [vmem:[%s0 + $0x4c0] sm:$0xff]
  %v167 = vld [vmem:[%s0 + $0x4c8] sm:$0xff]
  %v168 = vld [vmem:[%s0 + $0x4d0] sm:$0xff]
  %v169 = vld [vmem:[%s0 + $0x4d8] sm:$0xff]
  %v170 = vld [vmem:[%s0 + $0x4e0] sm:$0xff]
  %v171 = vld [vmem:[%s0 + $0x4e8] sm:$0xff]
  %v172 = vld [vmem:[%s0 + $0x4f0] sm:$0xff]
  %v173 = vld [vmem:[%s0 + $0x4f8] sm:$0xff]
  %v174 = vld [vmem:[%s0 + $0x500] sm:$0xff]
  %v175 = vld [vmem:[%s0 + $0x508] sm:$0xff]
  %v176 = vld [vmem:[%s0 + $0x510] sm:$0xff]
  %v177 = vld [vmem:[%s0 + $0x518] sm:$0xff]
  %v178 = vld [vmem:[%s0 + $0x520] sm:$0xff]
  %v179 = vld [vmem:[%s0 + $0x528] sm:$0xff]
  %v180 = vld [vmem:[%s0 + $0x530] sm:$0xff]
  %v181 = vld [vmem:[%s0 + $0x538] sm:$0xff]
  %v182 = vld [vmem:[%s0 + $0x540] sm:$0xff]
  %v183 = vld [vmem:[%s0 + $0x548] sm:$0xff]
  %v184 = vld [vmem:[%s0 + $0x550] sm:$0xff]
  %v185 = vld [vmem:[%s0 + $0x558] sm:$0xff]
  %v186 = vld [vmem:[%s0 + $0x560] sm:$0xff]
  %v187 = vld [vmem:[%s0 + $0x568] sm:$0xff]
  %v188 = vld [vmem:[%s0 + $0x570] sm:$0xff]
  %v189 = vld [vmem:[%s0 + $0x578] sm:$0xff]
  %v190 = vld [vmem:[%s0 + $0x580] sm:$0xff]
  %v191 = vld [vmem:[%s0 + $0x588] sm:$0xff]
  %v192 = vld [vmem:[%s0 + $0x590] sm:$0xff]
  %v193 = vld [vmem:[%s0 + $0x598] sm:$0xff]
  %v194 = vld [vmem:[%s0 + $0x5a0] sm:$0xff]
  %v195 = vld [vmem:[%s0 + $0x5a8] sm:$0xff]
  %v196 = vld [vmem:[%s0 + $0x5b0] sm:$0xff]
  %v197 = vld [vmem:[%s0 + $0x5b8] sm:$0xff]
  %v198 = vld [vmem:[%s0 + $0x5c0] sm:$0xff]
  %v199 = vld [vmem:[%s0 + $0x5c8] sm:$0xff]
  %v200 = vld [vmem:[%s0 + $0x5d0] sm:$0xff]
  %v201 = vld [vmem:[%s0 + $0x5d8] sm:$0xff]
  %v202 = vld [vmem:[%s0 + $0x5e0] sm:$0xff]
  %v203 = vld [vmem:[%s0 + $0x5e8] sm:$0xff]
  %v204 = vld [vmem:[%s0 + $0x5f0] sm:$0xff]
  %v205 = vld [vmem:[%s0 + $0x5f8] sm:$0xff]
  %v206 = vld [vmem:[%s0 + $0x600] sm:$0xff]
  %v207 = vld [vmem:[%s0 + $0x608] sm:$0xff]
  %v208 = vld [vmem:[%s0 + $0x610] sm:$0xff]
  %v209 = vld [vmem:[%s0 + $0x618] sm:$0xff]
  %v210 = vld [vmem:[%s0 + $0x620] sm:$0xff]
  %v211 = vld [vmem:[%s0 + $0x628] sm:$0xff]
  %v212 = vld [vmem:[%s0 + $0x630] sm:$0xff]
  %v213 = vld [vmem:[%s0 + $0x638] sm:$0xff]
  %v214 = vld [vmem:[%s0 + $0x640] sm:$0xff]
  %v215 = vld [vmem:[%s0 + $0x648] sm:$0xff]
  %v216 = vld [vmem:[%s0 + $0x650] sm:$0xff]
  %v217 = vld [vmem:[%s0 + $0x658] sm:$0xff]
  %v218 = vld [vmem:[%s0 + $0x660] sm:$0xff]
  %v219 = vld [vmem:[%s0 + $0x668] sm:$0xff]
  %v220 = vld [vmem:[%s0 + $0x670] sm:$0xff]
  %v221 = vld [vmem:[%s0 + $0x678] sm:$0xff]
  %v222 = vld [vmem:[%s0 + $0x680] sm:$0xff]
  %v223 = vld [vmem:[%s0 + $0x688] sm:$0xff]
  %v224 = vld [vmem:[%s0 + $0x690] sm:$0xff]
  %v225 = vld [vmem:[%s0 + $0x698] sm:$0xff]
  %v226 = vld [vmem:[%s0 + $0x6a0] sm:$0xff]
  %v227 = vld [vmem:[%s0 + $0x6a8] sm:$0xff]
  %v228 = vld [vmem:[%s0 + $0x6b0] sm:$0xff]
  %v229 = vld [vmem:[%s0 + $0x6b8] sm:$0xff]
  %v230 = vld [vmem:[%s0 + $0x6c0] sm:$0xff]
  %v231 = vld [vmem:[%s0 + $0x6c8] sm:$0xff]
  %v232 = vld [vmem:[%s0 + $0x6d0] sm:$0xff]
  %v233 = vld [vmem:[%s0 + $0x6d8] sm:$0xff]
  %v234 = vld [vmem:[%s0 + $0x6e0] sm:$0xff]
  %v235 = vld [vmem:[%s0 + $0x6e8] sm:$0xff]
  %v236 = vld [vmem:[%s0 + $0x6f0] sm:$0xff]
  %v237 = vld [vmem:[%s0 + $0x6f8] sm:$0xff]
  %v238 = vld [vmem:[%s0 + $0x700] sm:$0xff]
  %v239 = vld [vmem:[%s0 + $0x708] sm:$0xff]
  %v240 = vld [vmem:[%s0 + $0x710] sm:$0xff]
  %v241 = vld [vmem:[%s0 + $0x718] sm:$0xff]
  %v242 = vld [vmem:[%s0 + $0x720] sm:$0xff]
  %v243 = vld [vmem:[%s0 + $0x728] sm:$0xff]
  %v244 = vld [vmem:[%s0 + $0x730] sm:$0xff]
  %v245 = vld [vmem:[%s0 + $0x738] sm:$0xff]
  %v246 = vld [vmem:[%s0 + $0x740] sm:$0xff]
  %v247 = vld [vmem:[%s0 + $0x748] sm:$0xff]
  %v248 = vld [vmem:[%s0 + $0x750] sm:$0xff]
  %v249 = vld [vmem:[%s0 + $0x758] sm:$0xff]
  %v250 = vld [vmem:[%s0 + $0x760] sm:$0xff]
  %v251 = vld [vmem:[%s0 + $0x768] sm:$0xff]
  %v252 = vld [vmem:[%s0 + $0x770] sm:$0xff]
  %v253 = vld [vmem:[%s0 + $0x778] sm:$0xff]
  %v254 = vld [vmem:[%s0 + $0x780] sm:$0xff]
  %v255 = vld [vmem:[%s0 + $0x788] sm:$0xff]
  %v256 = vld [vmem:[%s0 + $0x790] sm:$0xff]
  %v257 = vld [vmem:[%s0 + $0x798] sm:$0xff]
  %v258 = vld [vmem:[%s0 + $0x7a0] sm:$0xff]
  %v259 = vld [vmem:[%s0 + $0x7a8] sm:$0xff]
  %v260 = vld [vmem:[%s0 + $0x7b0] sm:$0xff]
  %v261 = vld [vmem:[%s0 + $0x7b8] sm:$0xff]
  %v262 = vld [vmem:[%s0 + $0x7c0] sm:$0xff]
  %v263 = vld [vmem:[%s0 + $0x7c8] sm:$0xff]
  %v264 = vld [vmem:[%s0 + $0x7d0] sm:$0xff]
  %v265 = vld [vmem:[%s0 + $0x7d8] sm:$0xff]
  %v266 = vld [vmem:[%s0 + $0x7e0] sm:$0xff]
  %v267 = vld [vmem:[%s0 + $0x7e8] sm:$0xff]
  %v268 = vld [vmem:[%s0 + $0x7f0] sm:$0xff]
  %v269 = vld [vmem:[%s0 + $0x7f8] sm:$0xff]
  %v270 = vld [vmem:[%s1] sm:$0xff]
  %v271 = vld [vmem:[%s1 + $0x8] sm:$0xff]
  %v272 = vld [vmem:[%s1 + $0x10] sm:$0xff]
  %v273 = vld [vmem:[%s1 + $0x18] sm:$0x7]
  %vm274 = vcmask 220160
  %v276 = vsel %vm274, %v14, 0
  %v279 = vsel %vm274, %v15, 0
  %v282 = vsel %vm274, %v16, 0
  %v285 = vsel %vm274, %v17, 0
  %v288 = vsel %vm274, %v18, 0
  %v291 = vsel %vm274, %v19, 0
  %v294 = vsel %vm274, %v20, 0
  %v297 = vsel %vm274, %v21, 0
  %v300 = vsel %vm274, %v22, 0
  %v303 = vsel %vm274, %v23, 0
  %v306 = vsel %vm274, %v24, 0
  %v309 = vsel %vm274, %v25, 0
  %v312 = vsel %vm274, %v26, 0
  %v315 = vsel %vm274, %v27, 0
  %v318 = vsel %vm274, %v28, 0
  %v321 = vsel %vm274, %v29, 0
  %v324 = vsel %vm274, %v30, 0
  %v327 = vsel %vm274, %v31, 0
  %v330 = vsel %vm274, %v32, 0
  %v333 = vsel %vm274, %v33, 0
  %v336 = vsel %vm274, %v34, 0
  %v339 = vsel %vm274, %v35, 0
  %v342 = vsel %vm274, %v36, 0
  %v345 = vsel %vm274, %v37, 0
  %v348 = vsel %vm274, %v38, 0
  %v351 = vsel %vm274, %v39, 0
  %v354 = vsel %vm274, %v40, 0
  %v357 = vsel %vm274, %v41, 0
  %v360 = vsel %vm274, %v42, 0
  %v363 = vsel %vm274, %v43, 0
  %v366 = vsel %vm274, %v44, 0
  %v369 = vsel %vm274, %v45, 0
  %v372 = vsel %vm274, %v46, 0
  %v375 = vsel %vm274, %v47, 0
  %v378 = vsel %vm274, %v48, 0
  %v381 = vsel %vm274, %v49, 0
  %v384 = vsel %vm274, %v50, 0
  %v387 = vsel %vm274, %v51, 0
  %v390 = vsel %vm274, %v52, 0
  %v393 = vsel %vm274, %v53, 0
  %v396 = vsel %vm274, %v54, 0
  %v399 = vsel %vm274, %v55, 0
  %v402 = vsel %vm274, %v56, 0
  %v405 = vsel %vm274, %v57, 0
  %v408 = vsel %vm274, %v58, 0
  %v411 = vsel %vm274, %v59, 0
  %v414 = vsel %vm274, %v60, 0
  %v417 = vsel %vm274, %v61, 0
  %v420 = vsel %vm274, %v62, 0
  %v423 = vsel %vm274, %v63, 0
  %v426 = vsel %vm274, %v64, 0
  %v429 = vsel %vm274, %v65, 0
  %v432 = vsel %vm274, %v66, 0
  %v435 = vsel %vm274, %v67, 0
  %v438 = vsel %vm274, %v68, 0
  %v441 = vsel %vm274, %v69, 0
  %v444 = vsel %vm274, %v70, 0
  %v447 = vsel %vm274, %v71, 0
  %v450 = vsel %vm274, %v72, 0
  %v453 = vsel %vm274, %v73, 0
  %v456 = vsel %vm274, %v74, 0
  %v459 = vsel %vm274, %v75, 0
  %v462 = vsel %vm274, %v76, 0
  %v465 = vsel %vm274, %v77, 0
  %v468 = vsel %vm274, %v78, 0
  %v471 = vsel %vm274, %v79, 0
  %v474 = vsel %vm274, %v80, 0
  %v477 = vsel %vm274, %v81, 0
  %v480 = vsel %vm274, %v82, 0
  %v483 = vsel %vm274, %v83, 0
  %v486 = vsel %vm274, %v84, 0
  %v489 = vsel %vm274, %v85, 0
  %v492 = vsel %vm274, %v86, 0
  %v495 = vsel %vm274, %v87, 0
  %v498 = vsel %vm274, %v88, 0
  %v501 = vsel %vm274, %v89, 0
  %v504 = vsel %vm274, %v90, 0
  %v507 = vsel %vm274, %v91, 0
  %v510 = vsel %vm274, %v92, 0
  %v513 = vsel %vm274, %v93, 0
  %v516 = vsel %vm274, %v94, 0
  %v519 = vsel %vm274, %v95, 0
  %v522 = vsel %vm274, %v96, 0
  %v525 = vsel %vm274, %v97, 0
  %v528 = vsel %vm274, %v98, 0
  %v531 = vsel %vm274, %v99, 0
  %v534 = vsel %vm274, %v100, 0
  %v537 = vsel %vm274, %v101, 0
  %v540 = vsel %vm274, %v102, 0
  %v543 = vsel %vm274, %v103, 0
  %v546 = vsel %vm274, %v104, 0
  %v549 = vsel %vm274, %v105, 0
  %v552 = vsel %vm274, %v106, 0
  %v555 = vsel %vm274, %v107, 0
  %v558 = vsel %vm274, %v108, 0
  %v561 = vsel %vm274, %v109, 0
  %v564 = vsel %vm274, %v110, 0
  %v567 = vsel %vm274, %v111, 0
  %v570 = vsel %vm274, %v112, 0
  %v573 = vsel %vm274, %v113, 0
  %v576 = vsel %vm274, %v114, 0
  %v579 = vsel %vm274, %v115, 0
  %v582 = vsel %vm274, %v116, 0
  %v585 = vsel %vm274, %v117, 0
  %v588 = vsel %vm274, %v118, 0
  %v591 = vsel %vm274, %v119, 0
  %v594 = vsel %vm274, %v120, 0
  %v597 = vsel %vm274, %v121, 0
  %v600 = vsel %vm274, %v122, 0
  %v603 = vsel %vm274, %v123, 0
  %v606 = vsel %vm274, %v124, 0
  %v609 = vsel %vm274, %v125, 0
  %v612 = vsel %vm274, %v126, 0
  %v615 = vsel %vm274, %v127, 0
  %v618 = vsel %vm274, %v128, 0
  %v621 = vsel %vm274, %v129, 0
  %v624 = vsel %vm274, %v130, 0
  %v627 = vsel %vm274, %v131, 0
  %v630 = vsel %vm274, %v132, 0
  %v633 = vsel %vm274, %v133, 0
  %v636 = vsel %vm274, %v134, 0
  %v639 = vsel %vm274, %v135, 0
  %v642 = vsel %vm274, %v136, 0
  %v645 = vsel %vm274, %v137, 0
  %v648 = vsel %vm274, %v138, 0
  %v651 = vsel %vm274, %v139, 0
  %v654 = vsel %vm274, %v140, 0
  %v657 = vsel %vm274, %v141, 0
  %v660 = vsel %vm274, %v142, 0
  %v663 = vsel %vm274, %v143, 0
  %v666 = vsel %vm274, %v144, 0
  %v669 = vsel %vm274, %v145, 0
  %v672 = vsel %vm274, %v146, 0
  %v675 = vsel %vm274, %v147, 0
  %v678 = vsel %vm274, %v148, 0
  %v681 = vsel %vm274, %v149, 0
  %v684 = vsel %vm274, %v150, 0
  %v687 = vsel %vm274, %v151, 0
  %v690 = vsel %vm274, %v152, 0
  %v693 = vsel %vm274, %v153, 0
  %v696 = vsel %vm274, %v154, 0
  %v699 = vsel %vm274, %v155, 0
  %v702 = vsel %vm274, %v156, 0
  %v705 = vsel %vm274, %v157, 0
  %v708 = vsel %vm274, %v158, 0
  %v711 = vsel %vm274, %v159, 0
  %v714 = vsel %vm274, %v160, 0
  %v717 = vsel %vm274, %v161, 0
  %v720 = vsel %vm274, %v162, 0
  %v723 = vsel %vm274, %v163, 0
  %v726 = vsel %vm274, %v164, 0
  %v729 = vsel %vm274, %v165, 0
  %v732 = vsel %vm274, %v166, 0
  %v735 = vsel %vm274, %v167, 0
  %v738 = vsel %vm274, %v168, 0
  %v741 = vsel %vm274, %v169, 0
  %v744 = vsel %vm274, %v170, 0
  %v747 = vsel %vm274, %v171, 0
  %v750 = vsel %vm274, %v172, 0
  %v753 = vsel %vm274, %v173, 0
  %v756 = vsel %vm274, %v174, 0
  %v759 = vsel %vm274, %v175, 0
  %v762 = vsel %vm274, %v176, 0
  %v765 = vsel %vm274, %v177, 0
  %v768 = vsel %vm274, %v178, 0
  %v771 = vsel %vm274, %v179, 0
  %v774 = vsel %vm274, %v180, 0
  %v777 = vsel %vm274, %v181, 0
  %v780 = vsel %vm274, %v182, 0
  %v783 = vsel %vm274, %v183, 0
  %v786 = vsel %vm274, %v184, 0
  %v789 = vsel %vm274, %v185, 0
  %v792 = vsel %vm274, %v186, 0
  %v795 = vsel %vm274, %v187, 0
  %v798 = vsel %vm274, %v188, 0
  %v801 = vsel %vm274, %v189, 0
  %v804 = vsel %vm274, %v190, 0
  %v807 = vsel %vm274, %v191, 0
  %v810 = vsel %vm274, %v192, 0
  %v813 = vsel %vm274, %v193, 0
  %v816 = vsel %vm274, %v194, 0
  %v819 = vsel %vm274, %v195, 0
  %v822 = vsel %vm274, %v196, 0
  %v825 = vsel %vm274, %v197, 0
  %v828 = vsel %vm274, %v198, 0
  %v831 = vsel %vm274, %v199, 0
  %v834 = vsel %vm274, %v200, 0
  %v837 = vsel %vm274, %v201, 0
  %v840 = vsel %vm274, %v202, 0
  %v843 = vsel %vm274, %v203, 0
  %v846 = vsel %vm274, %v204, 0
  %v849 = vsel %vm274, %v205, 0
  %v852 = vsel %vm274, %v206, 0
  %v855 = vsel %vm274, %v207, 0
  %v858 = vsel %vm274, %v208, 0
  %v861 = vsel %vm274, %v209, 0
  %v864 = vsel %vm274, %v210, 0
  %v867 = vsel %vm274, %v211, 0
  %v870 = vsel %vm274, %v212, 0
  %v873 = vsel %vm274, %v213, 0
  %v876 = vsel %vm274, %v214, 0
  %v879 = vsel %vm274, %v215, 0
  %v882 = vsel %vm274, %v216, 0
  %v885 = vsel %vm274, %v217, 0
  %v888 = vsel %vm274, %v218, 0
  %v891 = vsel %vm274, %v219, 0
  %v894 = vsel %vm274, %v220, 0
  %v897 = vsel %vm274, %v221, 0
  %v900 = vsel %vm274, %v222, 0
  %v903 = vsel %vm274, %v223, 0
  %v906 = vsel %vm274, %v224, 0
  %v909 = vsel %vm274, %v225, 0
  %v912 = vsel %vm274, %v226, 0
  %v915 = vsel %vm274, %v227, 0
  %v918 = vsel %vm274, %v228, 0
  %v921 = vsel %vm274, %v229, 0
  %v924 = vsel %vm274, %v230, 0
  %v927 = vsel %vm274, %v231, 0
  %v930 = vsel %vm274, %v232, 0
  %v933 = vsel %vm274, %v233, 0
  %v936 = vsel %vm274, %v234, 0
  %v939 = vsel %vm274, %v235, 0
  %v942 = vsel %vm274, %v236, 0
  %v945 = vsel %vm274, %v237, 0
  %v948 = vsel %vm274, %v238, 0
  %v951 = vsel %vm274, %v239, 0
  %v954 = vsel %vm274, %v240, 0
  %v957 = vsel %vm274, %v241, 0
  %v960 = vsel %vm274, %v242, 0
  %v963 = vsel %vm274, %v243, 0
  %v966 = vsel %vm274, %v244, 0
  %v969 = vsel %vm274, %v245, 0
  %v972 = vsel %vm274, %v246, 0
  %v975 = vsel %vm274, %v247, 0
  %v978 = vsel %vm274, %v248, 0
  %v981 = vsel %vm274, %v249, 0
  %v984 = vsel %vm274, %v250, 0
  %v987 = vsel %vm274, %v251, 0
  %v990 = vsel %vm274, %v252, 0
  %v993 = vsel %vm274, %v253, 0
  %v996 = vsel %vm274, %v254, 0
  %v999 = vsel %vm274, %v255, 0
  %v1002 = vsel %vm274, %v256, 0
  %v1005 = vsel %vm274, %v257, 0
  %v1008 = vsel %vm274, %v258, 0
  %v1011 = vsel %vm274, %v259, 0
  %v1014 = vsel %vm274, %v260, 0
  %v1017 = vsel %vm274, %v261, 0
  %v1020 = vsel %vm274, %v262, 0
  %v1023 = vsel %vm274, %v263, 0
  %v1026 = vsel %vm274, %v264, 0
  %v1029 = vsel %vm274, %v265, 0
  %v1032 = vsel %vm274, %v266, 0
  %v1035 = vsel %vm274, %v267, 0
  %v1038 = vsel %vm274, %v268, 0
  %v1041 = vsel %vm274, %v269, 0
  %vm1043 = vcmask 1042432
  %v1045 = vsel %vm1043, %v273, 0
  %1047 = vmatprep.subr.mxu0 0.0
  %1048 = vmatpush1.msra.mxu0 %v270
  %1049 = vmatprep.subr.mxu0 0.0
  %1050 = vmatpush1.msra.mxu0 %v271
  %1051 = vmatprep.subr.mxu0 0.0
  %1052 = vmatpush1.msra.mxu0 %v272
  %1053 = vmatprep.subr.mxu0 0.0
  %1054 = vmatpush1.msra.mxu0 %v1045
  %1055 = vmatprep.subr.mxu0 0.0
  %1056 = vmatpush1.msra.mxu0 0.0
  %1057 = vmatprep.subr.mxu0 0.0
  %1058 = vmatpush1.msra.mxu0 0.0
  %1059 = vmatprep.subr.mxu0 0.0
  %1060 = vmatpush1.msra.mxu0 0.0
  %1061 = vmatprep.subr.mxu0 0.0
  %1062 = vmatpush1.msra.mxu0 0.0
  %1063 = vmatprep.subr.mxu0 0.0
  %1064 = vmatpush1.msra.mxu0 0.0
  %1065 = vmatprep.subr.mxu0 0.0
  %1066 = vmatpush1.msra.mxu0 0.0
  %1067 = vmatprep.subr.mxu0 0.0
  %1068 = vmatpush1.msra.mxu0 0.0
  %1069 = vmatprep.subr.mxu0 0.0
  %1070 = vmatpush1.msra.mxu0 0.0
  %1071 = vmatprep.subr.mxu0 0.0
  %1072 = vmatpush1.msra.mxu0 0.0
  %1073 = vmatprep.subr.mxu0 0.0
  %1074 = vmatpush1.msra.mxu0 0.0
  %1075 = vmatprep.subr.mxu0 0.0
  %1076 = vmatpush1.msra.mxu0 0.0
  %1077 = vmatprep.subr.mxu0 0.0
  %1078 = vmatpush1.msra.mxu0 0.0
  %1079 = vmatprep.subr.mxu0 0.0
  %1080 = vmatpush1.msra.mxu0 0.0
  %1081 = vmatprep.subr.mxu0 0.0
  %1082 = vmatpush1.msra.mxu0 0.0
  %1083 = vmatprep.subr.mxu0 0.0
  %1084 = vmatpush1.msra.mxu0 0.0
  %1085 = vmatprep.subr.mxu0 0.0
  %1086 = vmatpush1.msra.mxu0 0.0
  %1087 = vmatprep.subr.mxu0 0.0
  %1088 = vmatpush1.msra.mxu0 0.0
  %1089 = vmatprep.subr.mxu0 0.0
  %1090 = vmatpush1.msra.mxu0 0.0
  %1091 = vmatprep.subr.mxu0 0.0
  %1092 = vmatpush1.msra.mxu0 0.0
  %1093 = vmatprep.subr.mxu0 0.0
  %1094 = vmatpush1.msra.mxu0 0.0
  %1095 = vmatprep.subr.mxu0 0.0
  %1096 = vmatpush1.msra.mxu0 0.0
  %1097 = vmatprep.subr.mxu0 0.0
  %1098 = vmatpush1.msra.mxu0 0.0
  %1099 = vmatprep.subr.mxu0 0.0
  %1100 = vmatpush1.msra.mxu0 0.0
  %1101 = vmatprep.subr.mxu0 0.0
  %1102 = vmatpush1.msra.mxu0 0.0
  %1103 = vmatprep.subr.mxu0 0.0
  %1104 = vmatpush1.msra.mxu0 0.0
  %1105 = vmatprep.subr.mxu0 0.0
  %1106 = vmatpush1.msra.mxu0 0.0
  %1107 = vmatprep.subr.mxu0 0.0
  %1108 = vmatpush1.msra.mxu0 0.0
  %1109 = vmatprep.subr.mxu0 0.0
  %1110 = vmatpush1.msra.mxu0 0.0
  %1111 = vmatprep.mubr.f32.mxu0 0.0
  %1112 = vmatmul.mubr.f32.gmra.mrb[0].mxu0 %v276
  %v1113 = vpop.f32.mrb[0].mxu0
  %v1114 = vadd.f32 0.0, %v1113
  %v1115 = vpop.f32.mrb[0].mxu0
  %1116 = vmatprep.mubr.f32.mxu0 0.0
  %1117 = vmatmul.mubr.f32.gmra.mrb[0].mxu0 %v279
  %v1118 = vpop.f32.mrb[0].mxu0
  %v1119 = vadd.f32 0.0, %v1118
  %v1120 = vpop.f32.mrb[0].mxu0
  %1121 = vmatprep.mubr.f32.mxu0 0.0
  %1122 = vmatmul.mubr.f32.gmra.mrb[0].mxu0 %v282
  %v1123 = vpop.f32.mrb[0].mxu0
  %v1124 = vadd.f32 0.0, %v1123
  %v1125 = vpop.f32.mrb[0].mxu0
  %1126 = vmatprep.mubr.f32.mxu0 0.0
  %1127 = vmatmul.mubr.f32.gmra.mrb[0].mxu0 %v285
  %v1128 = vpop.f32.mrb[0].mxu0
  %v1129 = vadd.f32 0.0, %v1128
  %v1130 = vpop.f32.mrb[0].mxu0
  %1131 = vmatprep.mubr.f32.mxu0 0.0
  %1132 = vmatmul.mubr.f32.gmra.mrb[0].mxu0 %v288
  %v1133 = vpop.f32.mrb[0].mxu0
  %v1134 = vadd.f32 0.0, %v1133
  %v1135 = vpop.f32.mrb[0].mxu0
  %1136 = vmatprep.mubr.f32.mxu0 0.0
  %1137 = vmatmul.mubr.f32.gmra.mrb[0].mxu0 %v291
  %v1138 = vpop.f32.mrb[0].mxu0
  %v1139 = vadd.f32 0.0, %v1138
  %v1140 = vpop.f32.mrb[0].mxu0
  %1141 = vmatprep.mubr.f32.mxu0 0.0
  %1142 = vmatmul.mubr.f32.gmra.mrb[0].mxu0 %v294
  %v1143 = vpop.f32.mrb[0].mxu0
  %v1144 = vadd.f32 0.0, %v1143
  %v1145 = vpop.f32.mrb[0].mxu0
  %1146 = vmatprep.mubr.f32.mxu0 0.0
  %1147 = vmatmul.mubr.f32.gmra.mrb[0].mxu0 %v297
  %v1148 = vpop.f32.mrb[0].mxu0
  %v1149 = vadd.f32 0.0, %v1148
  %v1150 = vpop.f32.mrb[0].mxu0
  %1151 = vmatprep.mubr.f32.mxu0 0.0
  %1152 = vmatmul.mubr.f32.gmra.mrb[0].mxu0 %v300
  %v1153 = vpop.f32.mrb[0].mxu0
  %v1154 = vadd.f32 0.0, %v1153
  %v1155 = vpop.f32.mrb[0].mxu0
  %1156 = vmatprep.mubr.f32.mxu0 0.0
  %1157 = vmatmul.mubr.f32.gmra.mrb[0].mxu0 %v303
  %v1158 = vpop.f32.mrb[0].mxu0
  %v1159 = vadd.f32 0.0, %v1158
  %v1160 = vpop.f32.mrb[0].mxu0
  %1161 = vmatprep.mubr.f32.mxu0 0.0
  %1162 = vmatmul.mubr.f32.gmra.mrb[0].mxu0 %v306
  %v1163 = vpop.f32.mrb[0].mxu0
  %v1164 = vadd.f32 0.0, %v1163
  %v1165 = vpop.f32.mrb[0].mxu0
  %1166 = vmatprep.mubr.f32.mxu0 0.0
  %1167 = vmatmul.mubr.f32.gmra.mrb[0].mxu0 %v309
  %v1168 = vpop.f32.mrb[0].mxu0
  %v1169 = vadd.f32 0.0, %v1168
  %v1170 = vpop.f32.mrb[0].mxu0
  %1171 = vmatprep.mubr.f32.mxu0 0.0
  %1172 = vmatmul.mubr.f32.gmra.mrb[0].mxu0 %v312
  %v1173 = vpop.f32.mrb[0].mxu0
  %v1174 = vadd.f32 0.0, %v1173
  %v1175 = vpop.f32.mrb[0].mxu0
  %1176 = vmatprep.mubr.f32.mxu0 0.0
  %1177 = vmatmul.mubr.f32.gmra.mrb[0].mxu0 %v315
  %v1178 = vpop.f32.mrb[0].mxu0
  %v1179 = vadd.f32 0.0, %v1178
  %v1180 = vpop.f32.mrb[0].mxu0
  %1181 = vmatprep.mubr.f32.mxu0 0.0
  %1182 = vmatmul.mubr.f32.gmra.mrb[0].mxu0 %v318
  %v1183 = vpop.f32.mrb[0].mxu0
  %v1184 = vadd.f32 0.0, %v1183
  %v1185 = vpop.f32.mrb[0].mxu0
  %1186 = vmatprep.mubr.f32.mxu0 0.0
  %1187 = vmatmul.mubr.f32.gmra.mrb[0].mxu0 %v321
  %v1188 = vpop.f32.mrb[0].mxu0
  %v1189 = vadd.f32 0.0, %v1188
  %v1190 = vpop.f32.mrb[0].mxu0
  %1191 = vmatprep.mubr.f32.mxu0 0.0
  %1192 = vmatmul.mubr.f32.gmra.mrb[0].mxu0 %v324
  %v1193 = vpop.f32.mrb[0].mxu0
  %v1194 = vadd.f32 0.0, %v1193
  %v1195 = vpop.f32.mrb[0].mxu0
  %1196 = vmatprep.mubr.f32.mxu0 0.0
  %1197 = vmatmul.mubr.f32.gmra.mrb[0].mxu0 %v327
  %v1198 = vpop.f32.mrb[0].mxu0
  %v1199 = vadd.f32 0.0, %v1198
  %v1200 = vpop.f32.mrb[0].mxu0
  %1201 = vmatprep.mubr.f32.mxu0 0.0
  %1202 = vmatmul.mubr.f32.gmra.mrb[0].mxu0 %v330
  %v1203 = vpop.f32.mrb[0].mxu0
  %v1204 = vadd.f32 0.0, %v1203
  %v1205 = vpop.f32.mrb[0].mxu0
  %1206 = vmatprep.mubr.f32.mxu0 0.0
  %1207 = vmatmul.mubr.f32.gmra.mrb[0].mxu0 %v333
  %v1208 = vpop.f32.mrb[0].mxu0
  %v1209 = vadd.f32 0.0, %v1208
  %v1210 = vpop.f32.mrb[0].mxu0
  %1211 = vmatprep.mubr.f32.mxu0 0.0
  %1212 = vmatmul.mubr.f32.gmra.mrb[0].mxu0 %v336
  %v1213 = vpop.f32.mrb[0].mxu0
  %v1214 = vadd.f32 0.0, %v1213
  %v1215 = vpop.f32.mrb[0].mxu0
  %1216 = vmatprep.mubr.f32.mxu0 0.0
  %1217 = vmatmul.mubr.f32.gmra.mrb[0].mxu0 %v339
  %v1218 = vpop.f32.mrb[0].mxu0
  %v1219 = vadd.f32 0.0, %v1218
  %v1220 = vpop.f32.mrb[0].mxu0
  %1221 = vmatprep.mubr.f32.mxu0 0.0
  %1222 = vmatmul.mubr.f32.gmra.mrb[0].mxu0 %v342
  %v1223 = vpop.f32.mrb[0].mxu0
  %v1224 = vadd.f32 0.0, %v1223
  %v1225 = vpop.f32.mrb[0].mxu0
  %1226 = vmatprep.mubr.f32.mxu0 0.0
  %1227 = vmatmul.mubr.f32.gmra.mrb[0].mxu0 %v345
  %v1228 = vpop.f32.mrb[0].mxu0
  %v1229 = vadd.f32 0.0, %v1228
  %v1230 = vpop.f32.mrb[0].mxu0
  %1231 = vmatprep.mubr.f32.mxu0 0.0
  %1232 = vmatmul.mubr.f32.gmra.mrb[0].mxu0 %v348
  %v1233 = vpop.f32.mrb[0].mxu0
  %v1234 = vadd.f32 0.0, %v1233
  %v1235 = vpop.f32.mrb[0].mxu0
  %1236 = vmatprep.mubr.f32.mxu0 0.0
  %1237 = vmatmul.mubr.f32.gmra.mrb[0].mxu0 %v351
  %v1238 = vpop.f32.mrb[0].mxu0
  %v1239 = vadd.f32 0.0, %v1238
  %v1240 = vpop.f32.mrb[0].mxu0
  %1241 = vmatprep.mubr.f32.mxu0 0.0
  %1242 = vmatmul.mubr.f32.gmra.mrb[0].mxu0 %v354
  %v1243 = vpop.f32.mrb[0].mxu0
  %v1244 = vadd.f32 0.0, %v1243
  %v1245 = vpop.f32.mrb[0].mxu0
  %1246 = vmatprep.mubr.f32.mxu0 0.0
  %1247 = vmatmul.mubr.f32.gmra.mrb[0].mxu0 %v357
  %v1248 = vpop.f32.mrb[0].mxu0
  %v1249 = vadd.f32 0.0, %v1248
  %v1250 = vpop.f32.mrb[0].mxu0
  %1251 = vmatprep.mubr.f32.mxu0 0.0
  %1252 = vmatmul.mubr.f32.gmra.mrb[0].mxu0 %v360
  %v1253 = vpop.f32.mrb[0].mxu0
  %v1254 = vadd.f32 0.0, %v1253
  %v1255 = vpop.f32.mrb[0].mxu0
  %1256 = vmatprep.mubr.f32.mxu0 0.0
  %1257 = vmatmul.mubr.f32.gmra.mrb[0].mxu0 %v363
  %v1258 = vpop.f32.mrb[0].mxu0
  %v1259 = vadd.f32 0.0, %v1258
  %v1260 = vpop.f32.mrb[0].mxu0
  %1261 = vmatprep.mubr.f32.mxu0 0.0
  %1262 = vmatmul.mubr.f32.gmra.mrb[0].mxu0 %v366
  %v1263 = vpop.f32.mrb[0].mxu0
  %v1264 = vadd.f32 0.0, %v1263
  %v1265 = vpop.f32.mrb[0].mxu0
  %1266 = vmatprep.mubr.f32.mxu0 0.0
  %1267 = vmatmul.mubr.f32.gmra.mrb[0].mxu0 %v369
  %v1268 = vpop.f32.mrb[0].mxu0
  %v1269 = vadd.f32 0.0, %v1268
  %v1270 = vpop.f32.mrb[0].mxu0
  %1271 = vmatprep.mubr.f32.mxu0 0.0
  %1272 = vmatmul.mubr.f32.gmra.mrb[0].mxu0 %v372
  %v1273 = vpop.f32.mrb[0].mxu0
  %v1274 = vadd.f32 0.0, %v1273
  %v1275 = vpop.f32.mrb[0].mxu0
  %1276 = vmatprep.mubr.f32.mxu0 0.0
  %1277 = vmatmul.mubr.f32.gmra.mrb[0].mxu0 %v375
  %v1278 = vpop.f32.mrb[0].mxu0
  %v1279 = vadd.f32 0.0, %v1278
  %v1280 = vpop.f32.mrb[0].mxu0
  %1281 = vmatprep.mubr.f32.mxu0 0.0
  %1282 = vmatmul.mubr.f32.gmra.mrb[0].mxu0 %v378
  %v1283 = vpop.f32.mrb[0].mxu0
  %v1284 = vadd.f32 0.0, %v1283
  %v1285 = vpop.f32.mrb[0].mxu0
  %1286 = vmatprep.mubr.f32.mxu0 0.0
  %1287 = vmatmul.mubr.f32.gmra.mrb[0].mxu0 %v381
  %v1288 = vpop.f32.mrb[0].mxu0
  %v1289 = vadd.f32 0.0, %v1288
  %v1290 = vpop.f32.mrb[0].mxu0
  %1291 = vmatprep.mubr.f32.mxu0 0.0
  %1292 = vmatmul.mubr.f32.gmra.mrb[0].mxu0 %v384
  %v1293 = vpop.f32.mrb[0].mxu0
  %v1294 = vadd.f32 0.0, %v1293
  %v1295 = vpop.f32.mrb[0].mxu0
  %1296 = vmatprep.mubr.f32.mxu0 0.0
  %1297 = vmatmul.mubr.f32.gmra.mrb[0].mxu0 %v387
  %v1298 = vpop.f32.mrb[0].mxu0
  %v1299 = vadd.f32 0.0, %v1298
  %v1300 = vpop.f32.mrb[0].mxu0
  %1301 = vmatprep.mubr.f32.mxu0 0.0
  %1302 = vmatmul.mubr.f32.gmra.mrb[0].mxu0 %v390
  %v1303 = vpop.f32.mrb[0].mxu0
  %v1304 = vadd.f32 0.0, %v1303
  %v1305 = vpop.f32.mrb[0].mxu0
  %1306 = vmatprep.mubr.f32.mxu0 0.0
  %1307 = vmatmul.mubr.f32.gmra.mrb[0].mxu0 %v393
  %v1308 = vpop.f32.mrb[0].mxu0
  %v1309 = vadd.f32 0.0, %v1308
  %v1310 = vpop.f32.mrb[0].mxu0
  %1311 = vmatprep.mubr.f32.mxu0 0.0
  %1312 = vmatmul.mubr.f32.gmra.mrb[0].mxu0 %v396
  %v1313 = vpop.f32.mrb[0].mxu0
  %v1314 = vadd.f32 0.0, %v1313
  %v1315 = vpop.f32.mrb[0].mxu0
  %1316 = vmatprep.mubr.f32.mxu0 0.0
  %1317 = vmatmul.mubr.f32.gmra.mrb[0].mxu0 %v399
  %v1318 = vpop.f32.mrb[0].mxu0
  %v1319 = vadd.f32 0.0, %v1318
  %v1320 = vpop.f32.mrb[0].mxu0
  %1321 = vmatprep.mubr.f32.mxu0 0.0
  %1322 = vmatmul.mubr.f32.gmra.mrb[0].mxu0 %v402
  %v1323 = vpop.f32.mrb[0].mxu0
  %v1324 = vadd.f32 0.0, %v1323
  %v1325 = vpop.f32.mrb[0].mxu0
  %1326 = vmatprep.mubr.f32.mxu0 0.0
  %1327 = vmatmul.mubr.f32.gmra.mrb[0].mxu0 %v405
  %v1328 = vpop.f32.mrb[0].mxu0
  %v1329 = vadd.f32 0.0, %v1328
  %v1330 = vpop.f32.mrb[0].mxu0
  %1331 = vmatprep.mubr.f32.mxu0 0.0
  %1332 = vmatmul.mubr.f32.gmra.mrb[0].mxu0 %v408
  %v1333 = vpop.f32.mrb[0].mxu0
  %v1334 = vadd.f32 0.0, %v1333
  %v1335 = vpop.f32.mrb[0].mxu0
  %1336 = vmatprep.mubr.f32.mxu0 0.0
  %1337 = vmatmul.mubr.f32.gmra.mrb[0].mxu0 %v411
  %v1338 = vpop.f32.mrb[0].mxu0
  %v1339 = vadd.f32 0.0, %v1338
  %v1340 = vpop.f32.mrb[0].mxu0
  %1341 = vmatprep.mubr.f32.mxu0 0.0
  %1342 = vmatmul.mubr.f32.gmra.mrb[0].mxu0 %v414
  %v1343 = vpop.f32.mrb[0].mxu0
  %v1344 = vadd.f32 0.0, %v1343
  %v1345 = vpop.f32.mrb[0].mxu0
  %1346 = vmatprep.mubr.f32.mxu0 0.0
  %1347 = vmatmul.mubr.f32.gmra.mrb[0].mxu0 %v417
  %v1348 = vpop.f32.mrb[0].mxu0
  %v1349 = vadd.f32 0.0, %v1348
  %v1350 = vpop.f32.mrb[0].mxu0
  %1351 = vmatprep.mubr.f32.mxu0 0.0
  %1352 = vmatmul.mubr.f32.gmra.mrb[0].mxu0 %v420
  %v1353 = vpop.f32.mrb[0].mxu0
  %v1354 = vadd.f32 0.0, %v1353
  %v1355 = vpop.f32.mrb[0].mxu0
  %1356 = vmatprep.mubr.f32.mxu0 0.0
  %1357 = vmatmul.mubr.f32.gmra.mrb[0].mxu0 %v423
  %v1358 = vpop.f32.mrb[0].mxu0
  %v1359 = vadd.f32 0.0, %v1358
  %v1360 = vpop.f32.mrb[0].mxu0
  %1361 = vmatprep.mubr.f32.mxu0 0.0
  %1362 = vmatmul.mubr.f32.gmra.mrb[0].mxu0 %v426
  %v1363 = vpop.f32.mrb[0].mxu0
  %v1364 = vadd.f32 0.0, %v1363
  %v1365 = vpop.f32.mrb[0].mxu0
  %1366 = vmatprep.mubr.f32.mxu0 0.0
  %1367 = vmatmul.mubr.f32.gmra.mrb[0].mxu0 %v429
  %v1368 = vpop.f32.mrb[0].mxu0
  %v1369 = vadd.f32 0.0, %v1368
  %v1370 = vpop.f32.mrb[0].mxu0
  %1371 = vmatprep.mubr.f32.mxu0 0.0
  %1372 = vmatmul.mubr.f32.gmra.mrb[0].mxu0 %v432
  %v1373 = vpop.f32.mrb[0].mxu0
  %v1374 = vadd.f32 0.0, %v1373
  %v1375 = vpop.f32.mrb[0].mxu0
  %1376 = vmatprep.mubr.f32.mxu0 0.0
  %1377 = vmatmul.mubr.f32.gmra.mrb[0].mxu0 %v435
  %v1378 = vpop.f32.mrb[0].mxu0
  %v1379 = vadd.f32 0.0, %v1378
  %v1380 = vpop.f32.mrb[0].mxu0
  %1381 = vmatprep.mubr.f32.mxu0 0.0
  %1382 = vmatmul.mubr.f32.gmra.mrb[0].mxu0 %v438
  %v1383 = vpop.f32.mrb[0].mxu0
  %v1384 = vadd.f32 0.0, %v1383
  %v1385 = vpop.f32.mrb[0].mxu0
  %1386 = vmatprep.mubr.f32.mxu0 0.0
  %1387 = vmatmul.mubr.f32.gmra.mrb[0].mxu0 %v441
  %v1388 = vpop.f32.mrb[0].mxu0
  %v1389 = vadd.f32 0.0, %v1388
  %v1390 = vpop.f32.mrb[0].mxu0
  %1391 = vmatprep.mubr.f32.mxu0 0.0
  %1392 = vmatmul.mubr.f32.gmra.mrb[0].mxu0 %v444
  %v1393 = vpop.f32.mrb[0].mxu0
  %v1394 = vadd.f32 0.0, %v1393
  %v1395 = vpop.f32.mrb[0].mxu0
  %1396 = vmatprep.mubr.f32.mxu0 0.0
  %1397 = vmatmul.mubr.f32.gmra.mrb[0].mxu0 %v447
  %v1398 = vpop.f32.mrb[0].mxu0
  %v1399 = vadd.f32 0.0, %v1398
  %v1400 = vpop.f32.mrb[0].mxu0
  %1401 = vmatprep.mubr.f32.mxu0 0.0
  %1402 = vmatmul.mubr.f32.gmra.mrb[0].mxu0 %v450
  %v1403 = vpop.f32.mrb[0].mxu0
  %v1404 = vadd.f32 0.0, %v1403
  %v1405 = vpop.f32.mrb[0].mxu0
  %1406 = vmatprep.mubr.f32.mxu0 0.0
  %1407 = vmatmul.mubr.f32.gmra.mrb[0].mxu0 %v453
  %v1408 = vpop.f32.mrb[0].mxu0
  %v1409 = vadd.f32 0.0, %v1408
  %v1410 = vpop.f32.mrb[0].mxu0
  %1411 = vmatprep.mubr.f32.mxu0 0.0
  %1412 = vmatmul.mubr.f32.gmra.mrb[0].mxu0 %v456
  %v1413 = vpop.f32.mrb[0].mxu0
  %v1414 = vadd.f32 0.0, %v1413
  %v1415 = vpop.f32.mrb[0].mxu0
  %1416 = vmatprep.mubr.f32.mxu0 0.0
  %1417 = vmatmul.mubr.f32.gmra.mrb[0].mxu0 %v459
  %v1418 = vpop.f32.mrb[0].mxu0
  %v1419 = vadd.f32 0.0, %v1418
  %v1420 = vpop.f32.mrb[0].mxu0
  %1421 = vmatprep.mubr.f32.mxu0 0.0
  %1422 = vmatmul.mubr.f32.gmra.mrb[0].mxu0 %v462
  %v1423 = vpop.f32.mrb[0].mxu0
  %v1424 = vadd.f32 0.0, %v1423
  %v1425 = vpop.f32.mrb[0].mxu0
  %1426 = vmatprep.mubr.f32.mxu0 0.0
  %1427 = vmatmul.mubr.f32.gmra.mrb[0].mxu0 %v465
  %v1428 = vpop.f32.mrb[0].mxu0
  %v1429 = vadd.f32 0.0, %v1428
  %v1430 = vpop.f32.mrb[0].mxu0
  %1431 = vmatprep.mubr.f32.mxu0 0.0
  %1432 = vmatmul.mubr.f32.gmra.mrb[0].mxu0 %v468
  %v1433 = vpop.f32.mrb[0].mxu0
  %v1434 = vadd.f32 0.0, %v1433
  %v1435 = vpop.f32.mrb[0].mxu0
  %1436 = vmatprep.mubr.f32.mxu0 0.0
  %1437 = vmatmul.mubr.f32.gmra.mrb[0].mxu0 %v471
  %v1438 = vpop.f32.mrb[0].mxu0
  %v1439 = vadd.f32 0.0, %v1438
  %v1440 = vpop.f32.mrb[0].mxu0
  %1441 = vmatprep.mubr.f32.mxu0 0.0
  %1442 = vmatmul.mubr.f32.gmra.mrb[0].mxu0 %v474
  %v1443 = vpop.f32.mrb[0].mxu0
  %v1444 = vadd.f32 0.0, %v1443
  %v1445 = vpop.f32.mrb[0].mxu0
  %1446 = vmatprep.mubr.f32.mxu0 0.0
  %1447 = vmatmul.mubr.f32.gmra.mrb[0].mxu0 %v477
  %v1448 = vpop.f32.mrb[0].mxu0
  %v1449 = vadd.f32 0.0, %v1448
  %v1450 = vpop.f32.mrb[0].mxu0
  %1451 = vmatprep.mubr.f32.mxu0 0.0
  %1452 = vmatmul.mubr.f32.gmra.mrb[0].mxu0 %v480
  %v1453 = vpop.f32.mrb[0].mxu0
  %v1454 = vadd.f32 0.0, %v1453
  %v1455 = vpop.f32.mrb[0].mxu0
  %1456 = vmatprep.mubr.f32.mxu0 0.0
  %1457 = vmatmul.mubr.f32.gmra.mrb[0].mxu0 %v483
  %v1458 = vpop.f32.mrb[0].mxu0
  %v1459 = vadd.f32 0.0, %v1458
  %v1460 = vpop.f32.mrb[0].mxu0
  %1461 = vmatprep.mubr.f32.mxu0 0.0
  %1462 = vmatmul.mubr.f32.gmra.mrb[0].mxu0 %v486
  %v1463 = vpop.f32.mrb[0].mxu0
  %v1464 = vadd.f32 0.0, %v1463
  %v1465 = vpop.f32.mrb[0].mxu0
  %1466 = vmatprep.mubr.f32.mxu0 0.0
  %1467 = vmatmul.mubr.f32.gmra.mrb[0].mxu0 %v489
  %v1468 = vpop.f32.mrb[0].mxu0
  %v1469 = vadd.f32 0.0, %v1468
  %v1470 = vpop.f32.mrb[0].mxu0
  %1471 = vmatprep.mubr.f32.mxu0 0.0
  %1472 = vmatmul.mubr.f32.gmra.mrb[0].mxu0 %v492
  %v1473 = vpop.f32.mrb[0].mxu0
  %v1474 = vadd.f32 0.0, %v1473
  %v1475 = vpop.f32.mrb[0].mxu0
  %1476 = vmatprep.mubr.f32.mxu0 0.0
  %1477 = vmatmul.mubr.f32.gmra.mrb[0].mxu0 %v495
  %v1478 = vpop.f32.mrb[0].mxu0
  %v1479 = vadd.f32 0.0, %v1478
  %v1480 = vpop.f32.mrb[0].mxu0
  %1481 = vmatprep.mubr.f32.mxu0 0.0
  %1482 = vmatmul.mubr.f32.gmra.mrb[0].mxu0 %v498
  %v1483 = vpop.f32.mrb[0].mxu0
  %v1484 = vadd.f32 0.0, %v1483
  %v1485 = vpop.f32.mrb[0].mxu0
  %1486 = vmatprep.mubr.f32.mxu0 0.0
  %1487 = vmatmul.mubr.f32.gmra.mrb[0].mxu0 %v501
  %v1488 = vpop.f32.mrb[0].mxu0
  %v1489 = vadd.f32 0.0, %v1488
  %v1490 = vpop.f32.mrb[0].mxu0
  %1491 = vmatprep.mubr.f32.mxu0 0.0
  %1492 = vmatmul.mubr.f32.gmra.mrb[0].mxu0 %v504
  %v1493 = vpop.f32.mrb[0].mxu0
  %v1494 = vadd.f32 0.0, %v1493
  %v1495 = vpop.f32.mrb[0].mxu0
  %1496 = vmatprep.mubr.f32.mxu0 0.0
  %1497 = vmatmul.mubr.f32.gmra.mrb[0].mxu0 %v507
  %v1498 = vpop.f32.mrb[0].mxu0
  %v1499 = vadd.f32 0.0, %v1498
  %v1500 = vpop.f32.mrb[0].mxu0
  %1501 = vmatprep.mubr.f32.mxu0 0.0
  %1502 = vmatmul.mubr.f32.gmra.mrb[0].mxu0 %v510
  %v1503 = vpop.f32.mrb[0].mxu0
  %v1504 = vadd.f32 0.0, %v1503
  %v1505 = vpop.f32.mrb[0].mxu0
  %1506 = vmatprep.mubr.f32.mxu0 0.0
  %1507 = vmatmul.mubr.f32.gmra.mrb[0].mxu0 %v513
  %v1508 = vpop.f32.mrb[0].mxu0
  %v1509 = vadd.f32 0.0, %v1508
  %v1510 = vpop.f32.mrb[0].mxu0
  %1511 = vmatprep.mubr.f32.mxu0 0.0
  %1512 = vmatmul.mubr.f32.gmra.mrb[0].mxu0 %v516
  %v1513 = vpop.f32.mrb[0].mxu0
  %v1514 = vadd.f32 0.0, %v1513
  %v1515 = vpop.f32.mrb[0].mxu0
  %1516 = vmatprep.mubr.f32.mxu0 0.0
  %1517 = vmatmul.mubr.f32.gmra.mrb[0].mxu0 %v519
  %v1518 = vpop.f32.mrb[0].mxu0
  %v1519 = vadd.f32 0.0, %v1518
  %v1520 = vpop.f32.mrb[0].mxu0
  %1521 = vmatprep.mubr.f32.mxu0 0.0
  %1522 = vmatmul.mubr.f32.gmra.mrb[0].mxu0 %v522
  %v1523 = vpop.f32.mrb[0].mxu0
  %v1524 = vadd.f32 0.0, %v1523
  %v1525 = vpop.f32.mrb[0].mxu0
  %1526 = vmatprep.mubr.f32.mxu0 0.0
  %1527 = vmatmul.mubr.f32.gmra.mrb[0].mxu0 %v525
  %v1528 = vpop.f32.mrb[0].mxu0
  %v1529 = vadd.f32 0.0, %v1528
  %v1530 = vpop.f32.mrb[0].mxu0
  %1531 = vmatprep.mubr.f32.mxu0 0.0
  %1532 = vmatmul.mubr.f32.gmra.mrb[0].mxu0 %v528
  %v1533 = vpop.f32.mrb[0].mxu0
  %v1534 = vadd.f32 0.0, %v1533
  %v1535 = vpop.f32.mrb[0].mxu0
  %1536 = vmatprep.mubr.f32.mxu0 0.0
  %1537 = vmatmul.mubr.f32.gmra.mrb[0].mxu0 %v531
  %v1538 = vpop.f32.mrb[0].mxu0
  %v1539 = vadd.f32 0.0, %v1538
  %v1540 = vpop.f32.mrb[0].mxu0
  %1541 = vmatprep.mubr.f32.mxu0 0.0
  %1542 = vmatmul.mubr.f32.gmra.mrb[0].mxu0 %v534
  %v1543 = vpop.f32.mrb[0].mxu0
  %v1544 = vadd.f32 0.0, %v1543
  %v1545 = vpop.f32.mrb[0].mxu0
  %1546 = vmatprep.mubr.f32.mxu0 0.0
  %1547 = vmatmul.mubr.f32.gmra.mrb[0].mxu0 %v537
  %v1548 = vpop.f32.mrb[0].mxu0
  %v1549 = vadd.f32 0.0, %v1548
  %v1550 = vpop.f32.mrb[0].mxu0
  %1551 = vmatprep.mubr.f32.mxu0 0.0
  %1552 = vmatmul.mubr.f32.gmra.mrb[0].mxu0 %v540
  %v1553 = vpop.f32.mrb[0].mxu0
  %v1554 = vadd.f32 0.0, %v1553
  %v1555 = vpop.f32.mrb[0].mxu0
  %1556 = vmatprep.mubr.f32.mxu0 0.0
  %1557 = vmatmul.mubr.f32.gmra.mrb[0].mxu0 %v543
  %v1558 = vpop.f32.mrb[0].mxu0
  %v1559 = vadd.f32 0.0, %v1558
  %v1560 = vpop.f32.mrb[0].mxu0
  %1561 = vmatprep.mubr.f32.mxu0 0.0
  %1562 = vmatmul.mubr.f32.gmra.mrb[0].mxu0 %v546
  %v1563 = vpop.f32.mrb[0].mxu0
  %v1564 = vadd.f32 0.0, %v1563
  %v1565 = vpop.f32.mrb[0].mxu0
  %1566 = vmatprep.mubr.f32.mxu0 0.0
  %1567 = vmatmul.mubr.f32.gmra.mrb[0].mxu0 %v549
  %v1568 = vpop.f32.mrb[0].mxu0
  %v1569 = vadd.f32 0.0, %v1568
  %v1570 = vpop.f32.mrb[0].mxu0
  %1571 = vmatprep.mubr.f32.mxu0 0.0
  %1572 = vmatmul.mubr.f32.gmra.mrb[0].mxu0 %v552
  %v1573 = vpop.f32.mrb[0].mxu0
  %v1574 = vadd.f32 0.0, %v1573
  %v1575 = vpop.f32.mrb[0].mxu0
  %1576 = vmatprep.mubr.f32.mxu0 0.0
  %1577 = vmatmul.mubr.f32.gmra.mrb[0].mxu0 %v555
  %v1578 = vpop.f32.mrb[0].mxu0
  %v1579 = vadd.f32 0.0, %v1578
  %v1580 = vpop.f32.mrb[0].mxu0
  %1581 = vmatprep.mubr.f32.mxu0 0.0
  %1582 = vmatmul.mubr.f32.gmra.mrb[0].mxu0 %v558
  %v1583 = vpop.f32.mrb[0].mxu0
  %v1584 = vadd.f32 0.0, %v1583
  %v1585 = vpop.f32.mrb[0].mxu0
  %1586 = vmatprep.mubr.f32.mxu0 0.0
  %1587 = vmatmul.mubr.f32.gmra.mrb[0].mxu0 %v561
  %v1588 = vpop.f32.mrb[0].mxu0
  %v1589 = vadd.f32 0.0, %v1588
  %v1590 = vpop.f32.mrb[0].mxu0
  %1591 = vmatprep.mubr.f32.mxu0 0.0
  %1592 = vmatmul.mubr.f32.gmra.mrb[0].mxu0 %v564
  %v1593 = vpop.f32.mrb[0].mxu0
  %v1594 = vadd.f32 0.0, %v1593
  %v1595 = vpop.f32.mrb[0].mxu0
  %1596 = vmatprep.mubr.f32.mxu0 0.0
  %1597 = vmatmul.mubr.f32.gmra.mrb[0].mxu0 %v567
  %v1598 = vpop.f32.mrb[0].mxu0
  %v1599 = vadd.f32 0.0, %v1598
  %v1600 = vpop.f32.mrb[0].mxu0
  %1601 = vmatprep.mubr.f32.mxu0 0.0
  %1602 = vmatmul.mubr.f32.gmra.mrb[0].mxu0 %v570
  %v1603 = vpop.f32.mrb[0].mxu0
  %v1604 = vadd.f32 0.0, %v1603
  %v1605 = vpop.f32.mrb[0].mxu0
  %1606 = vmatprep.mubr.f32.mxu0 0.0
  %1607 = vmatmul.mubr.f32.gmra.mrb[0].mxu0 %v573
  %v1608 = vpop.f32.mrb[0].mxu0
  %v1609 = vadd.f32 0.0, %v1608
  %v1610 = vpop.f32.mrb[0].mxu0
  %1611 = vmatprep.mubr.f32.mxu0 0.0
  %1612 = vmatmul.mubr.f32.gmra.mrb[0].mxu0 %v576
  %v1613 = vpop.f32.mrb[0].mxu0
  %v1614 = vadd.f32 0.0, %v1613
  %v1615 = vpop.f32.mrb[0].mxu0
  %1616 = vmatprep.mubr.f32.mxu0 0.0
  %1617 = vmatmul.mubr.f32.gmra.mrb[0].mxu0 %v579
  %v1618 = vpop.f32.mrb[0].mxu0
  %v1619 = vadd.f32 0.0, %v1618
  %v1620 = vpop.f32.mrb[0].mxu0
  %1621 = vmatprep.mubr.f32.mxu0 0.0
  %1622 = vmatmul.mubr.f32.gmra.mrb[0].mxu0 %v582
  %v1623 = vpop.f32.mrb[0].mxu0
  %v1624 = vadd.f32 0.0, %v1623
  %v1625 = vpop.f32.mrb[0].mxu0
  %1626 = vmatprep.mubr.f32.mxu0 0.0
  %1627 = vmatmul.mubr.f32.gmra.mrb[0].mxu0 %v585
  %v1628 = vpop.f32.mrb[0].mxu0
  %v1629 = vadd.f32 0.0, %v1628
  %v1630 = vpop.f32.mrb[0].mxu0
  %1631 = vmatprep.mubr.f32.mxu0 0.0
  %1632 = vmatmul.mubr.f32.gmra.mrb[0].mxu0 %v588
  %v1633 = vpop.f32.mrb[0].mxu0
  %v1634 = vadd.f32 0.0, %v1633
  %v1635 = vpop.f32.mrb[0].mxu0
  %1636 = vmatprep.mubr.f32.mxu0 0.0
  %1637 = vmatmul.mubr.f32.gmra.mrb[0].mxu0 %v591
  %v1638 = vpop.f32.mrb[0].mxu0
  %v1639 = vadd.f32 0.0, %v1638
  %v1640 = vpop.f32.mrb[0].mxu0
  %1641 = vmatprep.mubr.f32.mxu0 0.0
  %1642 = vmatmul.mubr.f32.gmra.mrb[0].mxu0 %v594
  %v1643 = vpop.f32.mrb[0].mxu0
  %v1644 = vadd.f32 0.0, %v1643
  %v1645 = vpop.f32.mrb[0].mxu0
  %1646 = vmatprep.mubr.f32.mxu0 0.0
  %1647 = vmatmul.mubr.f32.gmra.mrb[0].mxu0 %v597
  %v1648 = vpop.f32.mrb[0].mxu0
  %v1649 = vadd.f32 0.0, %v1648
  %v1650 = vpop.f32.mrb[0].mxu0
  %1651 = vmatprep.mubr.f32.mxu0 0.0
  %1652 = vmatmul.mubr.f32.gmra.mrb[0].mxu0 %v600
  %v1653 = vpop.f32.mrb[0].mxu0
  %v1654 = vadd.f32 0.0, %v1653
  %v1655 = vpop.f32.mrb[0].mxu0
  %1656 = vmatprep.mubr.f32.mxu0 0.0
  %1657 = vmatmul.mubr.f32.gmra.mrb[0].mxu0 %v603
  %v1658 = vpop.f32.mrb[0].mxu0
  %v1659 = vadd.f32 0.0, %v1658
  %v1660 = vpop.f32.mrb[0].mxu0
  %1661 = vmatprep.mubr.f32.mxu0 0.0
  %1662 = vmatmul.mubr.f32.gmra.mrb[0].mxu0 %v606
  %v1663 = vpop.f32.mrb[0].mxu0
  %v1664 = vadd.f32 0.0, %v1663
  %v1665 = vpop.f32.mrb[0].mxu0
  %1666 = vmatprep.mubr.f32.mxu0 0.0
  %1667 = vmatmul.mubr.f32.gmra.mrb[0].mxu0 %v609
  %v1668 = vpop.f32.mrb[0].mxu0
  %v1669 = vadd.f32 0.0, %v1668
  %v1670 = vpop.f32.mrb[0].mxu0
  %1671 = vmatprep.mubr.f32.mxu0 0.0
  %1672 = vmatmul.mubr.f32.gmra.mrb[0].mxu0 %v612
  %v1673 = vpop.f32.mrb[0].mxu0
  %v1674 = vadd.f32 0.0, %v1673
  %v1675 = vpop.f32.mrb[0].mxu0
  %1676 = vmatprep.mubr.f32.mxu0 0.0
  %1677 = vmatmul.mubr.f32.gmra.mrb[0].mxu0 %v615
  %v1678 = vpop.f32.mrb[0].mxu0
  %v1679 = vadd.f32 0.0, %v1678
  %v1680 = vpop.f32.mrb[0].mxu0
  %1681 = vmatprep.mubr.f32.mxu0 0.0
  %1682 = vmatmul.mubr.f32.gmra.mrb[0].mxu0 %v618
  %v1683 = vpop.f32.mrb[0].mxu0
  %v1684 = vadd.f32 0.0, %v1683
  %v1685 = vpop.f32.mrb[0].mxu0
  %1686 = vmatprep.mubr.f32.mxu0 0.0
  %1687 = vmatmul.mubr.f32.gmra.mrb[0].mxu0 %v621
  %v1688 = vpop.f32.mrb[0].mxu0
  %v1689 = vadd.f32 0.0, %v1688
  %v1690 = vpop.f32.mrb[0].mxu0
  %1691 = vmatprep.mubr.f32.mxu0 0.0
  %1692 = vmatmul.mubr.f32.gmra.mrb[0].mxu0 %v624
  %v1693 = vpop.f32.mrb[0].mxu0
  %v1694 = vadd.f32 0.0, %v1693
  %v1695 = vpop.f32.mrb[0].mxu0
  %1696 = vmatprep.mubr.f32.mxu0 0.0
  %1697 = vmatmul.mubr.f32.gmra.mrb[0].mxu0 %v627
  %v1698 = vpop.f32.mrb[0].mxu0
  %v1699 = vadd.f32 0.0, %v1698
  %v1700 = vpop.f32.mrb[0].mxu0
  %1701 = vmatprep.mubr.f32.mxu0 0.0
  %1702 = vmatmul.mubr.f32.gmra.mrb[0].mxu0 %v630
  %v1703 = vpop.f32.mrb[0].mxu0
  %v1704 = vadd.f32 0.0, %v1703
  %v1705 = vpop.f32.mrb[0].mxu0
  %1706 = vmatprep.mubr.f32.mxu0 0.0
  %1707 = vmatmul.mubr.f32.gmra.mrb[0].mxu0 %v633
  %v1708 = vpop.f32.mrb[0].mxu0
  %v1709 = vadd.f32 0.0, %v1708
  %v1710 = vpop.f32.mrb[0].mxu0
  %1711 = vmatprep.mubr.f32.mxu0 0.0
  %1712 = vmatmul.mubr.f32.gmra.mrb[0].mxu0 %v636
  %v1713 = vpop.f32.mrb[0].mxu0
  %v1714 = vadd.f32 0.0, %v1713
  %v1715 = vpop.f32.mrb[0].mxu0
  %1716 = vmatprep.mubr.f32.mxu0 0.0
  %1717 = vmatmul.mubr.f32.gmra.mrb[0].mxu0 %v639
  %v1718 = vpop.f32.mrb[0].mxu0
  %v1719 = vadd.f32 0.0, %v1718
  %v1720 = vpop.f32.mrb[0].mxu0
  %1721 = vmatprep.mubr.f32.mxu0 0.0
  %1722 = vmatmul.mubr.f32.gmra.mrb[0].mxu0 %v642
  %v1723 = vpop.f32.mrb[0].mxu0
  %v1724 = vadd.f32 0.0, %v1723
  %v1725 = vpop.f32.mrb[0].mxu0
  %1726 = vmatprep.mubr.f32.mxu0 0.0
  %1727 = vmatmul.mubr.f32.gmra.mrb[0].mxu0 %v645
  %v1728 = vpop.f32.mrb[0].mxu0
  %v1729 = vadd.f32 0.0, %v1728
  %v1730 = vpop.f32.mrb[0].mxu0
  %1731 = vmatprep.mubr.f32.mxu0 0.0
  %1732 = vmatmul.mubr.f32.gmra.mrb[0].mxu0 %v648
  %v1733 = vpop.f32.mrb[0].mxu0
  %v1734 = vadd.f32 0.0, %v1733
  %v1735 = vpop.f32.mrb[0].mxu0
  %1736 = vmatprep.mubr.f32.mxu0 0.0
  %1737 = vmatmul.mubr.f32.gmra.mrb[0].mxu0 %v651
  %v1738 = vpop.f32.mrb[0].mxu0
  %v1739 = vadd.f32 0.0, %v1738
  %v1740 = vpop.f32.mrb[0].mxu0
  %1741 = vmatprep.mubr.f32.mxu0 0.0
  %1742 = vmatmul.mubr.f32.gmra.mrb[0].mxu0 %v654
  %v1743 = vpop.f32.mrb[0].mxu0
  %v1744 = vadd.f32 0.0, %v1743
  %v1745 = vpop.f32.mrb[0].mxu0
  %1746 = vmatprep.mubr.f32.mxu0 0.0
  %1747 = vmatmul.mubr.f32.gmra.mrb[0].mxu0 %v657
  %v1748 = vpop.f32.mrb[0].mxu0
  %v1749 = vadd.f32 0.0, %v1748
  %v1750 = vpop.f32.mrb[0].mxu0
  %1751 = vmatprep.mubr.f32.mxu0 0.0
  %1752 = vmatmul.mubr.f32.gmra.mrb[0].mxu0 %v660
  %v1753 = vpop.f32.mrb[0].mxu0
  %v1754 = vadd.f32 0.0, %v1753
  %v1755 = vpop.f32.mrb[0].mxu0
  %1756 = vmatprep.mubr.f32.mxu0 0.0
  %1757 = vmatmul.mubr.f32.gmra.mrb[0].mxu0 %v663
  %v1758 = vpop.f32.mrb[0].mxu0
  %v1759 = vadd.f32 0.0, %v1758
  %v1760 = vpop.f32.mrb[0].mxu0
  %1761 = vmatprep.mubr.f32.mxu0 0.0
  %1762 = vmatmul.mubr.f32.gmra.mrb[0].mxu0 %v666
  %v1763 = vpop.f32.mrb[0].mxu0
  %v1764 = vadd.f32 0.0, %v1763
  %v1765 = vpop.f32.mrb[0].mxu0
  %1766 = vmatprep.mubr.f32.mxu0 0.0
  %1767 = vmatmul.mubr.f32.gmra.mrb[0].mxu0 %v669
  %v1768 = vpop.f32.mrb[0].mxu0
  %v1769 = vadd.f32 0.0, %v1768
  %v1770 = vpop.f32.mrb[0].mxu0
  %1771 = vmatprep.mubr.f32.mxu0 0.0
  %1772 = vmatmul.mubr.f32.gmra.mrb[0].mxu0 %v672
  %v1773 = vpop.f32.mrb[0].mxu0
  %v1774 = vadd.f32 0.0, %v1773
  %v1775 = vpop.f32.mrb[0].mxu0
  %1776 = vmatprep.mubr.f32.mxu0 0.0
  %1777 = vmatmul.mubr.f32.gmra.mrb[0].mxu0 %v675
  %v1778 = vpop.f32.mrb[0].mxu0
  %v1779 = vadd.f32 0.0, %v1778
  %v1780 = vpop.f32.mrb[0].mxu0
  %1781 = vmatprep.mubr.f32.mxu0 0.0
  %1782 = vmatmul.mubr.f32.gmra.mrb[0].mxu0 %v678
  %v1783 = vpop.f32.mrb[0].mxu0
  %v1784 = vadd.f32 0.0, %v1783
  %v1785 = vpop.f32.mrb[0].mxu0
  %1786 = vmatprep.mubr.f32.mxu0 0.0
  %1787 = vmatmul.mubr.f32.gmra.mrb[0].mxu0 %v681
  %v1788 = vpop.f32.mrb[0].mxu0
  %v1789 = vadd.f32 0.0, %v1788
  %v1790 = vpop.f32.mrb[0].mxu0
  %1791 = vmatprep.mubr.f32.mxu0 0.0
  %1792 = vmatmul.mubr.f32.gmra.mrb[0].mxu0 %v684
  %v1793 = vpop.f32.mrb[0].mxu0
  %v1794 = vadd.f32 0.0, %v1793
  %v1795 = vpop.f32.mrb[0].mxu0
  %1796 = vmatprep.mubr.f32.mxu0 0.0
  %1797 = vmatmul.mubr.f32.gmra.mrb[0].mxu0 %v687
  %v1798 = vpop.f32.mrb[0].mxu0
  %v1799 = vadd.f32 0.0, %v1798
  %v1800 = vpop.f32.mrb[0].mxu0
  %1801 = vmatprep.mubr.f32.mxu0 0.0
  %1802 = vmatmul.mubr.f32.gmra.mrb[0].mxu0 %v690
  %v1803 = vpop.f32.mrb[0].mxu0
  %v1804 = vadd.f32 0.0, %v1803
  %v1805 = vpop.f32.mrb[0].mxu0
  %1806 = vmatprep.mubr.f32.mxu0 0.0
  %1807 = vmatmul.mubr.f32.gmra.mrb[0].mxu0 %v693
  %v1808 = vpop.f32.mrb[0].mxu0
  %v1809 = vadd.f32 0.0, %v1808
  %v1810 = vpop.f32.mrb[0].mxu0
  %1811 = vmatprep.mubr.f32.mxu0 0.0
  %1812 = vmatmul.mubr.f32.gmra.mrb[0].mxu0 %v696
  %v1813 = vpop.f32.mrb[0].mxu0
  %v1814 = vadd.f32 0.0, %v1813
  %v1815 = vpop.f32.mrb[0].mxu0
  %1816 = vmatprep.mubr.f32.mxu0 0.0
  %1817 = vmatmul.mubr.f32.gmra.mrb[0].mxu0 %v699
  %v1818 = vpop.f32.mrb[0].mxu0
  %v1819 = vadd.f32 0.0, %v1818
  %v1820 = vpop.f32.mrb[0].mxu0
  %1821 = vmatprep.mubr.f32.mxu0 0.0
  %1822 = vmatmul.mubr.f32.gmra.mrb[0].mxu0 %v702
  %v1823 = vpop.f32.mrb[0].mxu0
  %v1824 = vadd.f32 0.0, %v1823
  %v1825 = vpop.f32.mrb[0].mxu0
  %1826 = vmatprep.mubr.f32.mxu0 0.0
  %1827 = vmatmul.mubr.f32.gmra.mrb[0].mxu0 %v705
  %v1828 = vpop.f32.mrb[0].mxu0
  %v1829 = vadd.f32 0.0, %v1828
  %v1830 = vpop.f32.mrb[0].mxu0
  %1831 = vmatprep.mubr.f32.mxu0 0.0
  %1832 = vmatmul.mubr.f32.gmra.mrb[0].mxu0 %v708
  %v1833 = vpop.f32.mrb[0].mxu0
  %v1834 = vadd.f32 0.0, %v1833
  %v1835 = vpop.f32.mrb[0].mxu0
  %1836 = vmatprep.mubr.f32.mxu0 0.0
  %1837 = vmatmul.mubr.f32.gmra.mrb[0].mxu0 %v711
  %v1838 = vpop.f32.mrb[0].mxu0
  %v1839 = vadd.f32 0.0, %v1838
  %v1840 = vpop.f32.mrb[0].mxu0
  %1841 = vmatprep.mubr.f32.mxu0 0.0
  %1842 = vmatmul.mubr.f32.gmra.mrb[0].mxu0 %v714
  %v1843 = vpop.f32.mrb[0].mxu0
  %v1844 = vadd.f32 0.0, %v1843
  %v1845 = vpop.f32.mrb[0].mxu0
  %1846 = vmatprep.mubr.f32.mxu0 0.0
  %1847 = vmatmul.mubr.f32.gmra.mrb[0].mxu0 %v717
  %v1848 = vpop.f32.mrb[0].mxu0
  %v1849 = vadd.f32 0.0, %v1848
  %v1850 = vpop.f32.mrb[0].mxu0
  %1851 = vmatprep.mubr.f32.mxu0 0.0
  %1852 = vmatmul.mubr.f32.gmra.mrb[0].mxu0 %v720
  %v1853 = vpop.f32.mrb[0].mxu0
  %v1854 = vadd.f32 0.0, %v1853
  %v1855 = vpop.f32.mrb[0].mxu0
  %1856 = vmatprep.mubr.f32.mxu0 0.0
  %1857 = vmatmul.mubr.f32.gmra.mrb[0].mxu0 %v723
  %v1858 = vpop.f32.mrb[0].mxu0
  %v1859 = vadd.f32 0.0, %v1858
  %v1860 = vpop.f32.mrb[0].mxu0
  %1861 = vmatprep.mubr.f32.mxu0 0.0
  %1862 = vmatmul.mubr.f32.gmra.mrb[0].mxu0 %v726
  %v1863 = vpop.f32.mrb[0].mxu0
  %v1864 = vadd.f32 0.0, %v1863
  %v1865 = vpop.f32.mrb[0].mxu0
  %1866 = vmatprep.mubr.f32.mxu0 0.0
  %1867 = vmatmul.mubr.f32.gmra.mrb[0].mxu0 %v729
  %v1868 = vpop.f32.mrb[0].mxu0
  %v1869 = vadd.f32 0.0, %v1868
  %v1870 = vpop.f32.mrb[0].mxu0
  %1871 = vmatprep.mubr.f32.mxu0 0.0
  %1872 = vmatmul.mubr.f32.gmra.mrb[0].mxu0 %v732
  %v1873 = vpop.f32.mrb[0].mxu0
  %v1874 = vadd.f32 0.0, %v1873
  %v1875 = vpop.f32.mrb[0].mxu0
  %1876 = vmatprep.mubr.f32.mxu0 0.0
  %1877 = vmatmul.mubr.f32.gmra.mrb[0].mxu0 %v735
  %v1878 = vpop.f32.mrb[0].mxu0
  %v1879 = vadd.f32 0.0, %v1878
  %v1880 = vpop.f32.mrb[0].mxu0
  %1881 = vmatprep.mubr.f32.mxu0 0.0
  %1882 = vmatmul.mubr.f32.gmra.mrb[0].mxu0 %v738
  %v1883 = vpop.f32.mrb[0].mxu0
  %v1884 = vadd.f32 0.0, %v1883
  %v1885 = vpop.f32.mrb[0].mxu0
  %1886 = vmatprep.mubr.f32.mxu0 0.0
  %1887 = vmatmul.mubr.f32.gmra.mrb[0].mxu0 %v741
  %v1888 = vpop.f32.mrb[0].mxu0
  %v1889 = vadd.f32 0.0, %v1888
  %v1890 = vpop.f32.mrb[0].mxu0
  %1891 = vmatprep.mubr.f32.mxu0 0.0
  %1892 = vmatmul.mubr.f32.gmra.mrb[0].mxu0 %v744
  %v1893 = vpop.f32.mrb[0].mxu0
  %v1894 = vadd.f32 0.0, %v1893
  %v1895 = vpop.f32.mrb[0].mxu0
  %1896 = vmatprep.mubr.f32.mxu0 0.0
  %1897 = vmatmul.mubr.f32.gmra.mrb[0].mxu0 %v747
  %v1898 = vpop.f32.mrb[0].mxu0
  %v1899 = vadd.f32 0.0, %v1898
  %v1900 = vpop.f32.mrb[0].mxu0
  %1901 = vmatprep.mubr.f32.mxu0 0.0
  %1902 = vmatmul.mubr.f32.gmra.mrb[0].mxu0 %v750
  %v1903 = vpop.f32.mrb[0].mxu0
  %v1904 = vadd.f32 0.0, %v1903
  %v1905 = vpop.f32.mrb[0].mxu0
  %1906 = vmatprep.mubr.f32.mxu0 0.0
  %1907 = vmatmul.mubr.f32.gmra.mrb[0].mxu0 %v753
  %v1908 = vpop.f32.mrb[0].mxu0
  %v1909 = vadd.f32 0.0, %v1908
  %v1910 = vpop.f32.mrb[0].mxu0
  %1911 = vmatprep.mubr.f32.mxu0 0.0
  %1912 = vmatmul.mubr.f32.gmra.mrb[0].mxu0 %v756
  %v1913 = vpop.f32.mrb[0].mxu0
  %v1914 = vadd.f32 0.0, %v1913
  %v1915 = vpop.f32.mrb[0].mxu0
  %1916 = vmatprep.mubr.f32.mxu0 0.0
  %1917 = vmatmul.mubr.f32.gmra.mrb[0].mxu0 %v759
  %v1918 = vpop.f32.mrb[0].mxu0
  %v1919 = vadd.f32 0.0, %v1918
  %v1920 = vpop.f32.mrb[0].mxu0
  %1921 = vmatprep.mubr.f32.mxu0 0.0
  %1922 = vmatmul.mubr.f32.gmra.mrb[0].mxu0 %v762
  %v1923 = vpop.f32.mrb[0].mxu0
  %v1924 = vadd.f32 0.0, %v1923
  %v1925 = vpop.f32.mrb[0].mxu0
  %1926 = vmatprep.mubr.f32.mxu0 0.0
  %1927 = vmatmul.mubr.f32.gmra.mrb[0].mxu0 %v765
  %v1928 = vpop.f32.mrb[0].mxu0
  %v1929 = vadd.f32 0.0, %v1928
  %v1930 = vpop.f32.mrb[0].mxu0
  %1931 = vmatprep.mubr.f32.mxu0 0.0
  %1932 = vmatmul.mubr.f32.gmra.mrb[0].mxu0 %v768
  %v1933 = vpop.f32.mrb[0].mxu0
  %v1934 = vadd.f32 0.0, %v1933
  %v1935 = vpop.f32.mrb[0].mxu0
  %1936 = vmatprep.mubr.f32.mxu0 0.0
  %1937 = vmatmul.mubr.f32.gmra.mrb[0].mxu0 %v771
  %v1938 = vpop.f32.mrb[0].mxu0
  %v1939 = vadd.f32 0.0, %v1938
  %v1940 = vpop.f32.mrb[0].mxu0
  %1941 = vmatprep.mubr.f32.mxu0 0.0
  %1942 = vmatmul.mubr.f32.gmra.mrb[0].mxu0 %v774
  %v1943 = vpop.f32.mrb[0].mxu0
  %v1944 = vadd.f32 0.0, %v1943
  %v1945 = vpop.f32.mrb[0].mxu0
  %1946 = vmatprep.mubr.f32.mxu0 0.0
  %1947 = vmatmul.mubr.f32.gmra.mrb[0].mxu0 %v777
  %v1948 = vpop.f32.mrb[0].mxu0
  %v1949 = vadd.f32 0.0, %v1948
  %v1950 = vpop.f32.mrb[0].mxu0
  %1951 = vmatprep.mubr.f32.mxu0 0.0
  %1952 = vmatmul.mubr.f32.gmra.mrb[0].mxu0 %v780
  %v1953 = vpop.f32.mrb[0].mxu0
  %v1954 = vadd.f32 0.0, %v1953
  %v1955 = vpop.f32.mrb[0].mxu0
  %1956 = vmatprep.mubr.f32.mxu0 0.0
  %1957 = vmatmul.mubr.f32.gmra.mrb[0].mxu0 %v783
  %v1958 = vpop.f32.mrb[0].mxu0
  %v1959 = vadd.f32 0.0, %v1958
  %v1960 = vpop.f32.mrb[0].mxu0
  %1961 = vmatprep.mubr.f32.mxu0 0.0
  %1962 = vmatmul.mubr.f32.gmra.mrb[0].mxu0 %v786
  %v1963 = vpop.f32.mrb[0].mxu0
  %v1964 = vadd.f32 0.0, %v1963
  %v1965 = vpop.f32.mrb[0].mxu0
  %1966 = vmatprep.mubr.f32.mxu0 0.0
  %1967 = vmatmul.mubr.f32.gmra.mrb[0].mxu0 %v789
  %v1968 = vpop.f32.mrb[0].mxu0
  %v1969 = vadd.f32 0.0, %v1968
  %v1970 = vpop.f32.mrb[0].mxu0
  %1971 = vmatprep.mubr.f32.mxu0 0.0
  %1972 = vmatmul.mubr.f32.gmra.mrb[0].mxu0 %v792
  %v1973 = vpop.f32.mrb[0].mxu0
  %v1974 = vadd.f32 0.0, %v1973
  %v1975 = vpop.f32.mrb[0].mxu0
  %1976 = vmatprep.mubr.f32.mxu0 0.0
  %1977 = vmatmul.mubr.f32.gmra.mrb[0].mxu0 %v795
  %v1978 = vpop.f32.mrb[0].mxu0
  %v1979 = vadd.f32 0.0, %v1978
  %v1980 = vpop.f32.mrb[0].mxu0
  %1981 = vmatprep.mubr.f32.mxu0 0.0
  %1982 = vmatmul.mubr.f32.gmra.mrb[0].mxu0 %v798
  %v1983 = vpop.f32.mrb[0].mxu0
  %v1984 = vadd.f32 0.0, %v1983
  %v1985 = vpop.f32.mrb[0].mxu0
  %1986 = vmatprep.mubr.f32.mxu0 0.0
  %1987 = vmatmul.mubr.f32.gmra.mrb[0].mxu0 %v801
  %v1988 = vpop.f32.mrb[0].mxu0
  %v1989 = vadd.f32 0.0, %v1988
  %v1990 = vpop.f32.mrb[0].mxu0
  %1991 = vmatprep.mubr.f32.mxu0 0.0
  %1992 = vmatmul.mubr.f32.gmra.mrb[0].mxu0 %v804
  %v1993 = vpop.f32.mrb[0].mxu0
  %v1994 = vadd.f32 0.0, %v1993
  %v1995 = vpop.f32.mrb[0].mxu0
  %1996 = vmatprep.mubr.f32.mxu0 0.0
  %1997 = vmatmul.mubr.f32.gmra.mrb[0].mxu0 %v807
  %v1998 = vpop.f32.mrb[0].mxu0
  %v1999 = vadd.f32 0.0, %v1998
  %v2000 = vpop.f32.mrb[0].mxu0
  %2001 = vmatprep.mubr.f32.mxu0 0.0
  %2002 = vmatmul.mubr.f32.gmra.mrb[0].mxu0 %v810
  %v2003 = vpop.f32.mrb[0].mxu0
  %v2004 = vadd.f32 0.0, %v2003
  %v2005 = vpop.f32.mrb[0].mxu0
  %2006 = vmatprep.mubr.f32.mxu0 0.0
  %2007 = vmatmul.mubr.f32.gmra.mrb[0].mxu0 %v813
  %v2008 = vpop.f32.mrb[0].mxu0
  %v2009 = vadd.f32 0.0, %v2008
  %v2010 = vpop.f32.mrb[0].mxu0
  %2011 = vmatprep.mubr.f32.mxu0 0.0
  %2012 = vmatmul.mubr.f32.gmra.mrb[0].mxu0 %v816
  %v2013 = vpop.f32.mrb[0].mxu0
  %v2014 = vadd.f32 0.0, %v2013
  %v2015 = vpop.f32.mrb[0].mxu0
  %2016 = vmatprep.mubr.f32.mxu0 0.0
  %2017 = vmatmul.mubr.f32.gmra.mrb[0].mxu0 %v819
  %v2018 = vpop.f32.mrb[0].mxu0
  %v2019 = vadd.f32 0.0, %v2018
  %v2020 = vpop.f32.mrb[0].mxu0
  %2021 = vmatprep.mubr.f32.mxu0 0.0
  %2022 = vmatmul.mubr.f32.gmra.mrb[0].mxu0 %v822
  %v2023 = vpop.f32.mrb[0].mxu0
  %v2024 = vadd.f32 0.0, %v2023
  %v2025 = vpop.f32.mrb[0].mxu0
  %2026 = vmatprep.mubr.f32.mxu0 0.0
  %2027 = vmatmul.mubr.f32.gmra.mrb[0].mxu0 %v825
  %v2028 = vpop.f32.mrb[0].mxu0
  %v2029 = vadd.f32 0.0, %v2028
  %v2030 = vpop.f32.mrb[0].mxu0
  %2031 = vmatprep.mubr.f32.mxu0 0.0
  %2032 = vmatmul.mubr.f32.gmra.mrb[0].mxu0 %v828
  %v2033 = vpop.f32.mrb[0].mxu0
  %v2034 = vadd.f32 0.0, %v2033
  %v2035 = vpop.f32.mrb[0].mxu0
  %2036 = vmatprep.mubr.f32.mxu0 0.0
  %2037 = vmatmul.mubr.f32.gmra.mrb[0].mxu0 %v831
  %v2038 = vpop.f32.mrb[0].mxu0
  %v2039 = vadd.f32 0.0, %v2038
  %v2040 = vpop.f32.mrb[0].mxu0
  %2041 = vmatprep.mubr.f32.mxu0 0.0
  %2042 = vmatmul.mubr.f32.gmra.mrb[0].mxu0 %v834
  %v2043 = vpop.f32.mrb[0].mxu0
  %v2044 = vadd.f32 0.0, %v2043
  %v2045 = vpop.f32.mrb[0].mxu0
  %2046 = vmatprep.mubr.f32.mxu0 0.0
  %2047 = vmatmul.mubr.f32.gmra.mrb[0].mxu0 %v837
  %v2048 = vpop.f32.mrb[0].mxu0
  %v2049 = vadd.f32 0.0, %v2048
  %v2050 = vpop.f32.mrb[0].mxu0
  %2051 = vmatprep.mubr.f32.mxu0 0.0
  %2052 = vmatmul.mubr.f32.gmra.mrb[0].mxu0 %v840
  %v2053 = vpop.f32.mrb[0].mxu0
  %v2054 = vadd.f32 0.0, %v2053
  %v2055 = vpop.f32.mrb[0].mxu0
  %2056 = vmatprep.mubr.f32.mxu0 0.0
  %2057 = vmatmul.mubr.f32.gmra.mrb[0].mxu0 %v843
  %v2058 = vpop.f32.mrb[0].mxu0
  %v2059 = vadd.f32 0.0, %v2058
  %v2060 = vpop.f32.mrb[0].mxu0
  %2061 = vmatprep.mubr.f32.mxu0 0.0
  %2062 = vmatmul.mubr.f32.gmra.mrb[0].mxu0 %v846
  %v2063 = vpop.f32.mrb[0].mxu0
  %v2064 = vadd.f32 0.0, %v2063
  %v2065 = vpop.f32.mrb[0].mxu0
  %2066 = vmatprep.mubr.f32.mxu0 0.0
  %2067 = vmatmul.mubr.f32.gmra.mrb[0].mxu0 %v849
  %v2068 = vpop.f32.mrb[0].mxu0
  %v2069 = vadd.f32 0.0, %v2068
  %v2070 = vpop.f32.mrb[0].mxu0
  %2071 = vmatprep.mubr.f32.mxu0 0.0
  %2072 = vmatmul.mubr.f32.gmra.mrb[0].mxu0 %v852
  %v2073 = vpop.f32.mrb[0].mxu0
  %v2074 = vadd.f32 0.0, %v2073
  %v2075 = vpop.f32.mrb[0].mxu0
  %2076 = vmatprep.mubr.f32.mxu0 0.0
  %2077 = vmatmul.mubr.f32.gmra.mrb[0].mxu0 %v855
  %v2078 = vpop.f32.mrb[0].mxu0
  %v2079 = vadd.f32 0.0, %v2078
  %v2080 = vpop.f32.mrb[0].mxu0
  %2081 = vmatprep.mubr.f32.mxu0 0.0
  %2082 = vmatmul.mubr.f32.gmra.mrb[0].mxu0 %v858
  %v2083 = vpop.f32.mrb[0].mxu0
  %v2084 = vadd.f32 0.0, %v2083
  %v2085 = vpop.f32.mrb[0].mxu0
  %2086 = vmatprep.mubr.f32.mxu0 0.0
  %2087 = vmatmul.mubr.f32.gmra.mrb[0].mxu0 %v861
  %v2088 = vpop.f32.mrb[0].mxu0
  %v2089 = vadd.f32 0.0, %v2088
  %v2090 = vpop.f32.mrb[0].mxu0
  %2091 = vmatprep.mubr.f32.mxu0 0.0
  %2092 = vmatmul.mubr.f32.gmra.mrb[0].mxu0 %v864
  %v2093 = vpop.f32.mrb[0].mxu0
  %v2094 = vadd.f32 0.0, %v2093
  %v2095 = vpop.f32.mrb[0].mxu0
  %2096 = vmatprep.mubr.f32.mxu0 0.0
  %2097 = vmatmul.mubr.f32.gmra.mrb[0].mxu0 %v867
  %v2098 = vpop.f32.mrb[0].mxu0
  %v2099 = vadd.f32 0.0, %v2098
  %v2100 = vpop.f32.mrb[0].mxu0
  %2101 = vmatprep.mubr.f32.mxu0 0.0
  %2102 = vmatmul.mubr.f32.gmra.mrb[0].mxu0 %v870
  %v2103 = vpop.f32.mrb[0].mxu0
  %v2104 = vadd.f32 0.0, %v2103
  %v2105 = vpop.f32.mrb[0].mxu0
  %2106 = vmatprep.mubr.f32.mxu0 0.0
  %2107 = vmatmul.mubr.f32.gmra.mrb[0].mxu0 %v873
  %v2108 = vpop.f32.mrb[0].mxu0
  %v2109 = vadd.f32 0.0, %v2108
  %v2110 = vpop.f32.mrb[0].mxu0
  %2111 = vmatprep.mubr.f32.mxu0 0.0
  %2112 = vmatmul.mubr.f32.gmra.mrb[0].mxu0 %v876
  %v2113 = vpop.f32.mrb[0].mxu0
  %v2114 = vadd.f32 0.0, %v2113
  %v2115 = vpop.f32.mrb[0].mxu0
  %2116 = vmatprep.mubr.f32.mxu0 0.0
  %2117 = vmatmul.mubr.f32.gmra.mrb[0].mxu0 %v879
  %v2118 = vpop.f32.mrb[0].mxu0
  %v2119 = vadd.f32 0.0, %v2118
  %v2120 = vpop.f32.mrb[0].mxu0
  %2121 = vmatprep.mubr.f32.mxu0 0.0
  %2122 = vmatmul.mubr.f32.gmra.mrb[0].mxu0 %v882
  %v2123 = vpop.f32.mrb[0].mxu0
  %v2124 = vadd.f32 0.0, %v2123
  %v2125 = vpop.f32.mrb[0].mxu0
  %2126 = vmatprep.mubr.f32.mxu0 0.0
  %2127 = vmatmul.mubr.f32.gmra.mrb[0].mxu0 %v885
  %v2128 = vpop.f32.mrb[0].mxu0
  %v2129 = vadd.f32 0.0, %v2128
  %v2130 = vpop.f32.mrb[0].mxu0
  %2131 = vmatprep.mubr.f32.mxu0 0.0
  %2132 = vmatmul.mubr.f32.gmra.mrb[0].mxu0 %v888
  %v2133 = vpop.f32.mrb[0].mxu0
  %v2134 = vadd.f32 0.0, %v2133
  %v2135 = vpop.f32.mrb[0].mxu0
  %2136 = vmatprep.mubr.f32.mxu0 0.0
  %2137 = vmatmul.mubr.f32.gmra.mrb[0].mxu0 %v891
  %v2138 = vpop.f32.mrb[0].mxu0
  %v2139 = vadd.f32 0.0, %v2138
  %v2140 = vpop.f32.mrb[0].mxu0
  %2141 = vmatprep.mubr.f32.mxu0 0.0
  %2142 = vmatmul.mubr.f32.gmra.mrb[0].mxu0 %v894
  %v2143 = vpop.f32.mrb[0].mxu0
  %v2144 = vadd.f32 0.0, %v2143
  %v2145 = vpop.f32.mrb[0].mxu0
  %2146 = vmatprep.mubr.f32.mxu0 0.0
  %2147 = vmatmul.mubr.f32.gmra.mrb[0].mxu0 %v897
  %v2148 = vpop.f32.mrb[0].mxu0
  %v2149 = vadd.f32 0.0, %v2148
  %v2150 = vpop.f32.mrb[0].mxu0
  %2151 = vmatprep.mubr.f32.mxu0 0.0
  %2152 = vmatmul.mubr.f32.gmra.mrb[0].mxu0 %v900
  %v2153 = vpop.f32.mrb[0].mxu0
  %v2154 = vadd.f32 0.0, %v2153
  %v2155 = vpop.f32.mrb[0].mxu0
  %2156 = vmatprep.mubr.f32.mxu0 0.0
  %2157 = vmatmul.mubr.f32.gmra.mrb[0].mxu0 %v903
  %v2158 = vpop.f32.mrb[0].mxu0
  %v2159 = vadd.f32 0.0, %v2158
  %v2160 = vpop.f32.mrb[0].mxu0
  %2161 = vmatprep.mubr.f32.mxu0 0.0
  %2162 = vmatmul.mubr.f32.gmra.mrb[0].mxu0 %v906
  %v2163 = vpop.f32.mrb[0].mxu0
  %v2164 = vadd.f32 0.0, %v2163
  %v2165 = vpop.f32.mrb[0].mxu0
  %2166 = vmatprep.mubr.f32.mxu0 0.0
  %2167 = vmatmul.mubr.f32.gmra.mrb[0].mxu0 %v909
  %v2168 = vpop.f32.mrb[0].mxu0
  %v2169 = vadd.f32 0.0, %v2168
  %v2170 = vpop.f32.mrb[0].mxu0
  %2171 = vmatprep.mubr.f32.mxu0 0.0
  %2172 = vmatmul.mubr.f32.gmra.mrb[0].mxu0 %v912
  %v2173 = vpop.f32.mrb[0].mxu0
  %v2174 = vadd.f32 0.0, %v2173
  %v2175 = vpop.f32.mrb[0].mxu0
  %2176 = vmatprep.mubr.f32.mxu0 0.0
  %2177 = vmatmul.mubr.f32.gmra.mrb[0].mxu0 %v915
  %v2178 = vpop.f32.mrb[0].mxu0
  %v2179 = vadd.f32 0.0, %v2178
  %v2180 = vpop.f32.mrb[0].mxu0
  %2181 = vmatprep.mubr.f32.mxu0 0.0
  %2182 = vmatmul.mubr.f32.gmra.mrb[0].mxu0 %v918
  %v2183 = vpop.f32.mrb[0].mxu0
  %v2184 = vadd.f32 0.0, %v2183
  %v2185 = vpop.f32.mrb[0].mxu0
  %2186 = vmatprep.mubr.f32.mxu0 0.0
  %2187 = vmatmul.mubr.f32.gmra.mrb[0].mxu0 %v921
  %v2188 = vpop.f32.mrb[0].mxu0
  %v2189 = vadd.f32 0.0, %v2188
  %v2190 = vpop.f32.mrb[0].mxu0
  %2191 = vmatprep.mubr.f32.mxu0 0.0
  %2192 = vmatmul.mubr.f32.gmra.mrb[0].mxu0 %v924
  %v2193 = vpop.f32.mrb[0].mxu0
  %v2194 = vadd.f32 0.0, %v2193
  %v2195 = vpop.f32.mrb[0].mxu0
  %2196 = vmatprep.mubr.f32.mxu0 0.0
  %2197 = vmatmul.mubr.f32.gmra.mrb[0].mxu0 %v927
  %v2198 = vpop.f32.mrb[0].mxu0
  %v2199 = vadd.f32 0.0, %v2198
  %v2200 = vpop.f32.mrb[0].mxu0
  %2201 = vmatprep.mubr.f32.mxu0 0.0
  %2202 = vmatmul.mubr.f32.gmra.mrb[0].mxu0 %v930
  %v2203 = vpop.f32.mrb[0].mxu0
  %v2204 = vadd.f32 0.0, %v2203
  %v2205 = vpop.f32.mrb[0].mxu0
  %2206 = vmatprep.mubr.f32.mxu0 0.0
  %2207 = vmatmul.mubr.f32.gmra.mrb[0].mxu0 %v933
  %v2208 = vpop.f32.mrb[0].mxu0
  %v2209 = vadd.f32 0.0, %v2208
  %v2210 = vpop.f32.mrb[0].mxu0
  %2211 = vmatprep.mubr.f32.mxu0 0.0
  %2212 = vmatmul.mubr.f32.gmra.mrb[0].mxu0 %v936
  %v2213 = vpop.f32.mrb[0].mxu0
  %v2214 = vadd.f32 0.0, %v2213
  %v2215 = vpop.f32.mrb[0].mxu0
  %2216 = vmatprep.mubr.f32.mxu0 0.0
  %2217 = vmatmul.mubr.f32.gmra.mrb[0].mxu0 %v939
  %v2218 = vpop.f32.mrb[0].mxu0
  %v2219 = vadd.f32 0.0, %v2218
  %v2220 = vpop.f32.mrb[0].mxu0
  %2221 = vmatprep.mubr.f32.mxu0 0.0
  %2222 = vmatmul.mubr.f32.gmra.mrb[0].mxu0 %v942
  %v2223 = vpop.f32.mrb[0].mxu0
  %v2224 = vadd.f32 0.0, %v2223
  %v2225 = vpop.f32.mrb[0].mxu0
  %2226 = vmatprep.mubr.f32.mxu0 0.0
  %2227 = vmatmul.mubr.f32.gmra.mrb[0].mxu0 %v945
  %v2228 = vpop.f32.mrb[0].mxu0
  %v2229 = vadd.f32 0.0, %v2228
  %v2230 = vpop.f32.mrb[0].mxu0
  %2231 = vmatprep.mubr.f32.mxu0 0.0
  %2232 = vmatmul.mubr.f32.gmra.mrb[0].mxu0 %v948
  %v2233 = vpop.f32.mrb[0].mxu0
  %v2234 = vadd.f32 0.0, %v2233
  %v2235 = vpop.f32.mrb[0].mxu0
  %2236 = vmatprep.mubr.f32.mxu0 0.0
  %2237 = vmatmul.mubr.f32.gmra.mrb[0].mxu0 %v951
  %v2238 = vpop.f32.mrb[0].mxu0
  %v2239 = vadd.f32 0.0, %v2238
  %v2240 = vpop.f32.mrb[0].mxu0
  %2241 = vmatprep.mubr.f32.mxu0 0.0
  %2242 = vmatmul.mubr.f32.gmra.mrb[0].mxu0 %v954
  %v2243 = vpop.f32.mrb[0].mxu0
  %v2244 = vadd.f32 0.0, %v2243
  %v2245 = vpop.f32.mrb[0].mxu0
  %2246 = vmatprep.mubr.f32.mxu0 0.0
  %2247 = vmatmul.mubr.f32.gmra.mrb[0].mxu0 %v957
  %v2248 = vpop.f32.mrb[0].mxu0
  %v2249 = vadd.f32 0.0, %v2248
  %v2250 = vpop.f32.mrb[0].mxu0
  %2251 = vmatprep.mubr.f32.mxu0 0.0
  %2252 = vmatmul.mubr.f32.gmra.mrb[0].mxu0 %v960
  %v2253 = vpop.f32.mrb[0].mxu0
  %v2254 = vadd.f32 0.0, %v2253
  %v2255 = vpop.f32.mrb[0].mxu0
  %2256 = vmatprep.mubr.f32.mxu0 0.0
  %2257 = vmatmul.mubr.f32.gmra.mrb[0].mxu0 %v963
  %v2258 = vpop.f32.mrb[0].mxu0
  %v2259 = vadd.f32 0.0, %v2258
  %v2260 = vpop.f32.mrb[0].mxu0
  %2261 = vmatprep.mubr.f32.mxu0 0.0
  %2262 = vmatmul.mubr.f32.gmra.mrb[0].mxu0 %v966
  %v2263 = vpop.f32.mrb[0].mxu0
  %v2264 = vadd.f32 0.0, %v2263
  %v2265 = vpop.f32.mrb[0].mxu0
  %2266 = vmatprep.mubr.f32.mxu0 0.0
  %2267 = vmatmul.mubr.f32.gmra.mrb[0].mxu0 %v969
  %v2268 = vpop.f32.mrb[0].mxu0
  %v2269 = vadd.f32 0.0, %v2268
  %v2270 = vpop.f32.mrb[0].mxu0
  %2271 = vmatprep.mubr.f32.mxu0 0.0
  %2272 = vmatmul.mubr.f32.gmra.mrb[0].mxu0 %v972
  %v2273 = vpop.f32.mrb[0].mxu0
  %v2274 = vadd.f32 0.0, %v2273
  %v2275 = vpop.f32.mrb[0].mxu0
  %2276 = vmatprep.mubr.f32.mxu0 0.0
  %2277 = vmatmul.mubr.f32.gmra.mrb[0].mxu0 %v975
  %v2278 = vpop.f32.mrb[0].mxu0
  %v2279 = vadd.f32 0.0, %v2278
  %v2280 = vpop.f32.mrb[0].mxu0
  %2281 = vmatprep.mubr.f32.mxu0 0.0
  %2282 = vmatmul.mubr.f32.gmra.mrb[0].mxu0 %v978
  %v2283 = vpop.f32.mrb[0].mxu0
  %v2284 = vadd.f32 0.0, %v2283
  %v2285 = vpop.f32.mrb[0].mxu0
  %2286 = vmatprep.mubr.f32.mxu0 0.0
  %2287 = vmatmul.mubr.f32.gmra.mrb[0].mxu0 %v981
  %v2288 = vpop.f32.mrb[0].mxu0
  %v2289 = vadd.f32 0.0, %v2288
  %v2290 = vpop.f32.mrb[0].mxu0
  %2291 = vmatprep.mubr.f32.mxu0 0.0
  %2292 = vmatmul.mubr.f32.gmra.mrb[0].mxu0 %v984
  %v2293 = vpop.f32.mrb[0].mxu0
  %v2294 = vadd.f32 0.0, %v2293
  %v2295 = vpop.f32.mrb[0].mxu0
  %2296 = vmatprep.mubr.f32.mxu0 0.0
  %2297 = vmatmul.mubr.f32.gmra.mrb[0].mxu0 %v987
  %v2298 = vpop.f32.mrb[0].mxu0
  %v2299 = vadd.f32 0.0, %v2298
  %v2300 = vpop.f32.mrb[0].mxu0
  %2301 = vmatprep.mubr.f32.mxu0 0.0
  %2302 = vmatmul.mubr.f32.gmra.mrb[0].mxu0 %v990
  %v2303 = vpop.f32.mrb[0].mxu0
  %v2304 = vadd.f32 0.0, %v2303
  %v2305 = vpop.f32.mrb[0].mxu0
  %2306 = vmatprep.mubr.f32.mxu0 0.0
  %2307 = vmatmul.mubr.f32.gmra.mrb[0].mxu0 %v993
  %v2308 = vpop.f32.mrb[0].mxu0
  %v2309 = vadd.f32 0.0, %v2308
  %v2310 = vpop.f32.mrb[0].mxu0
  %2311 = vmatprep.mubr.f32.mxu0 0.0
  %2312 = vmatmul.mubr.f32.gmra.mrb[0].mxu0 %v996
  %v2313 = vpop.f32.mrb[0].mxu0
  %v2314 = vadd.f32 0.0, %v2313
  %v2315 = vpop.f32.mrb[0].mxu0
  %2316 = vmatprep.mubr.f32.mxu0 0.0
  %2317 = vmatmul.mubr.f32.gmra.mrb[0].mxu0 %v999
  %v2318 = vpop.f32.mrb[0].mxu0
  %v2319 = vadd.f32 0.0, %v2318
  %v2320 = vpop.f32.mrb[0].mxu0
  %2321 = vmatprep.mubr.f32.mxu0 0.0
  %2322 = vmatmul.mubr.f32.gmra.mrb[0].mxu0 %v1002
  %v2323 = vpop.f32.mrb[0].mxu0
  %v2324 = vadd.f32 0.0, %v2323
  %v2325 = vpop.f32.mrb[0].mxu0
  %2326 = vmatprep.mubr.f32.mxu0 0.0
  %2327 = vmatmul.mubr.f32.gmra.mrb[0].mxu0 %v1005
  %v2328 = vpop.f32.mrb[0].mxu0
  %v2329 = vadd.f32 0.0, %v2328
  %v2330 = vpop.f32.mrb[0].mxu0
  %2331 = vmatprep.mubr.f32.mxu0 0.0
  %2332 = vmatmul.mubr.f32.gmra.mrb[0].mxu0 %v1008
  %v2333 = vpop.f32.mrb[0].mxu0
  %v2334 = vadd.f32 0.0, %v2333
  %v2335 = vpop.f32.mrb[0].mxu0
  %2336 = vmatprep.mubr.f32.mxu0 0.0
  %2337 = vmatmul.mubr.f32.gmra.mrb[0].mxu0 %v1011
  %v2338 = vpop.f32.mrb[0].mxu0
  %v2339 = vadd.f32 0.0, %v2338
  %v2340 = vpop.f32.mrb[0].mxu0
  %2341 = vmatprep.mubr.f32.mxu0 0.0
  %2342 = vmatmul.mubr.f32.gmra.mrb[0].mxu0 %v1014
  %v2343 = vpop.f32.mrb[0].mxu0
  %v2344 = vadd.f32 0.0, %v2343
  %v2345 = vpop.f32.mrb[0].mxu0
  %2346 = vmatprep.mubr.f32.mxu0 0.0
  %2347 = vmatmul.mubr.f32.gmra.mrb[0].mxu0 %v1017
  %v2348 = vpop.f32.mrb[0].mxu0
  %v2349 = vadd.f32 0.0, %v2348
  %v2350 = vpop.f32.mrb[0].mxu0
  %2351 = vmatprep.mubr.f32.mxu0 0.0
  %2352 = vmatmul.mubr.f32.gmra.mrb[0].mxu0 %v1020
  %v2353 = vpop.f32.mrb[0].mxu0
  %v2354 = vadd.f32 0.0, %v2353
  %v2355 = vpop.f32.mrb[0].mxu0
  %2356 = vmatprep.mubr.f32.mxu0 0.0
  %2357 = vmatmul.mubr.f32.gmra.mrb[0].mxu0 %v1023
  %v2358 = vpop.f32.mrb[0].mxu0
  %v2359 = vadd.f32 0.0, %v2358
  %v2360 = vpop.f32.mrb[0].mxu0
  %2361 = vmatprep.mubr.f32.mxu0 0.0
  %2362 = vmatmul.mubr.f32.gmra.mrb[0].mxu0 %v1026
  %v2363 = vpop.f32.mrb[0].mxu0
  %v2364 = vadd.f32 0.0, %v2363
  %v2365 = vpop.f32.mrb[0].mxu0
  %2366 = vmatprep.mubr.f32.mxu0 0.0
  %2367 = vmatmul.mubr.f32.gmra.mrb[0].mxu0 %v1029
  %v2368 = vpop.f32.mrb[0].mxu0
  %v2369 = vadd.f32 0.0, %v2368
  %v2370 = vpop.f32.mrb[0].mxu0
  %2371 = vmatprep.mubr.f32.mxu0 0.0
  %2372 = vmatmul.mubr.f32.gmra.mrb[0].mxu0 %v1032
  %v2373 = vpop.f32.mrb[0].mxu0
  %v2374 = vadd.f32 0.0, %v2373
  %v2375 = vpop.f32.mrb[0].mxu0
  %2376 = vmatprep.mubr.f32.mxu0 0.0
  %2377 = vmatmul.mubr.f32.gmra.mrb[0].mxu0 %v1035
  %v2378 = vpop.f32.mrb[0].mxu0
  %v2379 = vadd.f32 0.0, %v2378
  %v2380 = vpop.f32.mrb[0].mxu0
  %2381 = vmatprep.mubr.f32.mxu0 0.0
  %2382 = vmatmul.mubr.f32.gmra.mrb[0].mxu0 %v1038
  %v2383 = vpop.f32.mrb[0].mxu0
  %v2384 = vadd.f32 0.0, %v2383
  %v2385 = vpop.f32.mrb[0].mxu0
  %2386 = vmatprep.mubr.f32.mxu0 0.0
  %2387 = vmatmul.mubr.f32.gmra.mrb[0].mxu0 %v1041
  %v2388 = vpop.f32.mrb[0].mxu0
  %v2389 = vadd.f32 0.0, %v2388
  %v2390 = vpop.f32.mrb[0].mxu0
  %2391 = vdwg.mxu0
  %vm2392 = vcmask 261120
  %v2393 = vsel %vm2392, %v1114, -inf
  %v2394 = vsel %vm2392, %v1274, -inf
  %v2395 = vmax.f32 %v2393, %v2394
  %v2396 = vsel %vm2392, %v1434, -inf
  %v2397 = vmax.f32 %v2395, %v2396
  %v2398 = vsel %vm2392, %v1594, -inf
  %v2399 = vmax.f32 %v2397, %v2398
  %v2400 = vsel %vm2392, %v1119, -inf
  %v2401 = vsel %vm2392, %v1279, -inf
  %v2402 = vmax.f32 %v2400, %v2401
  %v2403 = vsel %vm2392, %v1439, -inf
  %v2404 = vmax.f32 %v2402, %v2403
  %v2405 = vsel %vm2392, %v1599, -inf
  %v2406 = vmax.f32 %v2404, %v2405
  %v2407 = vsel %vm2392, %v1124, -inf
  %v2408 = vsel %vm2392, %v1284, -inf
  %v2409 = vmax.f32 %v2407, %v2408
  %v2410 = vsel %vm2392, %v1444, -inf
  %v2411 = vmax.f32 %v2409, %v2410
  %v2412 = vsel %vm2392, %v1604, -inf
  %v2413 = vmax.f32 %v2411, %v2412
  %v2414 = vsel %vm2392, %v1129, -inf
  %v2415 = vsel %vm2392, %v1289, -inf
  %v2416 = vmax.f32 %v2414, %v2415
  %v2417 = vsel %vm2392, %v1449, -inf
  %v2418 = vmax.f32 %v2416, %v2417
  %v2419 = vsel %vm2392, %v1609, -inf
  %v2420 = vmax.f32 %v2418, %v2419
  %v2421 = vsel %vm2392, %v1134, -inf
  %v2422 = vsel %vm2392, %v1294, -inf
  %v2423 = vmax.f32 %v2421, %v2422
  %v2424 = vsel %vm2392, %v1454, -inf
  %v2425 = vmax.f32 %v2423, %v2424
  %v2426 = vsel %vm2392, %v1614, -inf
  %v2427 = vmax.f32 %v2425, %v2426
  %v2428 = vsel %vm2392, %v1139, -inf
  %v2429 = vsel %vm2392, %v1299, -inf
  %v2430 = vmax.f32 %v2428, %v2429
  %v2431 = vsel %vm2392, %v1459, -inf
  %v2432 = vmax.f32 %v2430, %v2431
  %v2433 = vsel %vm2392, %v1619, -inf
  %v2434 = vmax.f32 %v2432, %v2433
  %v2435 = vsel %vm2392, %v1144, -inf
  %v2436 = vsel %vm2392, %v1304, -inf
  %v2437 = vmax.f32 %v2435, %v2436
  %v2438 = vsel %vm2392, %v1464, -inf
  %v2439 = vmax.f32 %v2437, %v2438
  %v2440 = vsel %vm2392, %v1624, -inf
  %v2441 = vmax.f32 %v2439, %v2440
  %v2442 = vsel %vm2392, %v1149, -inf
  %v2443 = vsel %vm2392, %v1309, -inf
  %v2444 = vmax.f32 %v2442, %v2443
  %v2445 = vsel %vm2392, %v1469, -inf
  %v2446 = vmax.f32 %v2444, %v2445
  %v2447 = vsel %vm2392, %v1629, -inf
  %v2448 = vmax.f32 %v2446, %v2447
  %v2449 = vsel %vm2392, %v1154, -inf
  %v2450 = vsel %vm2392, %v1314, -inf
  %v2451 = vmax.f32 %v2449, %v2450
  %v2452 = vsel %vm2392, %v1474, -inf
  %v2453 = vmax.f32 %v2451, %v2452
  %v2454 = vsel %vm2392, %v1634, -inf
  %v2455 = vmax.f32 %v2453, %v2454
  %v2456 = vsel %vm2392, %v1159, -inf
  %v2457 = vsel %vm2392, %v1319, -inf
  %v2458 = vmax.f32 %v2456, %v2457
  %v2459 = vsel %vm2392, %v1479, -inf
  %v2460 = vmax.f32 %v2458, %v2459
  %v2461 = vsel %vm2392, %v1639, -inf
  %v2462 = vmax.f32 %v2460, %v2461
  %v2463 = vsel %vm2392, %v1164, -inf
  %v2464 = vsel %vm2392, %v1324, -inf
  %v2465 = vmax.f32 %v2463, %v2464
  %v2466 = vsel %vm2392, %v1484, -inf
  %v2467 = vmax.f32 %v2465, %v2466
  %v2468 = vsel %vm2392, %v1644, -inf
  %v2469 = vmax.f32 %v2467, %v2468
  %v2470 = vsel %vm2392, %v1169, -inf
  %v2471 = vsel %vm2392, %v1329, -inf
  %v2472 = vmax.f32 %v2470, %v2471
  %v2473 = vsel %vm2392, %v1489, -inf
  %v2474 = vmax.f32 %v2472, %v2473
  %v2475 = vsel %vm2392, %v1649, -inf
  %v2476 = vmax.f32 %v2474, %v2475
  %v2477 = vsel %vm2392, %v1174, -inf
  %v2478 = vsel %vm2392, %v1334, -inf
  %v2479 = vmax.f32 %v2477, %v2478
  %v2480 = vsel %vm2392, %v1494, -inf
  %v2481 = vmax.f32 %v2479, %v2480
  %v2482 = vsel %vm2392, %v1654, -inf
  %v2483 = vmax.f32 %v2481, %v2482
  %v2484 = vsel %vm2392, %v1179, -inf
  %v2485 = vsel %vm2392, %v1339, -inf
  %v2486 = vmax.f32 %v2484, %v2485
  %v2487 = vsel %vm2392, %v1499, -inf
  %v2488 = vmax.f32 %v2486, %v2487
  %v2489 = vsel %vm2392, %v1659, -inf
  %v2490 = vmax.f32 %v2488, %v2489
  %v2491 = vsel %vm2392, %v1184, -inf
  %v2492 = vsel %vm2392, %v1344, -inf
  %v2493 = vmax.f32 %v2491, %v2492
  %v2494 = vsel %vm2392, %v1504, -inf
  %v2495 = vmax.f32 %v2493, %v2494
  %v2496 = vsel %vm2392, %v1664, -inf
  %v2497 = vmax.f32 %v2495, %v2496
  %v2498 = vsel %vm2392, %v1189, -inf
  %v2499 = vsel %vm2392, %v1349, -inf
  %v2500 = vmax.f32 %v2498, %v2499
  %v2501 = vsel %vm2392, %v1509, -inf
  %v2502 = vmax.f32 %v2500, %v2501
  %v2503 = vsel %vm2392, %v1669, -inf
  %v2504 = vmax.f32 %v2502, %v2503
  %v2505 = vsel %vm2392, %v1194, -inf
  %v2506 = vsel %vm2392, %v1354, -inf
  %v2507 = vmax.f32 %v2505, %v2506
  %v2508 = vsel %vm2392, %v1514, -inf
  %v2509 = vmax.f32 %v2507, %v2508
  %v2510 = vsel %vm2392, %v1674, -inf
  %v2511 = vmax.f32 %v2509, %v2510
  %v2512 = vsel %vm2392, %v1199, -inf
  %v2513 = vsel %vm2392, %v1359, -inf
  %v2514 = vmax.f32 %v2512, %v2513
  %v2515 = vsel %vm2392, %v1519, -inf
  %v2516 = vmax.f32 %v2514, %v2515
  %v2517 = vsel %vm2392, %v1679, -inf
  %v2518 = vmax.f32 %v2516, %v2517
  %v2519 = vsel %vm2392, %v1204, -inf
  %v2520 = vsel %vm2392, %v1364, -inf
  %v2521 = vmax.f32 %v2519, %v2520
  %v2522 = vsel %vm2392, %v1524, -inf
  %v2523 = vmax.f32 %v2521, %v2522
  %v2524 = vsel %vm2392, %v1684, -inf
  %v2525 = vmax.f32 %v2523, %v2524
  %v2526 = vsel %vm2392, %v1209, -inf
  %v2527 = vsel %vm2392, %v1369, -inf
  %v2528 = vmax.f32 %v2526, %v2527
  %v2529 = vsel %vm2392, %v1529, -inf
  %v2530 = vmax.f32 %v2528, %v2529
  %v2531 = vsel %vm2392, %v1689, -inf
  %v2532 = vmax.f32 %v2530, %v2531
  %v2533 = vsel %vm2392, %v1214, -inf
  %v2534 = vsel %vm2392, %v1374, -inf
  %v2535 = vmax.f32 %v2533, %v2534
  %v2536 = vsel %vm2392, %v1534, -inf
  %v2537 = vmax.f32 %v2535, %v2536
  %v2538 = vsel %vm2392, %v1694, -inf
  %v2539 = vmax.f32 %v2537, %v2538
  %v2540 = vsel %vm2392, %v1219, -inf
  %v2541 = vsel %vm2392, %v1379, -inf
  %v2542 = vmax.f32 %v2540, %v2541
  %v2543 = vsel %vm2392, %v1539, -inf
  %v2544 = vmax.f32 %v2542, %v2543
  %v2545 = vsel %vm2392, %v1699, -inf
  %v2546 = vmax.f32 %v2544, %v2545
  %v2547 = vsel %vm2392, %v1224, -inf
  %v2548 = vsel %vm2392, %v1384, -inf
  %v2549 = vmax.f32 %v2547, %v2548
  %v2550 = vsel %vm2392, %v1544, -inf
  %v2551 = vmax.f32 %v2549, %v2550
  %v2552 = vsel %vm2392, %v1704, -inf
  %v2553 = vmax.f32 %v2551, %v2552
  %v2554 = vsel %vm2392, %v1229, -inf
  %v2555 = vsel %vm2392, %v1389, -inf
  %v2556 = vmax.f32 %v2554, %v2555
  %v2557 = vsel %vm2392, %v1549, -inf
  %v2558 = vmax.f32 %v2556, %v2557
  %v2559 = vsel %vm2392, %v1709, -inf
  %v2560 = vmax.f32 %v2558, %v2559
  %v2561 = vsel %vm2392, %v1234, -inf
  %v2562 = vsel %vm2392, %v1394, -inf
  %v2563 = vmax.f32 %v2561, %v2562
  %v2564 = vsel %vm2392, %v1554, -inf
  %v2565 = vmax.f32 %v2563, %v2564
  %v2566 = vsel %vm2392, %v1714, -inf
  %v2567 = vmax.f32 %v2565, %v2566
  %v2568 = vsel %vm2392, %v1239, -inf
  %v2569 = vsel %vm2392, %v1399, -inf
  %v2570 = vmax.f32 %v2568, %v2569
  %v2571 = vsel %vm2392, %v1559, -inf
  %v2572 = vmax.f32 %v2570, %v2571
  %v2573 = vsel %vm2392, %v1719, -inf
  %v2574 = vmax.f32 %v2572, %v2573
  %v2575 = vsel %vm2392, %v1244, -inf
  %v2576 = vsel %vm2392, %v1404, -inf
  %v2577 = vmax.f32 %v2575, %v2576
  %v2578 = vsel %vm2392, %v1564, -inf
  %v2579 = vmax.f32 %v2577, %v2578
  %v2580 = vsel %vm2392, %v1724, -inf
  %v2581 = vmax.f32 %v2579, %v2580
  %v2582 = vsel %vm2392, %v1249, -inf
  %v2583 = vsel %vm2392, %v1409, -inf
  %v2584 = vmax.f32 %v2582, %v2583
  %v2585 = vsel %vm2392, %v1569, -inf
  %v2586 = vmax.f32 %v2584, %v2585
  %v2587 = vsel %vm2392, %v1729, -inf
  %v2588 = vmax.f32 %v2586, %v2587
  %v2589 = vsel %vm2392, %v1254, -inf
  %v2590 = vsel %vm2392, %v1414, -inf
  %v2591 = vmax.f32 %v2589, %v2590
  %v2592 = vsel %vm2392, %v1574, -inf
  %v2593 = vmax.f32 %v2591, %v2592
  %v2594 = vsel %vm2392, %v1734, -inf
  %v2595 = vmax.f32 %v2593, %v2594
  %v2596 = vsel %vm2392, %v1259, -inf
  %v2597 = vsel %vm2392, %v1419, -inf
  %v2598 = vmax.f32 %v2596, %v2597
  %v2599 = vsel %vm2392, %v1579, -inf
  %v2600 = vmax.f32 %v2598, %v2599
  %v2601 = vsel %vm2392, %v1739, -inf
  %v2602 = vmax.f32 %v2600, %v2601
  %v2603 = vsel %vm2392, %v1264, -inf
  %v2604 = vsel %vm2392, %v1424, -inf
  %v2605 = vmax.f32 %v2603, %v2604
  %v2606 = vsel %vm2392, %v1584, -inf
  %v2607 = vmax.f32 %v2605, %v2606
  %v2608 = vsel %vm2392, %v1744, -inf
  %v2609 = vmax.f32 %v2607, %v2608
  %v2610 = vsel %vm2392, %v1269, -inf
  %v2611 = vsel %vm2392, %v1429, -inf
  %v2612 = vmax.f32 %v2610, %v2611
  %v2613 = vsel %vm2392, %v1589, -inf
  %v2614 = vmax.f32 %v2612, %v2613
  %v2615 = vsel %vm2392, %v1749, -inf
  %v2616 = vmax.f32 %v2614, %v2615
  %v2617 = vsel %vm2392, %v1754, -inf
  %v2618 = vsel %vm2392, %v1914, -inf
  %v2619 = vmax.f32 %v2617, %v2618
  %v2620 = vsel %vm2392, %v2074, -inf
  %v2621 = vmax.f32 %v2619, %v2620
  %v2622 = vsel %vm2392, %v2234, -inf
  %v2623 = vmax.f32 %v2621, %v2622
  %v2624 = vsel %vm2392, %v1759, -inf
  %v2625 = vsel %vm2392, %v1919, -inf
  %v2626 = vmax.f32 %v2624, %v2625
  %v2627 = vsel %vm2392, %v2079, -inf
  %v2628 = vmax.f32 %v2626, %v2627
  %v2629 = vsel %vm2392, %v2239, -inf
  %v2630 = vmax.f32 %v2628, %v2629
  %v2631 = vsel %vm2392, %v1764, -inf
  %v2632 = vsel %vm2392, %v1924, -inf
  %v2633 = vmax.f32 %v2631, %v2632
  %v2634 = vsel %vm2392, %v2084, -inf
  %v2635 = vmax.f32 %v2633, %v2634
  %v2636 = vsel %vm2392, %v2244, -inf
  %v2637 = vmax.f32 %v2635, %v2636
  %v2638 = vsel %vm2392, %v1769, -inf
  %v2639 = vsel %vm2392, %v1929, -inf
  %v2640 = vmax.f32 %v2638, %v2639
  %v2641 = vsel %vm2392, %v2089, -inf
  %v2642 = vmax.f32 %v2640, %v2641
  %v2643 = vsel %vm2392, %v2249, -inf
  %v2644 = vmax.f32 %v2642, %v2643
  %v2645 = vsel %vm2392, %v1774, -inf
  %v2646 = vsel %vm2392, %v1934, -inf
  %v2647 = vmax.f32 %v2645, %v2646
  %v2648 = vsel %vm2392, %v2094, -inf
  %v2649 = vmax.f32 %v2647, %v2648
  %v2650 = vsel %vm2392, %v2254, -inf
  %v2651 = vmax.f32 %v2649, %v2650
  %v2652 = vsel %vm2392, %v1779, -inf
  %v2653 = vsel %vm2392, %v1939, -inf
  %v2654 = vmax.f32 %v2652, %v2653
  %v2655 = vsel %vm2392, %v2099, -inf
  %v2656 = vmax.f32 %v2654, %v2655
  %v2657 = vsel %vm2392, %v2259, -inf
  %v2658 = vmax.f32 %v2656, %v2657
  %v2659 = vsel %vm2392, %v1784, -inf
  %v2660 = vsel %vm2392, %v1944, -inf
  %v2661 = vmax.f32 %v2659, %v2660
  %v2662 = vsel %vm2392, %v2104, -inf
  %v2663 = vmax.f32 %v2661, %v2662
  %v2664 = vsel %vm2392, %v2264, -inf
  %v2665 = vmax.f32 %v2663, %v2664
  %v2666 = vsel %vm2392, %v1789, -inf
  %v2667 = vsel %vm2392, %v1949, -inf
  %v2668 = vmax.f32 %v2666, %v2667
  %v2669 = vsel %vm2392, %v2109, -inf
  %v2670 = vmax.f32 %v2668, %v2669
  %v2671 = vsel %vm2392, %v2269, -inf
  %v2672 = vmax.f32 %v2670, %v2671
  %v2673 = vsel %vm2392, %v1794, -inf
  %v2674 = vsel %vm2392, %v1954, -inf
  %v2675 = vmax.f32 %v2673, %v2674
  %v2676 = vsel %vm2392, %v2114, -inf
  %v2677 = vmax.f32 %v2675, %v2676
  %v2678 = vsel %vm2392, %v2274, -inf
  %v2679 = vmax.f32 %v2677, %v2678
  %v2680 = vsel %vm2392, %v1799, -inf
  %v2681 = vsel %vm2392, %v1959, -inf
  %v2682 = vmax.f32 %v2680, %v2681
  %v2683 = vsel %vm2392, %v2119, -inf
  %v2684 = vmax.f32 %v2682, %v2683
  %v2685 = vsel %vm2392, %v2279, -inf
  %v2686 = vmax.f32 %v2684, %v2685
  %v2687 = vsel %vm2392, %v1804, -inf
  %v2688 = vsel %vm2392, %v1964, -inf
  %v2689 = vmax.f32 %v2687, %v2688
  %v2690 = vsel %vm2392, %v2124, -inf
  %v2691 = vmax.f32 %v2689, %v2690
  %v2692 = vsel %vm2392, %v2284, -inf
  %v2693 = vmax.f32 %v2691, %v2692
  %v2694 = vsel %vm2392, %v1809, -inf
  %v2695 = vsel %vm2392, %v1969, -inf
  %v2696 = vmax.f32 %v2694, %v2695
  %v2697 = vsel %vm2392, %v2129, -inf
  %v2698 = vmax.f32 %v2696, %v2697
  %v2699 = vsel %vm2392, %v2289, -inf
  %v2700 = vmax.f32 %v2698, %v2699
  %v2701 = vsel %vm2392, %v1814, -inf
  %v2702 = vsel %vm2392, %v1974, -inf
  %v2703 = vmax.f32 %v2701, %v2702
  %v2704 = vsel %vm2392, %v2134, -inf
  %v2705 = vmax.f32 %v2703, %v2704
  %v2706 = vsel %vm2392, %v2294, -inf
  %v2707 = vmax.f32 %v2705, %v2706
  %v2708 = vsel %vm2392, %v1819, -inf
  %v2709 = vsel %vm2392, %v1979, -inf
  %v2710 = vmax.f32 %v2708, %v2709
  %v2711 = vsel %vm2392, %v2139, -inf
  %v2712 = vmax.f32 %v2710, %v2711
  %v2713 = vsel %vm2392, %v2299, -inf
  %v2714 = vmax.f32 %v2712, %v2713
  %v2715 = vsel %vm2392, %v1824, -inf
  %v2716 = vsel %vm2392, %v1984, -inf
  %v2717 = vmax.f32 %v2715, %v2716
  %v2718 = vsel %vm2392, %v2144, -inf
  %v2719 = vmax.f32 %v2717, %v2718
  %v2720 = vsel %vm2392, %v2304, -inf
  %v2721 = vmax.f32 %v2719, %v2720
  %v2722 = vsel %vm2392, %v1829, -inf
  %v2723 = vsel %vm2392, %v1989, -inf
  %v2724 = vmax.f32 %v2722, %v2723
  %v2725 = vsel %vm2392, %v2149, -inf
  %v2726 = vmax.f32 %v2724, %v2725
  %v2727 = vsel %vm2392, %v2309, -inf
  %v2728 = vmax.f32 %v2726, %v2727
  %v2729 = vsel %vm2392, %v1834, -inf
  %v2730 = vsel %vm2392, %v1994, -inf
  %v2731 = vmax.f32 %v2729, %v2730
  %v2732 = vsel %vm2392, %v2154, -inf
  %v2733 = vmax.f32 %v2731, %v2732
  %v2734 = vsel %vm2392, %v2314, -inf
  %v2735 = vmax.f32 %v2733, %v2734
  %v2736 = vsel %vm2392, %v1839, -inf
  %v2737 = vsel %vm2392, %v1999, -inf
  %v2738 = vmax.f32 %v2736, %v2737
  %v2739 = vsel %vm2392, %v2159, -inf
  %v2740 = vmax.f32 %v2738, %v2739
  %v2741 = vsel %vm2392, %v2319, -inf
  %v2742 = vmax.f32 %v2740, %v2741
  %v2743 = vsel %vm2392, %v1844, -inf
  %v2744 = vsel %vm2392, %v2004, -inf
  %v2745 = vmax.f32 %v2743, %v2744
  %v2746 = vsel %vm2392, %v2164, -inf
  %v2747 = vmax.f32 %v2745, %v2746
  %v2748 = vsel %vm2392, %v2324, -inf
  %v2749 = vmax.f32 %v2747, %v2748
  %v2750 = vsel %vm2392, %v1849, -inf
  %v2751 = vsel %vm2392, %v2009, -inf
  %v2752 = vmax.f32 %v2750, %v2751
  %v2753 = vsel %vm2392, %v2169, -inf
  %v2754 = vmax.f32 %v2752, %v2753
  %v2755 = vsel %vm2392, %v2329, -inf
  %v2756 = vmax.f32 %v2754, %v2755
  %v2757 = vsel %vm2392, %v1854, -inf
  %v2758 = vsel %vm2392, %v2014, -inf
  %v2759 = vmax.f32 %v2757, %v2758
  %v2760 = vsel %vm2392, %v2174, -inf
  %v2761 = vmax.f32 %v2759, %v2760
  %v2762 = vsel %vm2392, %v2334, -inf
  %v2763 = vmax.f32 %v2761, %v2762
  %v2764 = vsel %vm2392, %v1859, -inf
  %v2765 = vsel %vm2392, %v2019, -inf
  %v2766 = vmax.f32 %v2764, %v2765
  %v2767 = vsel %vm2392, %v2179, -inf
  %v2768 = vmax.f32 %v2766, %v2767
  %v2769 = vsel %vm2392, %v2339, -inf
  %v2770 = vmax.f32 %v2768, %v2769
  %v2771 = vsel %vm2392, %v1864, -inf
  %v2772 = vsel %vm2392, %v2024, -inf
  %v2773 = vmax.f32 %v2771, %v2772
  %v2774 = vsel %vm2392, %v2184, -inf
  %v2775 = vmax.f32 %v2773, %v2774
  %v2776 = vsel %vm2392, %v2344, -inf
  %v2777 = vmax.f32 %v2775, %v2776
  %v2778 = vsel %vm2392, %v1869, -inf
  %v2779 = vsel %vm2392, %v2029, -inf
  %v2780 = vmax.f32 %v2778, %v2779
  %v2781 = vsel %vm2392, %v2189, -inf
  %v2782 = vmax.f32 %v2780, %v2781
  %v2783 = vsel %vm2392, %v2349, -inf
  %v2784 = vmax.f32 %v2782, %v2783
  %v2785 = vsel %vm2392, %v1874, -inf
  %v2786 = vsel %vm2392, %v2034, -inf
  %v2787 = vmax.f32 %v2785, %v2786
  %v2788 = vsel %vm2392, %v2194, -inf
  %v2789 = vmax.f32 %v2787, %v2788
  %v2790 = vsel %vm2392, %v2354, -inf
  %v2791 = vmax.f32 %v2789, %v2790
  %v2792 = vsel %vm2392, %v1879, -inf
  %v2793 = vsel %vm2392, %v2039, -inf
  %v2794 = vmax.f32 %v2792, %v2793
  %v2795 = vsel %vm2392, %v2199, -inf
  %v2796 = vmax.f32 %v2794, %v2795
  %v2797 = vsel %vm2392, %v2359, -inf
  %v2798 = vmax.f32 %v2796, %v2797
  %v2799 = vsel %vm2392, %v1884, -inf
  %v2800 = vsel %vm2392, %v2044, -inf
  %v2801 = vmax.f32 %v2799, %v2800
  %v2802 = vsel %vm2392, %v2204, -inf
  %v2803 = vmax.f32 %v2801, %v2802
  %v2804 = vsel %vm2392, %v2364, -inf
  %v2805 = vmax.f32 %v2803, %v2804
  %v2806 = vsel %vm2392, %v1889, -inf
  %v2807 = vsel %vm2392, %v2049, -inf
  %v2808 = vmax.f32 %v2806, %v2807
  %v2809 = vsel %vm2392, %v2209, -inf
  %v2810 = vmax.f32 %v2808, %v2809
  %v2811 = vsel %vm2392, %v2369, -inf
  %v2812 = vmax.f32 %v2810, %v2811
  %v2813 = vsel %vm2392, %v1894, -inf
  %v2814 = vsel %vm2392, %v2054, -inf
  %v2815 = vmax.f32 %v2813, %v2814
  %v2816 = vsel %vm2392, %v2214, -inf
  %v2817 = vmax.f32 %v2815, %v2816
  %v2818 = vsel %vm2392, %v2374, -inf
  %v2819 = vmax.f32 %v2817, %v2818
  %v2820 = vsel %vm2392, %v1899, -inf
  %v2821 = vsel %vm2392, %v2059, -inf
  %v2822 = vmax.f32 %v2820, %v2821
  %v2823 = vsel %vm2392, %v2219, -inf
  %v2824 = vmax.f32 %v2822, %v2823
  %v2825 = vsel %vm2392, %v2379, -inf
  %v2826 = vmax.f32 %v2824, %v2825
  %v2827 = vsel %vm2392, %v1904, -inf
  %v2828 = vsel %vm2392, %v2064, -inf
  %v2829 = vmax.f32 %v2827, %v2828
  %v2830 = vsel %vm2392, %v2224, -inf
  %v2831 = vmax.f32 %v2829, %v2830
  %v2832 = vsel %vm2392, %v2384, -inf
  %v2833 = vmax.f32 %v2831, %v2832
  %v2834 = vsel %vm2392, %v1909, -inf
  %v2835 = vsel %vm2392, %v2069, -inf
  %v2836 = vmax.f32 %v2834, %v2835
  %v2837 = vsel %vm2392, %v2229, -inf
  %v2838 = vmax.f32 %v2836, %v2837
  %v2839 = vsel %vm2392, %v2389, -inf
  %v2840 = vmax.f32 %v2838, %v2839
  %v2841 = vld [vmem:[%s2] sm:$0x1]
  %v2843 = vlaneseq
  %v2844 = vshrl.u32 %v2843, 7
  %v2845 = vsub.s32 0, %v2844
  %v2846 = vrot.slane %v2841, %v2845
  %v2848 = vadd.f32 %v2399, %v2846
  %v2849 = vadd.f32 %v2406, %v2846
  %v2850 = vadd.f32 %v2413, %v2846
  %v2851 = vadd.f32 %v2420, %v2846
  %v2852 = vadd.f32 %v2427, %v2846
  %v2853 = vadd.f32 %v2434, %v2846
  %v2854 = vadd.f32 %v2441, %v2846
  %v2855 = vadd.f32 %v2448, %v2846
  %v2856 = vadd.f32 %v2455, %v2846
  %v2857 = vadd.f32 %v2462, %v2846
  %v2858 = vadd.f32 %v2469, %v2846
  %v2859 = vadd.f32 %v2476, %v2846
  %v2860 = vadd.f32 %v2483, %v2846
  %v2861 = vadd.f32 %v2490, %v2846
  %v2862 = vadd.f32 %v2497, %v2846
  %v2863 = vadd.f32 %v2504, %v2846
  %v2864 = vadd.f32 %v2511, %v2846
  %v2865 = vadd.f32 %v2518, %v2846
  %v2866 = vadd.f32 %v2525, %v2846
  %v2867 = vadd.f32 %v2532, %v2846
  %v2868 = vadd.f32 %v2539, %v2846
  %v2869 = vadd.f32 %v2546, %v2846
  %v2870 = vadd.f32 %v2553, %v2846
  %v2871 = vadd.f32 %v2560, %v2846
  %v2872 = vadd.f32 %v2567, %v2846
  %v2873 = vadd.f32 %v2574, %v2846
  %v2874 = vadd.f32 %v2581, %v2846
  %v2875 = vadd.f32 %v2588, %v2846
  %v2876 = vadd.f32 %v2595, %v2846
  %v2877 = vadd.f32 %v2602, %v2846
  %v2878 = vadd.f32 %v2609, %v2846
  %v2879 = vadd.f32 %v2616, %v2846
  %v2880 = vadd.f32 %v2623, %v2846
  %v2881 = vadd.f32 %v2630, %v2846
  %v2882 = vadd.f32 %v2637, %v2846
  %v2883 = vadd.f32 %v2644, %v2846
  %v2884 = vadd.f32 %v2651, %v2846
  %v2885 = vadd.f32 %v2658, %v2846
  %v2886 = vadd.f32 %v2665, %v2846
  %v2887 = vadd.f32 %v2672, %v2846
  %v2888 = vadd.f32 %v2679, %v2846
  %v2889 = vadd.f32 %v2686, %v2846
  %v2890 = vadd.f32 %v2693, %v2846
  %v2891 = vadd.f32 %v2700, %v2846
  %v2892 = vadd.f32 %v2707, %v2846
  %v2893 = vadd.f32 %v2714, %v2846
  %v2894 = vadd.f32 %v2721, %v2846
  %v2895 = vadd.f32 %v2728, %v2846
  %v2896 = vadd.f32 %v2735, %v2846
  %v2897 = vadd.f32 %v2742, %v2846
  %v2898 = vadd.f32 %v2749, %v2846
  %v2899 = vadd.f32 %v2756, %v2846
  %v2900 = vadd.f32 %v2763, %v2846
  %v2901 = vadd.f32 %v2770, %v2846
  %v2902 = vadd.f32 %v2777, %v2846
  %v2903 = vadd.f32 %v2784, %v2846
  %v2904 = vadd.f32 %v2791, %v2846
  %v2905 = vadd.f32 %v2798, %v2846
  %v2906 = vadd.f32 %v2805, %v2846
  %v2907 = vadd.f32 %v2812, %v2846
  %v2908 = vadd.f32 %v2819, %v2846
  %v2909 = vadd.f32 %v2826, %v2846
  %v2910 = vadd.f32 %v2833, %v2846
  %v2911 = vadd.f32 %v2840, %v2846
  %v2912 = vmax.f32 %v2848, 0.0
  %v2913 = vmax.f32 %v2849, 0.0
  %v2914 = vmax.f32 %v2850, 0.0
  %v2915 = vmax.f32 %v2851, 0.0
  %v2916 = vmax.f32 %v2852, 0.0
  %v2917 = vmax.f32 %v2853, 0.0
  %v2918 = vmax.f32 %v2854, 0.0
  %v2919 = vmax.f32 %v2855, 0.0
  %v2920 = vmax.f32 %v2856, 0.0
  %v2921 = vmax.f32 %v2857, 0.0
  %v2922 = vmax.f32 %v2858, 0.0
  %v2923 = vmax.f32 %v2859, 0.0
  %v2924 = vmax.f32 %v2860, 0.0
  %v2925 = vmax.f32 %v2861, 0.0
  %v2926 = vmax.f32 %v2862, 0.0
  %v2927 = vmax.f32 %v2863, 0.0
  %v2928 = vmax.f32 %v2864, 0.0
  %v2929 = vmax.f32 %v2865, 0.0
  %v2930 = vmax.f32 %v2866, 0.0
  %v2931 = vmax.f32 %v2867, 0.0
  %v2932 = vmax.f32 %v2868, 0.0
  %v2933 = vmax.f32 %v2869, 0.0
  %v2934 = vmax.f32 %v2870, 0.0
  %v2935 = vmax.f32 %v2871, 0.0
  %v2936 = vmax.f32 %v2872, 0.0
  %v2937 = vmax.f32 %v2873, 0.0
  %v2938 = vmax.f32 %v2874, 0.0
  %v2939 = vmax.f32 %v2875, 0.0
  %v2940 = vmax.f32 %v2876, 0.0
  %v2941 = vmax.f32 %v2877, 0.0
  %v2942 = vmax.f32 %v2878, 0.0
  %v2943 = vmax.f32 %v2879, 0.0
  %v2944 = vmax.f32 %v2880, 0.0
  %v2945 = vmax.f32 %v2881, 0.0
  %v2946 = vmax.f32 %v2882, 0.0
  %v2947 = vmax.f32 %v2883, 0.0
  %v2948 = vmax.f32 %v2884, 0.0
  %v2949 = vmax.f32 %v2885, 0.0
  %v2950 = vmax.f32 %v2886, 0.0
  %v2951 = vmax.f32 %v2887, 0.0
  %v2952 = vmax.f32 %v2888, 0.0
  %v2953 = vmax.f32 %v2889, 0.0
  %v2954 = vmax.f32 %v2890, 0.0
  %v2955 = vmax.f32 %v2891, 0.0
  %v2956 = vmax.f32 %v2892, 0.0
  %v2957 = vmax.f32 %v2893, 0.0
  %v2958 = vmax.f32 %v2894, 0.0
  %v2959 = vmax.f32 %v2895, 0.0
  %v2960 = vmax.f32 %v2896, 0.0
  %v2961 = vmax.f32 %v2897, 0.0
  %v2962 = vmax.f32 %v2898, 0.0
  %v2963 = vmax.f32 %v2899, 0.0
  %v2964 = vmax.f32 %v2900, 0.0
  %v2965 = vmax.f32 %v2901, 0.0
  %v2966 = vmax.f32 %v2902, 0.0
  %v2967 = vmax.f32 %v2903, 0.0
  %v2968 = vmax.f32 %v2904, 0.0
  %v2969 = vmax.f32 %v2905, 0.0
  %v2970 = vmax.f32 %v2906, 0.0
  %v2971 = vmax.f32 %v2907, 0.0
  %v2972 = vmax.f32 %v2908, 0.0
  %v2973 = vmax.f32 %v2909, 0.0
  %v2974 = vmax.f32 %v2910, 0.0
  %v2975 = vmax.f32 %v2911, 0.0
  %2976 = vst.msk [vmem:[%s3] sm:$0xff] %vm2392, %v2912
  %2977 = vst.msk [vmem:[%s3 + $0x8] sm:$0xff] %vm2392, %v2913
  %2978 = vst.msk [vmem:[%s3 + $0x10] sm:$0xff] %vm2392, %v2914
  %2979 = vst.msk [vmem:[%s3 + $0x18] sm:$0xff] %vm2392, %v2915
  %2980 = vst.msk [vmem:[%s3 + $0x20] sm:$0xff] %vm2392, %v2916
  %2981 = vst.msk [vmem:[%s3 + $0x28] sm:$0xff] %vm2392, %v2917
  %2982 = vst.msk [vmem:[%s3 + $0x30] sm:$0xff] %vm2392, %v2918
  %2983 = vst.msk [vmem:[%s3 + $0x38] sm:$0xff] %vm2392, %v2919
  %2984 = vst.msk [vmem:[%s3 + $0x40] sm:$0xff] %vm2392, %v2920
  %2985 = vst.msk [vmem:[%s3 + $0x48] sm:$0xff] %vm2392, %v2921
  %2986 = vst.msk [vmem:[%s3 + $0x50] sm:$0xff] %vm2392, %v2922
  %2987 = vst.msk [vmem:[%s3 + $0x58] sm:$0xff] %vm2392, %v2923
  %2988 = vst.msk [vmem:[%s3 + $0x60] sm:$0xff] %vm2392, %v2924
  %2989 = vst.msk [vmem:[%s3 + $0x68] sm:$0xff] %vm2392, %v2925
  %2990 = vst.msk [vmem:[%s3 + $0x70] sm:$0xff] %vm2392, %v2926
  %2991 = vst.msk [vmem:[%s3 + $0x78] sm:$0xff] %vm2392, %v2927
  %2992 = vst.msk [vmem:[%s3 + $0x80] sm:$0xff] %vm2392, %v2928
  %2993 = vst.msk [vmem:[%s3 + $0x88] sm:$0xff] %vm2392, %v2929
  %2994 = vst.msk [vmem:[%s3 + $0x90] sm:$0xff] %vm2392, %v2930
  %2995 = vst.msk [vmem:[%s3 + $0x98] sm:$0xff] %vm2392, %v2931
  %2996 = vst.msk [vmem:[%s3 + $0xa0] sm:$0xff] %vm2392, %v2932
  %2997 = vst.msk [vmem:[%s3 + $0xa8] sm:$0xff] %vm2392, %v2933
  %2998 = vst.msk [vmem:[%s3 + $0xb0] sm:$0xff] %vm2392, %v2934
  %2999 = vst.msk [vmem:[%s3 + $0xb8] sm:$0xff] %vm2392, %v2935
  %3000 = vst.msk [vmem:[%s3 + $0xc0] sm:$0xff] %vm2392, %v2936
  %3001 = vst.msk [vmem:[%s3 + $0xc8] sm:$0xff] %vm2392, %v2937
  %3002 = vst.msk [vmem:[%s3 + $0xd0] sm:$0xff] %vm2392, %v2938
  %3003 = vst.msk [vmem:[%s3 + $0xd8] sm:$0xff] %vm2392, %v2939
  %3004 = vst.msk [vmem:[%s3 + $0xe0] sm:$0xff] %vm2392, %v2940
  %3005 = vst.msk [vmem:[%s3 + $0xe8] sm:$0xff] %vm2392, %v2941
  %3006 = vst.msk [vmem:[%s3 + $0xf0] sm:$0xff] %vm2392, %v2942
  %3007 = vst.msk [vmem:[%s3 + $0xf8] sm:$0xff] %vm2392, %v2943
  %3008 = vst.msk [vmem:[%s3 + $0x100] sm:$0xff] %vm2392, %v2944
  %3009 = vst.msk [vmem:[%s3 + $0x108] sm:$0xff] %vm2392, %v2945
  %3010 = vst.msk [vmem:[%s3 + $0x110] sm:$0xff] %vm2392, %v2946
  %3011 = vst.msk [vmem:[%s3 + $0x118] sm:$0xff] %vm2392, %v2947
  %3012 = vst.msk [vmem:[%s3 + $0x120] sm:$0xff] %vm2392, %v2948
  %3013 = vst.msk [vmem:[%s3 + $0x128] sm:$0xff] %vm2392, %v2949
  %3014 = vst.msk [vmem:[%s3 + $0x130] sm:$0xff] %vm2392, %v2950
  %3015 = vst.msk [vmem:[%s3 + $0x138] sm:$0xff] %vm2392, %v2951
  %3016 = vst.msk [vmem:[%s3 + $0x140] sm:$0xff] %vm2392, %v2952
  %3017 = vst.msk [vmem:[%s3 + $0x148] sm:$0xff] %vm2392, %v2953
  %3018 = vst.msk [vmem:[%s3 + $0x150] sm:$0xff] %vm2392, %v2954
  %3019 = vst.msk [vmem:[%s3 + $0x158] sm:$0xff] %vm2392, %v2955
  %3020 = vst.msk [vmem:[%s3 + $0x160] sm:$0xff] %vm2392, %v2956
  %3021 = vst.msk [vmem:[%s3 + $0x168] sm:$0xff] %vm2392, %v2957
  %3022 = vst.msk [vmem:[%s3 + $0x170] sm:$0xff] %vm2392, %v2958
  %3023 = vst.msk [vmem:[%s3 + $0x178] sm:$0xff] %vm2392, %v2959
  %3024 = vst.msk [vmem:[%s3 + $0x180] sm:$0xff] %vm2392, %v2960
  %3025 = vst.msk [vmem:[%s3 + $0x188] sm:$0xff] %vm2392, %v2961
  %3026 = vst.msk [vmem:[%s3 + $0x190] sm:$0xff] %vm2392, %v2962
  %3027 = vst.msk [vmem:[%s3 + $0x198] sm:$0xff] %vm2392, %v2963
  %3028 = vst.msk [vmem:[%s3 + $0x1a0] sm:$0xff] %vm2392, %v2964
  %3029 = vst.msk [vmem:[%s3 + $0x1a8] sm:$0xff] %vm2392, %v2965
  %3030 = vst.msk [vmem:[%s3 + $0x1b0] sm:$0xff] %vm2392, %v2966
  %3031 = vst.msk [vmem:[%s3 + $0x1b8] sm:$0xff] %vm2392, %v2967
  %3032 = vst.msk [vmem:[%s3 + $0x1c0] sm:$0xff] %vm2392, %v2968
  %3033 = vst.msk [vmem:[%s3 + $0x1c8] sm:$0xff] %vm2392, %v2969
  %3034 = vst.msk [vmem:[%s3 + $0x1d0] sm:$0xff] %vm2392, %v2970
  %3035 = vst.msk [vmem:[%s3 + $0x1d8] sm:$0xff] %vm2392, %v2971
  %3036 = vst.msk [vmem:[%s3 + $0x1e0] sm:$0xff] %vm2392, %v2972
  %3037 = vst.msk [vmem:[%s3 + $0x1e8] sm:$0xff] %vm2392, %v2973
  %3038 = vst.msk [vmem:[%s3 + $0x1f0] sm:$0xff] %vm2392, %v2974
  %3039 = vst.msk [vmem:[%s3 + $0x1f8] sm:$0xff] %vm2392, %v2975
  // Predicated region
  $region14: #{model_part0_2node.2} parent=0 // pred_check
    _
  $region15: #{model_part0_2node.2} parent=0 // pred_check_branch
    %3041 = sbr.rel (0) target = $region17
  $region16: #{model_part0_2node.2} parent=0 // pred_region
    _
  $region17: #{model_part0_2node.2} parent=0 // pred_fallthru
    _
  // Predicated region
  $region18: #{model_part0_2node.2} parent=0 // pred_check
    _
  $region19: #{model_part0_2node.2} parent=0 // pred_check_branch
    %3043 = sbr.rel (0) target = $region21
  $region20: #{model_part0_2node.2} parent=0 // pred_region
    _
  $region21: #{model_part0_2node.2} parent=0 // pred_fallthru
    _

// kernel: model_part0_2node.3
$region0: #{model_part0_2node.3}
  #allocation0 [shape = 'u32[]', space=smem, size = 0x4, offset = 0x4, fixed_abs, tag = 'smem constant byte address 0x4 - core index']
  #allocation1 [shape = 'u32[144,128]{1,0:T(1,128)}', space=vmem, size = 0x12000, scoped, tag = 'internal scratch']
  %s0 = inlined_call_operand.vmem [shape: f32[2,4,64,288], index: 0, kind: input, shape index: {}]
  %s1 = inlined_call_operand.vmem [shape: f32[288,64], index: 1, kind: input, shape index: {}]
  %s2 = inlined_call_operand.vmem [shape: f32[1,1,64], index: 2, kind: input, shape index: {}]
  %s3 = inlined_call_operand.vmem [shape: f32[2,64,64], index: 3, kind: output, shape index: {}]
  %s4 = sld [smem:[#allocation0]]
  $region22: #{model_part0_2node.3} parent=0
    _
  %s6 = ssub.s32 1, %s4
  %s7 = scalar_select 0, %s6, %s4
  // Predicated region
  $region2: #{model_part0_2node.3} parent=0 // pred_check
    _
  $region3: #{model_part0_2node.3} parent=0 // pred_check_branch
    %9 = sbr.rel (0) target = $region5
  $region4: #{model_part0_2node.3} parent=0 // pred_region
    _
  $region5: #{model_part0_2node.3} parent=0 // pred_fallthru
    _
  // Predicated region
  $region6: #{model_part0_2node.3} parent=0 // pred_check
    _
  $region7: #{model_part0_2node.3} parent=0 // pred_check_branch
    %11 = sbr.rel (0) target = $region9
  $region8: #{model_part0_2node.3} parent=0 // pred_region
    _
  $region9: #{model_part0_2node.3} parent=0 // pred_fallthru
    _
  // Predicated region
  $region10: #{model_part0_2node.3} parent=0 // pred_check
    _
  $region11: #{model_part0_2node.3} parent=0 // pred_check_branch
    %13 = sbr.rel (0) target = $region13
  $region12: #{model_part0_2node.3} parent=0 // pred_region
    _
  $region13: #{model_part0_2node.3} parent=0 // pred_fallthru
    _
  %v14 = vld [vmem:[%s0] sm:$0xff]
  %v15 = vld [vmem:[%s0 + $0x8] sm:$0xff]
  %v16 = vld [vmem:[%s0 + $0x10] sm:$0xff]
  %v17 = vld [vmem:[%s0 + $0x18] sm:$0xff]
  %v18 = vld [vmem:[%s0 + $0x20] sm:$0xff]
  %v19 = vld [vmem:[%s0 + $0x28] sm:$0xff]
  %v20 = vld [vmem:[%s0 + $0x30] sm:$0xff]
  %v21 = vld [vmem:[%s0 + $0x38] sm:$0xff]
  %v22 = vld [vmem:[%s0 + $0x40] sm:$0xff]
  %v23 = vld [vmem:[%s0 + $0x48] sm:$0xff]
  %v24 = vld [vmem:[%s0 + $0x50] sm:$0xff]
  %v25 = vld [vmem:[%s0 + $0x58] sm:$0xff]
  %v26 = vld [vmem:[%s0 + $0x60] sm:$0xff]
  %v27 = vld [vmem:[%s0 + $0x68] sm:$0xff]
  %v28 = vld [vmem:[%s0 + $0x70] sm:$0xff]
  %v29 = vld [vmem:[%s0 + $0x78] sm:$0xff]
  %v30 = vld [vmem:[%s0 + $0x80] sm:$0xff]
  %v31 = vld [vmem:[%s0 + $0x88] sm:$0xff]
  %v32 = vld [vmem:[%s0 + $0x90] sm:$0xff]
  %v33 = vld [vmem:[%s0 + $0x98] sm:$0xff]
  %v34 = vld [vmem:[%s0 + $0xa0] sm:$0xff]
  %v35 = vld [vmem:[%s0 + $0xa8] sm:$0xff]
  %v36 = vld [vmem:[%s0 + $0xb0] sm:$0xff]
  %v37 = vld [vmem:[%s0 + $0xb8] sm:$0xff]
  %v38 = vld [vmem:[%s0 + $0xc0] sm:$0xff]
  %v39 = vld [vmem:[%s0 + $0xc8] sm:$0xff]
  %v40 = vld [vmem:[%s0 + $0xd0] sm:$0xff]
  %v41 = vld [vmem:[%s0 + $0xd8] sm:$0xff]
  %v42 = vld [vmem:[%s0 + $0xe0] sm:$0xff]
  %v43 = vld [vmem:[%s0 + $0xe8] sm:$0xff]
  %v44 = vld [vmem:[%s0 + $0xf0] sm:$0xff]
  %v45 = vld [vmem:[%s0 + $0xf8] sm:$0xff]
  %v46 = vld [vmem:[%s0 + $0x100] sm:$0xff]
  %v47 = vld [vmem:[%s0 + $0x108] sm:$0xff]
  %v48 = vld [vmem:[%s0 + $0x110] sm:$0xff]
  %v49 = vld [vmem:[%s0 + $0x118] sm:$0xff]
  %v50 = vld [vmem:[%s0 + $0x120] sm:$0xff]
  %v51 = vld [vmem:[%s0 + $0x128] sm:$0xff]
  %v52 = vld [vmem:[%s0 + $0x130] sm:$0xff]
  %v53 = vld [vmem:[%s0 + $0x138] sm:$0xff]
  %v54 = vld [vmem:[%s0 + $0x140] sm:$0xff]
  %v55 = vld [vmem:[%s0 + $0x148] sm:$0xff]
  %v56 = vld [vmem:[%s0 + $0x150] sm:$0xff]
  %v57 = vld [vmem:[%s0 + $0x158] sm:$0xff]
  %v58 = vld [vmem:[%s0 + $0x160] sm:$0xff]
  %v59 = vld [vmem:[%s0 + $0x168] sm:$0xff]
  %v60 = vld [vmem:[%s0 + $0x170] sm:$0xff]
  %v61 = vld [vmem:[%s0 + $0x178] sm:$0xff]
  %v62 = vld [vmem:[%s0 + $0x180] sm:$0xff]
  %v63 = vld [vmem:[%s0 + $0x188] sm:$0xff]
  %v64 = vld [vmem:[%s0 + $0x190] sm:$0xff]
  %v65 = vld [vmem:[%s0 + $0x198] sm:$0xff]
  %v66 = vld [vmem:[%s0 + $0x1a0] sm:$0xff]
  %v67 = vld [vmem:[%s0 + $0x1a8] sm:$0xff]
  %v68 = vld [vmem:[%s0 + $0x1b0] sm:$0xff]
  %v69 = vld [vmem:[%s0 + $0x1b8] sm:$0xff]
  %v70 = vld [vmem:[%s0 + $0x1c0] sm:$0xff]
  %v71 = vld [vmem:[%s0 + $0x1c8] sm:$0xff]
  %v72 = vld [vmem:[%s0 + $0x1d0] sm:$0xff]
  %v73 = vld [vmem:[%s0 + $0x1d8] sm:$0xff]
  %v74 = vld [vmem:[%s0 + $0x1e0] sm:$0xff]
  %v75 = vld [vmem:[%s0 + $0x1e8] sm:$0xff]
  %v76 = vld [vmem:[%s0 + $0x1f0] sm:$0xff]
  %v77 = vld [vmem:[%s0 + $0x1f8] sm:$0xff]
  %v78 = vld [vmem:[%s0 + $0x200] sm:$0xff]
  %v79 = vld [vmem:[%s0 + $0x208] sm:$0xff]
  %v80 = vld [vmem:[%s0 + $0x210] sm:$0xff]
  %v81 = vld [vmem:[%s0 + $0x218] sm:$0xff]
  %v82 = vld [vmem:[%s0 + $0x220] sm:$0xff]
  %v83 = vld [vmem:[%s0 + $0x228] sm:$0xff]
  %v84 = vld [vmem:[%s0 + $0x230] sm:$0xff]
  %v85 = vld [vmem:[%s0 + $0x238] sm:$0xff]
  %v86 = vld [vmem:[%s0 + $0x240] sm:$0xff]
  %v87 = vld [vmem:[%s0 + $0x248] sm:$0xff]
  %v88 = vld [vmem:[%s0 + $0x250] sm:$0xff]
  %v89 = vld [vmem:[%s0 + $0x258] sm:$0xff]
  %v90 = vld [vmem:[%s0 + $0x260] sm:$0xff]
  %v91 = vld [vmem:[%s0 + $0x268] sm:$0xff]
  %v92 = vld [vmem:[%s0 + $0x270] sm:$0xff]
  %v93 = vld [vmem:[%s0 + $0x278] sm:$0xff]
  %v94 = vld [vmem:[%s0 + $0x280] sm:$0xff]
  %v95 = vld [vmem:[%s0 + $0x288] sm:$0xff]
  %v96 = vld [vmem:[%s0 + $0x290] sm:$0xff]
  %v97 = vld [vmem:[%s0 + $0x298] sm:$0xff]
  %v98 = vld [vmem:[%s0 + $0x2a0] sm:$0xff]
  %v99 = vld [vmem:[%s0 + $0x2a8] sm:$0xff]
  %v100 = vld [vmem:[%s0 + $0x2b0] sm:$0xff]
  %v101 = vld [vmem:[%s0 + $0x2b8] sm:$0xff]
  %v102 = vld [vmem:[%s0 + $0x2c0] sm:$0xff]
  %v103 = vld [vmem:[%s0 + $0x2c8] sm:$0xff]
  %v104 = vld [vmem:[%s0 + $0x2d0] sm:$0xff]
  %v105 = vld [vmem:[%s0 + $0x2d8] sm:$0xff]
  %v106 = vld [vmem:[%s0 + $0x2e0] sm:$0xff]
  %v107 = vld [vmem:[%s0 + $0x2e8] sm:$0xff]
  %v108 = vld [vmem:[%s0 + $0x2f0] sm:$0xff]
  %v109 = vld [vmem:[%s0 + $0x2f8] sm:$0xff]
  %v110 = vld [vmem:[%s0 + $0x300] sm:$0xff]
  %v111 = vld [vmem:[%s0 + $0x308] sm:$0xff]
  %v112 = vld [vmem:[%s0 + $0x310] sm:$0xff]
  %v113 = vld [vmem:[%s0 + $0x318] sm:$0xff]
  %v114 = vld [vmem:[%s0 + $0x320] sm:$0xff]
  %v115 = vld [vmem:[%s0 + $0x328] sm:$0xff]
  %v116 = vld [vmem:[%s0 + $0x330] sm:$0xff]
  %v117 = vld [vmem:[%s0 + $0x338] sm:$0xff]
  %v118 = vld [vmem:[%s0 + $0x340] sm:$0xff]
  %v119 = vld [vmem:[%s0 + $0x348] sm:$0xff]
  %v120 = vld [vmem:[%s0 + $0x350] sm:$0xff]
  %v121 = vld [vmem:[%s0 + $0x358] sm:$0xff]
  %v122 = vld [vmem:[%s0 + $0x360] sm:$0xff]
  %v123 = vld [vmem:[%s0 + $0x368] sm:$0xff]
  %v124 = vld [vmem:[%s0 + $0x370] sm:$0xff]
  %v125 = vld [vmem:[%s0 + $0x378] sm:$0xff]
  %v126 = vld [vmem:[%s0 + $0x380] sm:$0xff]
  %v127 = vld [vmem:[%s0 + $0x388] sm:$0xff]
  %v128 = vld [vmem:[%s0 + $0x390] sm:$0xff]
  %v129 = vld [vmem:[%s0 + $0x398] sm:$0xff]
  %v130 = vld [vmem:[%s0 + $0x3a0] sm:$0xff]
  %v131 = vld [vmem:[%s0 + $0x3a8] sm:$0xff]
  %v132 = vld [vmem:[%s0 + $0x3b0] sm:$0xff]
  %v133 = vld [vmem:[%s0 + $0x3b8] sm:$0xff]
  %v134 = vld [vmem:[%s0 + $0x3c0] sm:$0xff]
  %v135 = vld [vmem:[%s0 + $0x3c8] sm:$0xff]
  %v136 = vld [vmem:[%s0 + $0x3d0] sm:$0xff]
  %v137 = vld [vmem:[%s0 + $0x3d8] sm:$0xff]
  %v138 = vld [vmem:[%s0 + $0x3e0] sm:$0xff]
  %v139 = vld [vmem:[%s0 + $0x3e8] sm:$0xff]
  %v140 = vld [vmem:[%s0 + $0x3f0] sm:$0xff]
  %v141 = vld [vmem:[%s0 + $0x3f8] sm:$0xff]
  %v142 = vld [vmem:[%s0 + $0x400] sm:$0xff]
  %v143 = vld [vmem:[%s0 + $0x408] sm:$0xff]
  %v144 = vld [vmem:[%s0 + $0x410] sm:$0xff]
  %v145 = vld [vmem:[%s0 + $0x418] sm:$0xff]
  %v146 = vld [vmem:[%s0 + $0x420] sm:$0xff]
  %v147 = vld [vmem:[%s0 + $0x428] sm:$0xff]
  %v148 = vld [vmem:[%s0 + $0x430] sm:$0xff]
  %v149 = vld [vmem:[%s0 + $0x438] sm:$0xff]
  %v150 = vld [vmem:[%s0 + $0x440] sm:$0xff]
  %v151 = vld [vmem:[%s0 + $0x448] sm:$0xff]
  %v152 = vld [vmem:[%s0 + $0x450] sm:$0xff]
  %v153 = vld [vmem:[%s0 + $0x458] sm:$0xff]
  %v154 = vld [vmem:[%s0 + $0x460] sm:$0xff]
  %v155 = vld [vmem:[%s0 + $0x468] sm:$0xff]
  %v156 = vld [vmem:[%s0 + $0x470] sm:$0xff]
  %v157 = vld [vmem:[%s0 + $0x478] sm:$0xff]
  %v158 = vld [vmem:[%s0 + $0x480] sm:$0xff]
  %v159 = vld [vmem:[%s0 + $0x488] sm:$0xff]
  %v160 = vld [vmem:[%s0 + $0x490] sm:$0xff]
  %v161 = vld [vmem:[%s0 + $0x498] sm:$0xff]
  %v162 = vld [vmem:[%s0 + $0x4a0] sm:$0xff]
  %v163 = vld [vmem:[%s0 + $0x4a8] sm:$0xff]
  %v164 = vld [vmem:[%s0 + $0x4b0] sm:$0xff]
  %v165 = vld [vmem:[%s0 + $0x4b8] sm:$0xff]
  %v166 = vld [vmem:[%s0 + $0x4c0] sm:$0xff]
  %v167 = vld [vmem:[%s0 + $0x4c8] sm:$0xff]
  %v168 = vld [vmem:[%s0 + $0x4d0] sm:$0xff]
  %v169 = vld [vmem:[%s0 + $0x4d8] sm:$0xff]
  %v170 = vld [vmem:[%s0 + $0x4e0] sm:$0xff]
  %v171 = vld [vmem:[%s0 + $0x4e8] sm:$0xff]
  %v172 = vld [vmem:[%s0 + $0x4f0] sm:$0xff]
  %v173 = vld [vmem:[%s0 + $0x4f8] sm:$0xff]
  %v174 = vld [vmem:[%s0 + $0x500] sm:$0xff]
  %v175 = vld [vmem:[%s0 + $0x508] sm:$0xff]
  %v176 = vld [vmem:[%s0 + $0x510] sm:$0xff]
  %v177 = vld [vmem:[%s0 + $0x518] sm:$0xff]
  %v178 = vld [vmem:[%s0 + $0x520] sm:$0xff]
  %v179 = vld [vmem:[%s0 + $0x528] sm:$0xff]
  %v180 = vld [vmem:[%s0 + $0x530] sm:$0xff]
  %v181 = vld [vmem:[%s0 + $0x538] sm:$0xff]
  %v182 = vld [vmem:[%s0 + $0x540] sm:$0xff]
  %v183 = vld [vmem:[%s0 + $0x548] sm:$0xff]
  %v184 = vld [vmem:[%s0 + $0x550] sm:$0xff]
  %v185 = vld [vmem:[%s0 + $0x558] sm:$0xff]
  %v186 = vld [vmem:[%s0 + $0x560] sm:$0xff]
  %v187 = vld [vmem:[%s0 + $0x568] sm:$0xff]
  %v188 = vld [vmem:[%s0 + $0x570] sm:$0xff]
  %v189 = vld [vmem:[%s0 + $0x578] sm:$0xff]
  %v190 = vld [vmem:[%s0 + $0x580] sm:$0xff]
  %v191 = vld [vmem:[%s0 + $0x588] sm:$0xff]
  %v192 = vld [vmem:[%s0 + $0x590] sm:$0xff]
  %v193 = vld [vmem:[%s0 + $0x598] sm:$0xff]
  %v194 = vld [vmem:[%s0 + $0x5a0] sm:$0xff]
  %v195 = vld [vmem:[%s0 + $0x5a8] sm:$0xff]
  %v196 = vld [vmem:[%s0 + $0x5b0] sm:$0xff]
  %v197 = vld [vmem:[%s0 + $0x5b8] sm:$0xff]
  %v198 = vld [vmem:[%s0 + $0x5c0] sm:$0xff]
  %v199 = vld [vmem:[%s0 + $0x5c8] sm:$0xff]
  %v200 = vld [vmem:[%s0 + $0x5d0] sm:$0xff]
  %v201 = vld [vmem:[%s0 + $0x5d8] sm:$0xff]
  %v202 = vld [vmem:[%s0 + $0x5e0] sm:$0xff]
  %v203 = vld [vmem:[%s0 + $0x5e8] sm:$0xff]
  %v204 = vld [vmem:[%s0 + $0x5f0] sm:$0xff]
  %v205 = vld [vmem:[%s0 + $0x5f8] sm:$0xff]
  %v206 = vld [vmem:[%s1] sm:$0xff]
  %v207 = vld [vmem:[%s1 + $0x8] sm:$0xff]
  %v208 = vld [vmem:[%s1 + $0x10] sm:$0xff]
  %v209 = vld [vmem:[%s1 + $0x18] sm:$0xff]
  %v210 = vld [vmem:[%s1 + $0x20] sm:$0xff]
  %v211 = vld [vmem:[%s1 + $0x28] sm:$0xff]
  %v212 = vld [vmem:[%s1 + $0x30] sm:$0xff]
  %v213 = vld [vmem:[%s1 + $0x38] sm:$0xff]
  %v214 = vld [vmem:[%s1 + $0x40] sm:$0xff]
  %v215 = vld [vmem:[%s1 + $0x48] sm:$0xff]
  %v216 = vld [vmem:[%s1 + $0x50] sm:$0xff]
  %v217 = vld [vmem:[%s1 + $0x58] sm:$0xff]
  %v218 = vld [vmem:[%s1 + $0x60] sm:$0xff]
  %v219 = vld [vmem:[%s1 + $0x68] sm:$0xff]
  %v220 = vld [vmem:[%s1 + $0x70] sm:$0xff]
  %v221 = vld [vmem:[%s1 + $0x78] sm:$0xff]
  %v222 = vld [vmem:[%s1 + $0x80] sm:$0xff]
  %v223 = vld [vmem:[%s1 + $0x88] sm:$0xff]
  %v224 = vld [vmem:[%s1 + $0x90] sm:$0xff]
  %v225 = vld [vmem:[%s1 + $0x98] sm:$0xff]
  %v226 = vld [vmem:[%s1 + $0xa0] sm:$0xff]
  %v227 = vld [vmem:[%s1 + $0xa8] sm:$0xff]
  %v228 = vld [vmem:[%s1 + $0xb0] sm:$0xff]
  %v229 = vld [vmem:[%s1 + $0xb8] sm:$0xff]
  %v230 = vld [vmem:[%s1 + $0xc0] sm:$0xff]
  %v231 = vld [vmem:[%s1 + $0xc8] sm:$0xff]
  %v232 = vld [vmem:[%s1 + $0xd0] sm:$0xff]
  %v233 = vld [vmem:[%s1 + $0xd8] sm:$0xff]
  %v234 = vld [vmem:[%s1 + $0xe0] sm:$0xff]
  %v235 = vld [vmem:[%s1 + $0xe8] sm:$0xff]
  %v236 = vld [vmem:[%s1 + $0xf0] sm:$0xff]
  %v237 = vld [vmem:[%s1 + $0xf8] sm:$0xff]
  %v238 = vld [vmem:[%s1 + $0x100] sm:$0xff]
  %v239 = vld [vmem:[%s1 + $0x108] sm:$0xff]
  %v240 = vld [vmem:[%s1 + $0x110] sm:$0xff]
  %v241 = vld [vmem:[%s1 + $0x118] sm:$0xff]
  %vm242 = vcmask 261120
  %v244 = vsel %vm242, %v16, 0
  %v247 = vsel %vm242, %v19, 0
  %v250 = vsel %vm242, %v22, 0
  %v253 = vsel %vm242, %v25, 0
  %v256 = vsel %vm242, %v28, 0
  %v259 = vsel %vm242, %v31, 0
  %v262 = vsel %vm242, %v34, 0
  %v265 = vsel %vm242, %v37, 0
  %v268 = vsel %vm242, %v40, 0
  %v271 = vsel %vm242, %v43, 0
  %v274 = vsel %vm242, %v46, 0
  %v277 = vsel %vm242, %v49, 0
  %v280 = vsel %vm242, %v52, 0
  %v283 = vsel %vm242, %v55, 0
  %v286 = vsel %vm242, %v58, 0
  %v289 = vsel %vm242, %v61, 0
  %v292 = vsel %vm242, %v64, 0
  %v295 = vsel %vm242, %v67, 0
  %v298 = vsel %vm242, %v70, 0
  %v301 = vsel %vm242, %v73, 0
  %v304 = vsel %vm242, %v76, 0
  %v307 = vsel %vm242, %v79, 0
  %v310 = vsel %vm242, %v82, 0
  %v313 = vsel %vm242, %v85, 0
  %v316 = vsel %vm242, %v88, 0
  %v319 = vsel %vm242, %v91, 0
  %v322 = vsel %vm242, %v94, 0
  %v325 = vsel %vm242, %v97, 0
  %v328 = vsel %vm242, %v100, 0
  %v331 = vsel %vm242, %v103, 0
  %v334 = vsel %vm242, %v106, 0
  %v337 = vsel %vm242, %v109, 0
  %v340 = vsel %vm242, %v112, 0
  %v343 = vsel %vm242, %v115, 0
  %v346 = vsel %vm242, %v118, 0
  %v349 = vsel %vm242, %v121, 0
  %v352 = vsel %vm242, %v124, 0
  %v355 = vsel %vm242, %v127, 0
  %v358 = vsel %vm242, %v130, 0
  %v361 = vsel %vm242, %v133, 0
  %v364 = vsel %vm242, %v136, 0
  %v367 = vsel %vm242, %v139, 0
  %v370 = vsel %vm242, %v142, 0
  %v373 = vsel %vm242, %v145, 0
  %v376 = vsel %vm242, %v148, 0
  %v379 = vsel %vm242, %v151, 0
  %v382 = vsel %vm242, %v154, 0
  %v385 = vsel %vm242, %v157, 0
  %v388 = vsel %vm242, %v160, 0
  %v391 = vsel %vm242, %v163, 0
  %v394 = vsel %vm242, %v166, 0
  %v397 = vsel %vm242, %v169, 0
  %v400 = vsel %vm242, %v172, 0
  %v403 = vsel %vm242, %v175, 0
  %v406 = vsel %vm242, %v178, 0
  %v409 = vsel %vm242, %v181, 0
  %v412 = vsel %vm242, %v184, 0
  %v415 = vsel %vm242, %v187, 0
  %v418 = vsel %vm242, %v190, 0
  %v421 = vsel %vm242, %v193, 0
  %v424 = vsel %vm242, %v196, 0
  %v427 = vsel %vm242, %v199, 0
  %v430 = vsel %vm242, %v202, 0
  %v433 = vsel %vm242, %v205, 0
  %435 = vmatprep.subr.mxu0 0.0
  %436 = vmatpush1.msra.mxu0 %v206
  %437 = vmatprep.subr.mxu0 0.0
  %438 = vmatpush1.msra.mxu0 %v207
  %439 = vmatprep.subr.mxu0 0.0
  %440 = vmatpush1.msra.mxu0 %v208
  %441 = vmatprep.subr.mxu0 0.0
  %442 = vmatpush1.msra.mxu0 %v209
  %443 = vmatprep.subr.mxu0 0.0
  %444 = vmatpush1.msra.mxu0 %v210
  %445 = vmatprep.subr.mxu0 0.0
  %446 = vmatpush1.msra.mxu0 %v211
  %447 = vmatprep.subr.mxu0 0.0
  %448 = vmatpush1.msra.mxu0 %v212
  %449 = vmatprep.subr.mxu0 0.0
  %450 = vmatpush1.msra.mxu0 %v213
  %451 = vmatprep.subr.mxu0 0.0
  %452 = vmatpush1.msra.mxu0 %v214
  %453 = vmatprep.subr.mxu0 0.0
  %454 = vmatpush1.msra.mxu0 %v215
  %455 = vmatprep.subr.mxu0 0.0
  %456 = vmatpush1.msra.mxu0 %v216
  %457 = vmatprep.subr.mxu0 0.0
  %458 = vmatpush1.msra.mxu0 %v217
  %459 = vmatprep.subr.mxu0 0.0
  %460 = vmatpush1.msra.mxu0 %v218
  %461 = vmatprep.subr.mxu0 0.0
  %462 = vmatpush1.msra.mxu0 %v219
  %463 = vmatprep.subr.mxu0 0.0
  %464 = vmatpush1.msra.mxu0 %v220
  %465 = vmatprep.subr.mxu0 0.0
  %466 = vmatpush1.msra.mxu0 %v221
  %467 = vmatprep.subr.mxu0 0.0
  %468 = vmatpush1.msra.mxu0 %v222
  %469 = vmatprep.subr.mxu0 0.0
  %470 = vmatpush1.msra.mxu0 %v223
  %471 = vmatprep.subr.mxu0 0.0
  %472 = vmatpush1.msra.mxu0 %v224
  %473 = vmatprep.subr.mxu0 0.0
  %474 = vmatpush1.msra.mxu0 %v225
  %475 = vmatprep.subr.mxu0 0.0
  %476 = vmatpush1.msra.mxu0 %v226
  %477 = vmatprep.subr.mxu0 0.0
  %478 = vmatpush1.msra.mxu0 %v227
  %479 = vmatprep.subr.mxu0 0.0
  %480 = vmatpush1.msra.mxu0 %v228
  %481 = vmatprep.subr.mxu0 0.0
  %482 = vmatpush1.msra.mxu0 %v229
  %483 = vmatprep.subr.mxu0 0.0
  %484 = vmatpush1.msra.mxu0 %v230
  %485 = vmatprep.subr.mxu0 0.0
  %486 = vmatpush1.msra.mxu0 %v231
  %487 = vmatprep.subr.mxu0 0.0
  %488 = vmatpush1.msra.mxu0 %v232
  %489 = vmatprep.subr.mxu0 0.0
  %490 = vmatpush1.msra.mxu0 %v233
  %491 = vmatprep.subr.mxu0 0.0
  %492 = vmatpush1.msra.mxu0 %v234
  %493 = vmatprep.subr.mxu0 0.0
  %494 = vmatpush1.msra.mxu0 %v235
  %495 = vmatprep.subr.mxu0 0.0
  %496 = vmatpush1.msra.mxu0 %v236
  %497 = vmatprep.subr.mxu0 0.0
  %498 = vmatpush1.msra.mxu0 %v237
  %499 = vmatprep.mubr.f32.mxu0 %v15
  %500 = vmatmul.mubr.f32.gmra.mrb[0].mxu0 %v14
  %v501 = vpop.f32.mrb[0].mxu0
  %v502 = vadd.f32 0.0, %v501
  %v503 = vpop.f32.mrb[0].mxu0
  %504 = vmatprep.mubr.f32.mxu0 %v18
  %505 = vmatmul.mubr.f32.gmra.mrb[0].mxu0 %v17
  %v506 = vpop.f32.mrb[0].mxu0
  %v507 = vadd.f32 0.0, %v506
  %v508 = vpop.f32.mrb[0].mxu0
  %509 = vmatprep.mubr.f32.mxu0 %v21
  %510 = vmatmul.mubr.f32.gmra.mrb[0].mxu0 %v20
  %v511 = vpop.f32.mrb[0].mxu0
  %v512 = vadd.f32 0.0, %v511
  %v513 = vpop.f32.mrb[0].mxu0
  %514 = vmatprep.mubr.f32.mxu0 %v24
  %515 = vmatmul.mubr.f32.gmra.mrb[0].mxu0 %v23
  %v516 = vpop.f32.mrb[0].mxu0
  %v517 = vadd.f32 0.0, %v516
  %v518 = vpop.f32.mrb[0].mxu0
  %519 = vmatprep.mubr.f32.mxu0 %v27
  %520 = vmatmul.mubr.f32.gmra.mrb[0].mxu0 %v26
  %v521 = vpop.f32.mrb[0].mxu0
  %v522 = vadd.f32 0.0, %v521
  %v523 = vpop.f32.mrb[0].mxu0
  %524 = vmatprep.mubr.f32.mxu0 %v30
  %525 = vmatmul.mubr.f32.gmra.mrb[0].mxu0 %v29
  %v526 = vpop.f32.mrb[0].mxu0
  %v527 = vadd.f32 0.0, %v526
  %v528 = vpop.f32.mrb[0].mxu0
  %529 = vmatprep.mubr.f32.mxu0 %v33
  %530 = vmatmul.mubr.f32.gmra.mrb[0].mxu0 %v32
  %v531 = vpop.f32.mrb[0].mxu0
  %v532 = vadd.f32 0.0, %v531
  %v533 = vpop.f32.mrb[0].mxu0
  %534 = vmatprep.mubr.f32.mxu0 %v36
  %535 = vmatmul.mubr.f32.gmra.mrb[0].mxu0 %v35
  %v536 = vpop.f32.mrb[0].mxu0
  %v537 = vadd.f32 0.0, %v536
  %v538 = vpop.f32.mrb[0].mxu0
  %539 = vmatprep.mubr.f32.mxu0 %v39
  %540 = vmatmul.mubr.f32.gmra.mrb[0].mxu0 %v38
  %v541 = vpop.f32.mrb[0].mxu0
  %v542 = vadd.f32 0.0, %v541
  %v543 = vpop.f32.mrb[0].mxu0
  %544 = vmatprep.mubr.f32.mxu0 %v42
  %545 = vmatmul.mubr.f32.gmra.mrb[0].mxu0 %v41
  %v546 = vpop.f32.mrb[0].mxu0
  %v547 = vadd.f32 0.0, %v546
  %v548 = vpop.f32.mrb[0].mxu0
  %549 = vmatprep.mubr.f32.mxu0 %v45
  %550 = vmatmul.mubr.f32.gmra.mrb[0].mxu0 %v44
  %v551 = vpop.f32.mrb[0].mxu0
  %v552 = vadd.f32 0.0, %v551
  %v553 = vpop.f32.mrb[0].mxu0
  %554 = vmatprep.mubr.f32.mxu0 %v48
  %555 = vmatmul.mubr.f32.gmra.mrb[0].mxu0 %v47
  %v556 = vpop.f32.mrb[0].mxu0
  %v557 = vadd.f32 0.0, %v556
  %v558 = vpop.f32.mrb[0].mxu0
  %559 = vmatprep.mubr.f32.mxu0 %v51
  %560 = vmatmul.mubr.f32.gmra.mrb[0].mxu0 %v50
  %v561 = vpop.f32.mrb[0].mxu0
  %v562 = vadd.f32 0.0, %v561
  %v563 = vpop.f32.mrb[0].mxu0
  %564 = vmatprep.mubr.f32.mxu0 %v54
  %565 = vmatmul.mubr.f32.gmra.mrb[0].mxu0 %v53
  %v566 = vpop.f32.mrb[0].mxu0
  %v567 = vadd.f32 0.0, %v566
  %v568 = vpop.f32.mrb[0].mxu0
  %569 = vmatprep.mubr.f32.mxu0 %v57
  %570 = vmatmul.mubr.f32.gmra.mrb[0].mxu0 %v56
  %v571 = vpop.f32.mrb[0].mxu0
  %v572 = vadd.f32 0.0, %v571
  %v573 = vpop.f32.mrb[0].mxu0
  %574 = vmatprep.mubr.f32.mxu0 %v60
  %575 = vmatmul.mubr.f32.gmra.mrb[0].mxu0 %v59
  %v576 = vpop.f32.mrb[0].mxu0
  %v577 = vadd.f32 0.0, %v576
  %v578 = vpop.f32.mrb[0].mxu0
  %579 = vmatprep.mubr.f32.mxu0 %v63
  %580 = vmatmul.mubr.f32.gmra.mrb[0].mxu0 %v62
  %v581 = vpop.f32.mrb[0].mxu0
  %v582 = vadd.f32 0.0, %v581
  %v583 = vpop.f32.mrb[0].mxu0
  %584 = vmatprep.mubr.f32.mxu0 %v66
  %585 = vmatmul.mubr.f32.gmra.mrb[0].mxu0 %v65
  %v586 = vpop.f32.mrb[0].mxu0
  %v587 = vadd.f32 0.0, %v586
  %v588 = vpop.f32.mrb[0].mxu0
  %589 = vmatprep.mubr.f32.mxu0 %v69
  %590 = vmatmul.mubr.f32.gmra.mrb[0].mxu0 %v68
  %v591 = vpop.f32.mrb[0].mxu0
  %v592 = vadd.f32 0.0, %v591
  %v593 = vpop.f32.mrb[0].mxu0
  %594 = vmatprep.mubr.f32.mxu0 %v72
  %595 = vmatmul.mubr.f32.gmra.mrb[0].mxu0 %v71
  %v596 = vpop.f32.mrb[0].mxu0
  %v597 = vadd.f32 0.0, %v596
  %v598 = vpop.f32.mrb[0].mxu0
  %599 = vmatprep.mubr.f32.mxu0 %v75
  %600 = vmatmul.mubr.f32.gmra.mrb[0].mxu0 %v74
  %v601 = vpop.f32.mrb[0].mxu0
  %v602 = vadd.f32 0.0, %v601
  %v603 = vpop.f32.mrb[0].mxu0
  %604 = vmatprep.mubr.f32.mxu0 %v78
  %605 = vmatmul.mubr.f32.gmra.mrb[0].mxu0 %v77
  %v606 = vpop.f32.mrb[0].mxu0
  %v607 = vadd.f32 0.0, %v606
  %v608 = vpop.f32.mrb[0].mxu0
  %609 = vmatprep.mubr.f32.mxu0 %v81
  %610 = vmatmul.mubr.f32.gmra.mrb[0].mxu0 %v80
  %v611 = vpop.f32.mrb[0].mxu0
  %v612 = vadd.f32 0.0, %v611
  %v613 = vpop.f32.mrb[0].mxu0
  %614 = vmatprep.mubr.f32.mxu0 %v84
  %615 = vmatmul.mubr.f32.gmra.mrb[0].mxu0 %v83
  %v616 = vpop.f32.mrb[0].mxu0
  %v617 = vadd.f32 0.0, %v616
  %v618 = vpop.f32.mrb[0].mxu0
  %619 = vmatprep.mubr.f32.mxu0 %v87
  %620 = vmatmul.mubr.f32.gmra.mrb[0].mxu0 %v86
  %v621 = vpop.f32.mrb[0].mxu0
  %v622 = vadd.f32 0.0, %v621
  %v623 = vpop.f32.mrb[0].mxu0
  %624 = vmatprep.mubr.f32.mxu0 %v90
  %625 = vmatmul.mubr.f32.gmra.mrb[0].mxu0 %v89
  %v626 = vpop.f32.mrb[0].mxu0
  %v627 = vadd.f32 0.0, %v626
  %v628 = vpop.f32.mrb[0].mxu0
  %629 = vmatprep.mubr.f32.mxu0 %v93
  %630 = vmatmul.mubr.f32.gmra.mrb[0].mxu0 %v92
  %v631 = vpop.f32.mrb[0].mxu0
  %v632 = vadd.f32 0.0, %v631
  %v633 = vpop.f32.mrb[0].mxu0
  %634 = vmatprep.mubr.f32.mxu0 %v96
  %635 = vmatmul.mubr.f32.gmra.mrb[0].mxu0 %v95
  %v636 = vpop.f32.mrb[0].mxu0
  %v637 = vadd.f32 0.0, %v636
  %v638 = vpop.f32.mrb[0].mxu0
  %639 = vmatprep.mubr.f32.mxu0 %v99
  %640 = vmatmul.mubr.f32.gmra.mrb[0].mxu0 %v98
  %v641 = vpop.f32.mrb[0].mxu0
  %v642 = vadd.f32 0.0, %v641
  %v643 = vpop.f32.mrb[0].mxu0
  %644 = vmatprep.mubr.f32.mxu0 %v102
  %645 = vmatmul.mubr.f32.gmra.mrb[0].mxu0 %v101
  %v646 = vpop.f32.mrb[0].mxu0
  %v647 = vadd.f32 0.0, %v646
  %v648 = vpop.f32.mrb[0].mxu0
  %649 = vmatprep.mubr.f32.mxu0 %v105
  %650 = vmatmul.mubr.f32.gmra.mrb[0].mxu0 %v104
  %v651 = vpop.f32.mrb[0].mxu0
  %v652 = vadd.f32 0.0, %v651
  %v653 = vpop.f32.mrb[0].mxu0
  %654 = vmatprep.mubr.f32.mxu0 %v108
  %655 = vmatmul.mubr.f32.gmra.mrb[0].mxu0 %v107
  %v656 = vpop.f32.mrb[0].mxu0
  %v657 = vadd.f32 0.0, %v656
  %v658 = vpop.f32.mrb[0].mxu0
  %659 = vmatprep.mubr.f32.mxu0 %v111
  %660 = vmatmul.mubr.f32.gmra.mrb[0].mxu0 %v110
  %v661 = vpop.f32.mrb[0].mxu0
  %v662 = vadd.f32 0.0, %v661
  %v663 = vpop.f32.mrb[0].mxu0
  %664 = vmatprep.mubr.f32.mxu0 %v114
  %665 = vmatmul.mubr.f32.gmra.mrb[0].mxu0 %v113
  %v666 = vpop.f32.mrb[0].mxu0
  %v667 = vadd.f32 0.0, %v666
  %v668 = vpop.f32.mrb[0].mxu0
  %669 = vmatprep.mubr.f32.mxu0 %v117
  %670 = vmatmul.mubr.f32.gmra.mrb[0].mxu0 %v116
  %v671 = vpop.f32.mrb[0].mxu0
  %v672 = vadd.f32 0.0, %v671
  %v673 = vpop.f32.mrb[0].mxu0
  %674 = vmatprep.mubr.f32.mxu0 %v120
  %675 = vmatmul.mubr.f32.gmra.mrb[0].mxu0 %v119
  %v676 = vpop.f32.mrb[0].mxu0
  %v677 = vadd.f32 0.0, %v676
  %v678 = vpop.f32.mrb[0].mxu0
  %679 = vmatprep.mubr.f32.mxu0 %v123
  %680 = vmatmul.mubr.f32.gmra.mrb[0].mxu0 %v122
  %v681 = vpop.f32.mrb[0].mxu0
  %v682 = vadd.f32 0.0, %v681
  %v683 = vpop.f32.mrb[0].mxu0
  %684 = vmatprep.mubr.f32.mxu0 %v126
  %685 = vmatmul.mubr.f32.gmra.mrb[0].mxu0 %v125
  %v686 = vpop.f32.mrb[0].mxu0
  %v687 = vadd.f32 0.0, %v686
  %v688 = vpop.f32.mrb[0].mxu0
  %689 = vmatprep.mubr.f32.mxu0 %v129
  %690 = vmatmul.mubr.f32.gmra.mrb[0].mxu0 %v128
  %v691 = vpop.f32.mrb[0].mxu0
  %v692 = vadd.f32 0.0, %v691
  %v693 = vpop.f32.mrb[0].mxu0
  %694 = vmatprep.mubr.f32.mxu0 %v132
  %695 = vmatmul.mubr.f32.gmra.mrb[0].mxu0 %v131
  %v696 = vpop.f32.mrb[0].mxu0
  %v697 = vadd.f32 0.0, %v696
  %v698 = vpop.f32.mrb[0].mxu0
  %699 = vmatprep.mubr.f32.mxu0 %v135
  %700 = vmatmul.mubr.f32.gmra.mrb[0].mxu0 %v134
  %v701 = vpop.f32.mrb[0].mxu0
  %v702 = vadd.f32 0.0, %v701
  %v703 = vpop.f32.mrb[0].mxu0
  %704 = vmatprep.mubr.f32.mxu0 %v138
  %705 = vmatmul.mubr.f32.gmra.mrb[0].mxu0 %v137
  %v706 = vpop.f32.mrb[0].mxu0
  %v707 = vadd.f32 0.0, %v706
  %v708 = vpop.f32.mrb[0].mxu0
  %709 = vmatprep.mubr.f32.mxu0 %v141
  %710 = vmatmul.mubr.f32.gmra.mrb[0].mxu0 %v140
  %v711 = vpop.f32.mrb[0].mxu0
  %v712 = vadd.f32 0.0, %v711
  %v713 = vpop.f32.mrb[0].mxu0
  %714 = vmatprep.mubr.f32.mxu0 %v144
  %715 = vmatmul.mubr.f32.gmra.mrb[0].mxu0 %v143
  %v716 = vpop.f32.mrb[0].mxu0
  %v717 = vadd.f32 0.0, %v716
  %v718 = vpop.f32.mrb[0].mxu0
  %719 = vmatprep.mubr.f32.mxu0 %v147
  %720 = vmatmul.mubr.f32.gmra.mrb[0].mxu0 %v146
  %v721 = vpop.f32.mrb[0].mxu0
  %v722 = vadd.f32 0.0, %v721
  %v723 = vpop.f32.mrb[0].mxu0
  %724 = vmatprep.mubr.f32.mxu0 %v150
  %725 = vmatmul.mubr.f32.gmra.mrb[0].mxu0 %v149
  %v726 = vpop.f32.mrb[0].mxu0
  %v727 = vadd.f32 0.0, %v726
  %v728 = vpop.f32.mrb[0].mxu0
  %729 = vmatprep.mubr.f32.mxu0 %v153
  %730 = vmatmul.mubr.f32.gmra.mrb[0].mxu0 %v152
  %v731 = vpop.f32.mrb[0].mxu0
  %v732 = vadd.f32 0.0, %v731
  %v733 = vpop.f32.mrb[0].mxu0
  %734 = vmatprep.mubr.f32.mxu0 %v156
  %735 = vmatmul.mubr.f32.gmra.mrb[0].mxu0 %v155
  %v736 = vpop.f32.mrb[0].mxu0
  %v737 = vadd.f32 0.0, %v736
  %v738 = vpop.f32.mrb[0].mxu0
  %739 = vmatprep.mubr.f32.mxu0 %v159
  %740 = vmatmul.mubr.f32.gmra.mrb[0].mxu0 %v158
  %v741 = vpop.f32.mrb[0].mxu0
  %v742 = vadd.f32 0.0, %v741
  %v743 = vpop.f32.mrb[0].mxu0
  %744 = vmatprep.mubr.f32.mxu0 %v162
  %745 = vmatmul.mubr.f32.gmra.mrb[0].mxu0 %v161
  %v746 = vpop.f32.mrb[0].mxu0
  %v747 = vadd.f32 0.0, %v746
  %v748 = vpop.f32.mrb[0].mxu0
  %749 = vmatprep.mubr.f32.mxu0 %v165
  %750 = vmatmul.mubr.f32.gmra.mrb[0].mxu0 %v164
  %v751 = vpop.f32.mrb[0].mxu0
  %v752 = vadd.f32 0.0, %v751
  %v753 = vpop.f32.mrb[0].mxu0
  %754 = vmatprep.mubr.f32.mxu0 %v168
  %755 = vmatmul.mubr.f32.gmra.mrb[0].mxu0 %v167
  %v756 = vpop.f32.mrb[0].mxu0
  %v757 = vadd.f32 0.0, %v756
  %v758 = vpop.f32.mrb[0].mxu0
  %759 = vmatprep.mubr.f32.mxu0 %v171
  %760 = vmatmul.mubr.f32.gmra.mrb[0].mxu0 %v170
  %v761 = vpop.f32.mrb[0].mxu0
  %v762 = vadd.f32 0.0, %v761
  %v763 = vpop.f32.mrb[0].mxu0
  %764 = vmatprep.mubr.f32.mxu0 %v174
  %765 = vmatmul.mubr.f32.gmra.mrb[0].mxu0 %v173
  %v766 = vpop.f32.mrb[0].mxu0
  %v767 = vadd.f32 0.0, %v766
  %v768 = vpop.f32.mrb[0].mxu0
  %769 = vmatprep.mubr.f32.mxu0 %v177
  %770 = vmatmul.mubr.f32.gmra.mrb[0].mxu0 %v176
  %v771 = vpop.f32.mrb[0].mxu0
  %v772 = vadd.f32 0.0, %v771
  %v773 = vpop.f32.mrb[0].mxu0
  %774 = vmatprep.mubr.f32.mxu0 %v180
  %775 = vmatmul.mubr.f32.gmra.mrb[0].mxu0 %v179
  %v776 = vpop.f32.mrb[0].mxu0
  %v777 = vadd.f32 0.0, %v776
  %v778 = vpop.f32.mrb[0].mxu0
  %779 = vmatprep.mubr.f32.mxu0 %v183
  %780 = vmatmul.mubr.f32.gmra.mrb[0].mxu0 %v182
  %v781 = vpop.f32.mrb[0].mxu0
  %v782 = vadd.f32 0.0, %v781
  %v783 = vpop.f32.mrb[0].mxu0
  %784 = vmatprep.mubr.f32.mxu0 %v186
  %785 = vmatmul.mubr.f32.gmra.mrb[0].mxu0 %v185
  %v786 = vpop.f32.mrb[0].mxu0
  %v787 = vadd.f32 0.0, %v786
  %v788 = vpop.f32.mrb[0].mxu0
  %789 = vmatprep.mubr.f32.mxu0 %v189
  %790 = vmatmul.mubr.f32.gmra.mrb[0].mxu0 %v188
  %v791 = vpop.f32.mrb[0].mxu0
  %v792 = vadd.f32 0.0, %v791
  %v793 = vpop.f32.mrb[0].mxu0
  %794 = vmatprep.mubr.f32.mxu0 %v192
  %795 = vmatmul.mubr.f32.gmra.mrb[0].mxu0 %v191
  %v796 = vpop.f32.mrb[0].mxu0
  %v797 = vadd.f32 0.0, %v796
  %v798 = vpop.f32.mrb[0].mxu0
  %799 = vmatprep.mubr.f32.mxu0 %v195
  %800 = vmatmul.mubr.f32.gmra.mrb[0].mxu0 %v194
  %v801 = vpop.f32.mrb[0].mxu0
  %v802 = vadd.f32 0.0, %v801
  %v803 = vpop.f32.mrb[0].mxu0
  %804 = vmatprep.mubr.f32.mxu0 %v198
  %805 = vmatmul.mubr.f32.gmra.mrb[0].mxu0 %v197
  %v806 = vpop.f32.mrb[0].mxu0
  %v807 = vadd.f32 0.0, %v806
  %v808 = vpop.f32.mrb[0].mxu0
  %809 = vmatprep.mubr.f32.mxu0 %v201
  %810 = vmatmul.mubr.f32.gmra.mrb[0].mxu0 %v200
  %v811 = vpop.f32.mrb[0].mxu0
  %v812 = vadd.f32 0.0, %v811
  %v813 = vpop.f32.mrb[0].mxu0
  %814 = vmatprep.mubr.f32.mxu0 %v204
  %815 = vmatmul.mubr.f32.gmra.mrb[0].mxu0 %v203
  %v816 = vpop.f32.mrb[0].mxu0
  %v817 = vadd.f32 0.0, %v816
  %v818 = vpop.f32.mrb[0].mxu0
  %819 = vdwg.mxu0
  %820 = vmatprep.subr.mxu0 0.0
  %821 = vmatpush1.msra.mxu0 %v238
  %822 = vmatprep.subr.mxu0 0.0
  %823 = vmatpush1.msra.mxu0 %v239
  %824 = vmatprep.subr.mxu0 0.0
  %825 = vmatpush1.msra.mxu0 %v240
  %826 = vmatprep.subr.mxu0 0.0
  %827 = vmatpush1.msra.mxu0 %v241
  %828 = vmatprep.subr.mxu0 0.0
  %829 = vmatpush1.msra.mxu0 0.0
  %830 = vmatprep.subr.mxu0 0.0
  %831 = vmatpush1.msra.mxu0 0.0
  %832 = vmatprep.subr.mxu0 0.0
  %833 = vmatpush1.msra.mxu0 0.0
  %834 = vmatprep.subr.mxu0 0.0
  %835 = vmatpush1.msra.mxu0 0.0
  %836 = vmatprep.subr.mxu0 0.0
  %837 = vmatpush1.msra.mxu0 0.0
  %838 = vmatprep.subr.mxu0 0.0
  %839 = vmatpush1.msra.mxu0 0.0
  %840 = vmatprep.subr.mxu0 0.0
  %841 = vmatpush1.msra.mxu0 0.0
  %842 = vmatprep.subr.mxu0 0.0
  %843 = vmatpush1.msra.mxu0 0.0
  %844 = vmatprep.subr.mxu0 0.0
  %845 = vmatpush1.msra.mxu0 0.0
  %846 = vmatprep.subr.mxu0 0.0
  %847 = vmatpush1.msra.mxu0 0.0
  %848 = vmatprep.subr.mxu0 0.0
  %849 = vmatpush1.msra.mxu0 0.0
  %850 = vmatprep.subr.mxu0 0.0
  %851 = vmatpush1.msra.mxu0 0.0
  %852 = vmatprep.subr.mxu0 0.0
  %853 = vmatpush1.msra.mxu0 0.0
  %854 = vmatprep.subr.mxu0 0.0
  %855 = vmatpush1.msra.mxu0 0.0
  %856 = vmatprep.subr.mxu0 0.0
  %857 = vmatpush1.msra.mxu0 0.0
  %858 = vmatprep.subr.mxu0 0.0
  %859 = vmatpush1.msra.mxu0 0.0
  %860 = vmatprep.subr.mxu0 0.0
  %861 = vmatpush1.msra.mxu0 0.0
  %862 = vmatprep.subr.mxu0 0.0
  %863 = vmatpush1.msra.mxu0 0.0
  %864 = vmatprep.subr.mxu0 0.0
  %865 = vmatpush1.msra.mxu0 0.0
  %866 = vmatprep.subr.mxu0 0.0
  %867 = vmatpush1.msra.mxu0 0.0
  %868 = vmatprep.subr.mxu0 0.0
  %869 = vmatpush1.msra.mxu0 0.0
  %870 = vmatprep.subr.mxu0 0.0
  %871 = vmatpush1.msra.mxu0 0.0
  %872 = vmatprep.subr.mxu0 0.0
  %873 = vmatpush1.msra.mxu0 0.0
  %874 = vmatprep.subr.mxu0 0.0
  %875 = vmatpush1.msra.mxu0 0.0
  %876 = vmatprep.subr.mxu0 0.0
  %877 = vmatpush1.msra.mxu0 0.0
  %878 = vmatprep.subr.mxu0 0.0
  %879 = vmatpush1.msra.mxu0 0.0
  %880 = vmatprep.subr.mxu0 0.0
  %881 = vmatpush1.msra.mxu0 0.0
  %882 = vmatprep.subr.mxu0 0.0
  %883 = vmatpush1.msra.mxu0 0.0
  %884 = vmatprep.mubr.f32.mxu0 0.0
  %885 = vmatmul.mubr.f32.gmra.mrb[0].mxu0 %v244
  %v886 = vpop.f32.mrb[0].mxu0
  %v887 = vadd.f32 %v502, %v886
  %v888 = vpop.f32.mrb[0].mxu0
  %889 = vmatprep.mubr.f32.mxu0 0.0
  %890 = vmatmul.mubr.f32.gmra.mrb[0].mxu0 %v247
  %v891 = vpop.f32.mrb[0].mxu0
  %v892 = vadd.f32 %v507, %v891
  %v893 = vpop.f32.mrb[0].mxu0
  %894 = vmatprep.mubr.f32.mxu0 0.0
  %895 = vmatmul.mubr.f32.gmra.mrb[0].mxu0 %v250
  %v896 = vpop.f32.mrb[0].mxu0
  %v897 = vadd.f32 %v512, %v896
  %v898 = vpop.f32.mrb[0].mxu0
  %899 = vmatprep.mubr.f32.mxu0 0.0
  %900 = vmatmul.mubr.f32.gmra.mrb[0].mxu0 %v253
  %v901 = vpop.f32.mrb[0].mxu0
  %v902 = vadd.f32 %v517, %v901
  %v903 = vpop.f32.mrb[0].mxu0
  %904 = vmatprep.mubr.f32.mxu0 0.0
  %905 = vmatmul.mubr.f32.gmra.mrb[0].mxu0 %v256
  %v906 = vpop.f32.mrb[0].mxu0
  %v907 = vadd.f32 %v522, %v906
  %v908 = vpop.f32.mrb[0].mxu0
  %909 = vmatprep.mubr.f32.mxu0 0.0
  %910 = vmatmul.mubr.f32.gmra.mrb[0].mxu0 %v259
  %v911 = vpop.f32.mrb[0].mxu0
  %v912 = vadd.f32 %v527, %v911
  %v913 = vpop.f32.mrb[0].mxu0
  %914 = vmatprep.mubr.f32.mxu0 0.0
  %915 = vmatmul.mubr.f32.gmra.mrb[0].mxu0 %v262
  %v916 = vpop.f32.mrb[0].mxu0
  %v917 = vadd.f32 %v532, %v916
  %v918 = vpop.f32.mrb[0].mxu0
  %919 = vmatprep.mubr.f32.mxu0 0.0
  %920 = vmatmul.mubr.f32.gmra.mrb[0].mxu0 %v265
  %v921 = vpop.f32.mrb[0].mxu0
  %v922 = vadd.f32 %v537, %v921
  %v923 = vpop.f32.mrb[0].mxu0
  %924 = vmatprep.mubr.f32.mxu0 0.0
  %925 = vmatmul.mubr.f32.gmra.mrb[0].mxu0 %v268
  %v926 = vpop.f32.mrb[0].mxu0
  %v927 = vadd.f32 %v542, %v926
  %v928 = vpop.f32.mrb[0].mxu0
  %929 = vmatprep.mubr.f32.mxu0 0.0
  %930 = vmatmul.mubr.f32.gmra.mrb[0].mxu0 %v271
  %v931 = vpop.f32.mrb[0].mxu0
  %v932 = vadd.f32 %v547, %v931
  %v933 = vpop.f32.mrb[0].mxu0
  %934 = vmatprep.mubr.f32.mxu0 0.0
  %935 = vmatmul.mubr.f32.gmra.mrb[0].mxu0 %v274
  %v936 = vpop.f32.mrb[0].mxu0
  %v937 = vadd.f32 %v552, %v936
  %v938 = vpop.f32.mrb[0].mxu0
  %939 = vmatprep.mubr.f32.mxu0 0.0
  %940 = vmatmul.mubr.f32.gmra.mrb[0].mxu0 %v277
  %v941 = vpop.f32.mrb[0].mxu0
  %v942 = vadd.f32 %v557, %v941
  %v943 = vpop.f32.mrb[0].mxu0
  %944 = vmatprep.mubr.f32.mxu0 0.0
  %945 = vmatmul.mubr.f32.gmra.mrb[0].mxu0 %v280
  %v946 = vpop.f32.mrb[0].mxu0
  %v947 = vadd.f32 %v562, %v946
  %v948 = vpop.f32.mrb[0].mxu0
  %949 = vmatprep.mubr.f32.mxu0 0.0
  %950 = vmatmul.mubr.f32.gmra.mrb[0].mxu0 %v283
  %v951 = vpop.f32.mrb[0].mxu0
  %v952 = vadd.f32 %v567, %v951
  %v953 = vpop.f32.mrb[0].mxu0
  %954 = vmatprep.mubr.f32.mxu0 0.0
  %955 = vmatmul.mubr.f32.gmra.mrb[0].mxu0 %v286
  %v956 = vpop.f32.mrb[0].mxu0
  %v957 = vadd.f32 %v572, %v956
  %v958 = vpop.f32.mrb[0].mxu0
  %959 = vmatprep.mubr.f32.mxu0 0.0
  %960 = vmatmul.mubr.f32.gmra.mrb[0].mxu0 %v289
  %v961 = vpop.f32.mrb[0].mxu0
  %v962 = vadd.f32 %v577, %v961
  %v963 = vpop.f32.mrb[0].mxu0
  %964 = vmatprep.mubr.f32.mxu0 0.0
  %965 = vmatmul.mubr.f32.gmra.mrb[0].mxu0 %v292
  %v966 = vpop.f32.mrb[0].mxu0
  %v967 = vadd.f32 %v582, %v966
  %v968 = vpop.f32.mrb[0].mxu0
  %969 = vmatprep.mubr.f32.mxu0 0.0
  %970 = vmatmul.mubr.f32.gmra.mrb[0].mxu0 %v295
  %v971 = vpop.f32.mrb[0].mxu0
  %v972 = vadd.f32 %v587, %v971
  %v973 = vpop.f32.mrb[0].mxu0
  %974 = vmatprep.mubr.f32.mxu0 0.0
  %975 = vmatmul.mubr.f32.gmra.mrb[0].mxu0 %v298
  %v976 = vpop.f32.mrb[0].mxu0
  %v977 = vadd.f32 %v592, %v976
  %v978 = vpop.f32.mrb[0].mxu0
  %979 = vmatprep.mubr.f32.mxu0 0.0
  %980 = vmatmul.mubr.f32.gmra.mrb[0].mxu0 %v301
  %v981 = vpop.f32.mrb[0].mxu0
  %v982 = vadd.f32 %v597, %v981
  %v983 = vpop.f32.mrb[0].mxu0
  %984 = vmatprep.mubr.f32.mxu0 0.0
  %985 = vmatmul.mubr.f32.gmra.mrb[0].mxu0 %v304
  %v986 = vpop.f32.mrb[0].mxu0
  %v987 = vadd.f32 %v602, %v986
  %v988 = vpop.f32.mrb[0].mxu0
  %989 = vmatprep.mubr.f32.mxu0 0.0
  %990 = vmatmul.mubr.f32.gmra.mrb[0].mxu0 %v307
  %v991 = vpop.f32.mrb[0].mxu0
  %v992 = vadd.f32 %v607, %v991
  %v993 = vpop.f32.mrb[0].mxu0
  %994 = vmatprep.mubr.f32.mxu0 0.0
  %995 = vmatmul.mubr.f32.gmra.mrb[0].mxu0 %v310
  %v996 = vpop.f32.mrb[0].mxu0
  %v997 = vadd.f32 %v612, %v996
  %v998 = vpop.f32.mrb[0].mxu0
  %999 = vmatprep.mubr.f32.mxu0 0.0
  %1000 = vmatmul.mubr.f32.gmra.mrb[0].mxu0 %v313
  %v1001 = vpop.f32.mrb[0].mxu0
  %v1002 = vadd.f32 %v617, %v1001
  %v1003 = vpop.f32.mrb[0].mxu0
  %1004 = vmatprep.mubr.f32.mxu0 0.0
  %1005 = vmatmul.mubr.f32.gmra.mrb[0].mxu0 %v316
  %v1006 = vpop.f32.mrb[0].mxu0
  %v1007 = vadd.f32 %v622, %v1006
  %v1008 = vpop.f32.mrb[0].mxu0
  %1009 = vmatprep.mubr.f32.mxu0 0.0
  %1010 = vmatmul.mubr.f32.gmra.mrb[0].mxu0 %v319
  %v1011 = vpop.f32.mrb[0].mxu0
  %v1012 = vadd.f32 %v627, %v1011
  %v1013 = vpop.f32.mrb[0].mxu0
  %1014 = vmatprep.mubr.f32.mxu0 0.0
  %1015 = vmatmul.mubr.f32.gmra.mrb[0].mxu0 %v322
  %v1016 = vpop.f32.mrb[0].mxu0
  %v1017 = vadd.f32 %v632, %v1016
  %v1018 = vpop.f32.mrb[0].mxu0
  %1019 = vmatprep.mubr.f32.mxu0 0.0
  %1020 = vmatmul.mubr.f32.gmra.mrb[0].mxu0 %v325
  %v1021 = vpop.f32.mrb[0].mxu0
  %v1022 = vadd.f32 %v637, %v1021
  %v1023 = vpop.f32.mrb[0].mxu0
  %1024 = vmatprep.mubr.f32.mxu0 0.0
  %1025 = vmatmul.mubr.f32.gmra.mrb[0].mxu0 %v328
  %v1026 = vpop.f32.mrb[0].mxu0
  %v1027 = vadd.f32 %v642, %v1026
  %v1028 = vpop.f32.mrb[0].mxu0
  %1029 = vmatprep.mubr.f32.mxu0 0.0
  %1030 = vmatmul.mubr.f32.gmra.mrb[0].mxu0 %v331
  %v1031 = vpop.f32.mrb[0].mxu0
  %v1032 = vadd.f32 %v647, %v1031
  %v1033 = vpop.f32.mrb[0].mxu0
  %1034 = vmatprep.mubr.f32.mxu0 0.0
  %1035 = vmatmul.mubr.f32.gmra.mrb[0].mxu0 %v334
  %v1036 = vpop.f32.mrb[0].mxu0
  %v1037 = vadd.f32 %v652, %v1036
  %v1038 = vpop.f32.mrb[0].mxu0
  %1039 = vmatprep.mubr.f32.mxu0 0.0
  %1040 = vmatmul.mubr.f32.gmra.mrb[0].mxu0 %v337
  %v1041 = vpop.f32.mrb[0].mxu0
  %v1042 = vadd.f32 %v657, %v1041
  %v1043 = vpop.f32.mrb[0].mxu0
  %1044 = vmatprep.mubr.f32.mxu0 0.0
  %1045 = vmatmul.mubr.f32.gmra.mrb[0].mxu0 %v340
  %v1046 = vpop.f32.mrb[0].mxu0
  %v1047 = vadd.f32 %v662, %v1046
  %v1048 = vpop.f32.mrb[0].mxu0
  %1049 = vmatprep.mubr.f32.mxu0 0.0
  %1050 = vmatmul.mubr.f32.gmra.mrb[0].mxu0 %v343
  %v1051 = vpop.f32.mrb[0].mxu0
  %v1052 = vadd.f32 %v667, %v1051
  %v1053 = vpop.f32.mrb[0].mxu0
  %1054 = vmatprep.mubr.f32.mxu0 0.0
  %1055 = vmatmul.mubr.f32.gmra.mrb[0].mxu0 %v346
  %v1056 = vpop.f32.mrb[0].mxu0
  %v1057 = vadd.f32 %v672, %v1056
  %v1058 = vpop.f32.mrb[0].mxu0
  %1059 = vmatprep.mubr.f32.mxu0 0.0
  %1060 = vmatmul.mubr.f32.gmra.mrb[0].mxu0 %v349
  %v1061 = vpop.f32.mrb[0].mxu0
  %v1062 = vadd.f32 %v677, %v1061
  %v1063 = vpop.f32.mrb[0].mxu0
  %1064 = vmatprep.mubr.f32.mxu0 0.0
  %1065 = vmatmul.mubr.f32.gmra.mrb[0].mxu0 %v352
  %v1066 = vpop.f32.mrb[0].mxu0
  %v1067 = vadd.f32 %v682, %v1066
  %v1068 = vpop.f32.mrb[0].mxu0
  %1069 = vmatprep.mubr.f32.mxu0 0.0
  %1070 = vmatmul.mubr.f32.gmra.mrb[0].mxu0 %v355
  %v1071 = vpop.f32.mrb[0].mxu0
  %v1072 = vadd.f32 %v687, %v1071
  %v1073 = vpop.f32.mrb[0].mxu0
  %1074 = vmatprep.mubr.f32.mxu0 0.0
  %1075 = vmatmul.mubr.f32.gmra.mrb[0].mxu0 %v358
  %v1076 = vpop.f32.mrb[0].mxu0
  %v1077 = vadd.f32 %v692, %v1076
  %v1078 = vpop.f32.mrb[0].mxu0
  %1079 = vmatprep.mubr.f32.mxu0 0.0
  %1080 = vmatmul.mubr.f32.gmra.mrb[0].mxu0 %v361
  %v1081 = vpop.f32.mrb[0].mxu0
  %v1082 = vadd.f32 %v697, %v1081
  %v1083 = vpop.f32.mrb[0].mxu0
  %1084 = vmatprep.mubr.f32.mxu0 0.0
  %1085 = vmatmul.mubr.f32.gmra.mrb[0].mxu0 %v364
  %v1086 = vpop.f32.mrb[0].mxu0
  %v1087 = vadd.f32 %v702, %v1086
  %v1088 = vpop.f32.mrb[0].mxu0
  %1089 = vmatprep.mubr.f32.mxu0 0.0
  %1090 = vmatmul.mubr.f32.gmra.mrb[0].mxu0 %v367
  %v1091 = vpop.f32.mrb[0].mxu0
  %v1092 = vadd.f32 %v707, %v1091
  %v1093 = vpop.f32.mrb[0].mxu0
  %1094 = vmatprep.mubr.f32.mxu0 0.0
  %1095 = vmatmul.mubr.f32.gmra.mrb[0].mxu0 %v370
  %v1096 = vpop.f32.mrb[0].mxu0
  %v1097 = vadd.f32 %v712, %v1096
  %v1098 = vpop.f32.mrb[0].mxu0
  %1099 = vmatprep.mubr.f32.mxu0 0.0
  %1100 = vmatmul.mubr.f32.gmra.mrb[0].mxu0 %v373
  %v1101 = vpop.f32.mrb[0].mxu0
  %v1102 = vadd.f32 %v717, %v1101
  %v1103 = vpop.f32.mrb[0].mxu0
  %1104 = vmatprep.mubr.f32.mxu0 0.0
  %1105 = vmatmul.mubr.f32.gmra.mrb[0].mxu0 %v376
  %v1106 = vpop.f32.mrb[0].mxu0
  %v1107 = vadd.f32 %v722, %v1106
  %v1108 = vpop.f32.mrb[0].mxu0
  %1109 = vmatprep.mubr.f32.mxu0 0.0
  %1110 = vmatmul.mubr.f32.gmra.mrb[0].mxu0 %v379
  %v1111 = vpop.f32.mrb[0].mxu0
  %v1112 = vadd.f32 %v727, %v1111
  %v1113 = vpop.f32.mrb[0].mxu0
  %1114 = vmatprep.mubr.f32.mxu0 0.0
  %1115 = vmatmul.mubr.f32.gmra.mrb[0].mxu0 %v382
  %v1116 = vpop.f32.mrb[0].mxu0
  %v1117 = vadd.f32 %v732, %v1116
  %v1118 = vpop.f32.mrb[0].mxu0
  %1119 = vmatprep.mubr.f32.mxu0 0.0
  %1120 = vmatmul.mubr.f32.gmra.mrb[0].mxu0 %v385
  %v1121 = vpop.f32.mrb[0].mxu0
  %v1122 = vadd.f32 %v737, %v1121
  %v1123 = vpop.f32.mrb[0].mxu0
  %1124 = vmatprep.mubr.f32.mxu0 0.0
  %1125 = vmatmul.mubr.f32.gmra.mrb[0].mxu0 %v388
  %v1126 = vpop.f32.mrb[0].mxu0
  %v1127 = vadd.f32 %v742, %v1126
  %v1128 = vpop.f32.mrb[0].mxu0
  %1129 = vmatprep.mubr.f32.mxu0 0.0
  %1130 = vmatmul.mubr.f32.gmra.mrb[0].mxu0 %v391
  %v1131 = vpop.f32.mrb[0].mxu0
  %v1132 = vadd.f32 %v747, %v1131
  %v1133 = vpop.f32.mrb[0].mxu0
  %1134 = vmatprep.mubr.f32.mxu0 0.0
  %1135 = vmatmul.mubr.f32.gmra.mrb[0].mxu0 %v394
  %v1136 = vpop.f32.mrb[0].mxu0
  %v1137 = vadd.f32 %v752, %v1136
  %v1138 = vpop.f32.mrb[0].mxu0
  %1139 = vmatprep.mubr.f32.mxu0 0.0
  %1140 = vmatmul.mubr.f32.gmra.mrb[0].mxu0 %v397
  %v1141 = vpop.f32.mrb[0].mxu0
  %v1142 = vadd.f32 %v757, %v1141
  %v1143 = vpop.f32.mrb[0].mxu0
  %1144 = vmatprep.mubr.f32.mxu0 0.0
  %1145 = vmatmul.mubr.f32.gmra.mrb[0].mxu0 %v400
  %v1146 = vpop.f32.mrb[0].mxu0
  %v1147 = vadd.f32 %v762, %v1146
  %v1148 = vpop.f32.mrb[0].mxu0
  %1149 = vmatprep.mubr.f32.mxu0 0.0
  %1150 = vmatmul.mubr.f32.gmra.mrb[0].mxu0 %v403
  %v1151 = vpop.f32.mrb[0].mxu0
  %v1152 = vadd.f32 %v767, %v1151
  %v1153 = vpop.f32.mrb[0].mxu0
  %1154 = vmatprep.mubr.f32.mxu0 0.0
  %1155 = vmatmul.mubr.f32.gmra.mrb[0].mxu0 %v406
  %v1156 = vpop.f32.mrb[0].mxu0
  %v1157 = vadd.f32 %v772, %v1156
  %v1158 = vpop.f32.mrb[0].mxu0
  %1159 = vmatprep.mubr.f32.mxu0 0.0
  %1160 = vmatmul.mubr.f32.gmra.mrb[0].mxu0 %v409
  %v1161 = vpop.f32.mrb[0].mxu0
  %v1162 = vadd.f32 %v777, %v1161
  %v1163 = vpop.f32.mrb[0].mxu0
  %1164 = vmatprep.mubr.f32.mxu0 0.0
  %1165 = vmatmul.mubr.f32.gmra.mrb[0].mxu0 %v412
  %v1166 = vpop.f32.mrb[0].mxu0
  %v1167 = vadd.f32 %v782, %v1166
  %v1168 = vpop.f32.mrb[0].mxu0
  %1169 = vmatprep.mubr.f32.mxu0 0.0
  %1170 = vmatmul.mubr.f32.gmra.mrb[0].mxu0 %v415
  %v1171 = vpop.f32.mrb[0].mxu0
  %v1172 = vadd.f32 %v787, %v1171
  %v1173 = vpop.f32.mrb[0].mxu0
  %1174 = vmatprep.mubr.f32.mxu0 0.0
  %1175 = vmatmul.mubr.f32.gmra.mrb[0].mxu0 %v418
  %v1176 = vpop.f32.mrb[0].mxu0
  %v1177 = vadd.f32 %v792, %v1176
  %v1178 = vpop.f32.mrb[0].mxu0
  %1179 = vmatprep.mubr.f32.mxu0 0.0
  %1180 = vmatmul.mubr.f32.gmra.mrb[0].mxu0 %v421
  %v1181 = vpop.f32.mrb[0].mxu0
  %v1182 = vadd.f32 %v797, %v1181
  %v1183 = vpop.f32.mrb[0].mxu0
  %1184 = vmatprep.mubr.f32.mxu0 0.0
  %1185 = vmatmul.mubr.f32.gmra.mrb[0].mxu0 %v424
  %v1186 = vpop.f32.mrb[0].mxu0
  %v1187 = vadd.f32 %v802, %v1186
  %v1188 = vpop.f32.mrb[0].mxu0
  %1189 = vmatprep.mubr.f32.mxu0 0.0
  %1190 = vmatmul.mubr.f32.gmra.mrb[0].mxu0 %v427
  %v1191 = vpop.f32.mrb[0].mxu0
  %v1192 = vadd.f32 %v807, %v1191
  %v1193 = vpop.f32.mrb[0].mxu0
  %1194 = vmatprep.mubr.f32.mxu0 0.0
  %1195 = vmatmul.mubr.f32.gmra.mrb[0].mxu0 %v430
  %v1196 = vpop.f32.mrb[0].mxu0
  %v1197 = vadd.f32 %v812, %v1196
  %v1198 = vpop.f32.mrb[0].mxu0
  %1199 = vmatprep.mubr.f32.mxu0 0.0
  %1200 = vmatmul.mubr.f32.gmra.mrb[0].mxu0 %v433
  %v1201 = vpop.f32.mrb[0].mxu0
  %v1202 = vadd.f32 %v817, %v1201
  %v1203 = vpop.f32.mrb[0].mxu0
  %1204 = vdwg.mxu0
  %vm1205 = vcmask 523264
  %v1206 = vsel %vm1205, %v887, -inf
  %v1207 = vsel %vm1205, %v927, -inf
  %v1208 = vmax.f32 %v1206, %v1207
  %v1209 = vsel %vm1205, %v967, -inf
  %v1210 = vmax.f32 %v1208, %v1209
  %v1211 = vsel %vm1205, %v1007, -inf
  %v1212 = vmax.f32 %v1210, %v1211
  %v1213 = vsel %vm1205, %v892, -inf
  %v1214 = vsel %vm1205, %v932, -inf
  %v1215 = vmax.f32 %v1213, %v1214
  %v1216 = vsel %vm1205, %v972, -inf
  %v1217 = vmax.f32 %v1215, %v1216
  %v1218 = vsel %vm1205, %v1012, -inf
  %v1219 = vmax.f32 %v1217, %v1218
  %v1220 = vsel %vm1205, %v897, -inf
  %v1221 = vsel %vm1205, %v937, -inf
  %v1222 = vmax.f32 %v1220, %v1221
  %v1223 = vsel %vm1205, %v977, -inf
  %v1224 = vmax.f32 %v1222, %v1223
  %v1225 = vsel %vm1205, %v1017, -inf
  %v1226 = vmax.f32 %v1224, %v1225
  %v1227 = vsel %vm1205, %v902, -inf
  %v1228 = vsel %vm1205, %v942, -inf
  %v1229 = vmax.f32 %v1227, %v1228
  %v1230 = vsel %vm1205, %v982, -inf
  %v1231 = vmax.f32 %v1229, %v1230
  %v1232 = vsel %vm1205, %v1022, -inf
  %v1233 = vmax.f32 %v1231, %v1232
  %v1234 = vsel %vm1205, %v907, -inf
  %v1235 = vsel %vm1205, %v947, -inf
  %v1236 = vmax.f32 %v1234, %v1235
  %v1237 = vsel %vm1205, %v987, -inf
  %v1238 = vmax.f32 %v1236, %v1237
  %v1239 = vsel %vm1205, %v1027, -inf
  %v1240 = vmax.f32 %v1238, %v1239
  %v1241 = vsel %vm1205, %v912, -inf
  %v1242 = vsel %vm1205, %v952, -inf
  %v1243 = vmax.f32 %v1241, %v1242
  %v1244 = vsel %vm1205, %v992, -inf
  %v1245 = vmax.f32 %v1243, %v1244
  %v1246 = vsel %vm1205, %v1032, -inf
  %v1247 = vmax.f32 %v1245, %v1246
  %v1248 = vsel %vm1205, %v917, -inf
  %v1249 = vsel %vm1205, %v957, -inf
  %v1250 = vmax.f32 %v1248, %v1249
  %v1251 = vsel %vm1205, %v997, -inf
  %v1252 = vmax.f32 %v1250, %v1251
  %v1253 = vsel %vm1205, %v1037, -inf
  %v1254 = vmax.f32 %v1252, %v1253
  %v1255 = vsel %vm1205, %v922, -inf
  %v1256 = vsel %vm1205, %v962, -inf
  %v1257 = vmax.f32 %v1255, %v1256
  %v1258 = vsel %vm1205, %v1002, -inf
  %v1259 = vmax.f32 %v1257, %v1258
  %v1260 = vsel %vm1205, %v1042, -inf
  %v1261 = vmax.f32 %v1259, %v1260
  %v1262 = vsel %vm1205, %v1047, -inf
  %v1263 = vsel %vm1205, %v1087, -inf
  %v1264 = vmax.f32 %v1262, %v1263
  %v1265 = vsel %vm1205, %v1127, -inf
  %v1266 = vmax.f32 %v1264, %v1265
  %v1267 = vsel %vm1205, %v1167, -inf
  %v1268 = vmax.f32 %v1266, %v1267
  %v1269 = vsel %vm1205, %v1052, -inf
  %v1270 = vsel %vm1205, %v1092, -inf
  %v1271 = vmax.f32 %v1269, %v1270
  %v1272 = vsel %vm1205, %v1132, -inf
  %v1273 = vmax.f32 %v1271, %v1272
  %v1274 = vsel %vm1205, %v1172, -inf
  %v1275 = vmax.f32 %v1273, %v1274
  %v1276 = vsel %vm1205, %v1057, -inf
  %v1277 = vsel %vm1205, %v1097, -inf
  %v1278 = vmax.f32 %v1276, %v1277
  %v1279 = vsel %vm1205, %v1137, -inf
  %v1280 = vmax.f32 %v1278, %v1279
  %v1281 = vsel %vm1205, %v1177, -inf
  %v1282 = vmax.f32 %v1280, %v1281
  %v1283 = vsel %vm1205, %v1062, -inf
  %v1284 = vsel %vm1205, %v1102, -inf
  %v1285 = vmax.f32 %v1283, %v1284
  %v1286 = vsel %vm1205, %v1142, -inf
  %v1287 = vmax.f32 %v1285, %v1286
  %v1288 = vsel %vm1205, %v1182, -inf
  %v1289 = vmax.f32 %v1287, %v1288
  %v1290 = vsel %vm1205, %v1067, -inf
  %v1291 = vsel %vm1205, %v1107, -inf
  %v1292 = vmax.f32 %v1290, %v1291
  %v1293 = vsel %vm1205, %v1147, -inf
  %v1294 = vmax.f32 %v1292, %v1293
  %v1295 = vsel %vm1205, %v1187, -inf
  %v1296 = vmax.f32 %v1294, %v1295
  %v1297 = vsel %vm1205, %v1072, -inf
  %v1298 = vsel %vm1205, %v1112, -inf
  %v1299 = vmax.f32 %v1297, %v1298
  %v1300 = vsel %vm1205, %v1152, -inf
  %v1301 = vmax.f32 %v1299, %v1300
  %v1302 = vsel %vm1205, %v1192, -inf
  %v1303 = vmax.f32 %v1301, %v1302
  %v1304 = vsel %vm1205, %v1077, -inf
  %v1305 = vsel %vm1205, %v1117, -inf
  %v1306 = vmax.f32 %v1304, %v1305
  %v1307 = vsel %vm1205, %v1157, -inf
  %v1308 = vmax.f32 %v1306, %v1307
  %v1309 = vsel %vm1205, %v1197, -inf
  %v1310 = vmax.f32 %v1308, %v1309
  %v1311 = vsel %vm1205, %v1082, -inf
  %v1312 = vsel %vm1205, %v1122, -inf
  %v1313 = vmax.f32 %v1311, %v1312
  %v1314 = vsel %vm1205, %v1162, -inf
  %v1315 = vmax.f32 %v1313, %v1314
  %v1316 = vsel %vm1205, %v1202, -inf
  %v1317 = vmax.f32 %v1315, %v1316
  %v1318 = vld [vmem:[%s2] sm:$0x1]
  %v1320 = vlaneseq
  %v1321 = vshrl.u32 %v1320, 7
  %v1322 = vsub.s32 0, %v1321
  %v1323 = vrot.slane %v1318, %v1322
  %v1325 = vadd.f32 %v1212, %v1323
  %v1326 = vadd.f32 %v1219, %v1323
  %v1327 = vadd.f32 %v1226, %v1323
  %v1328 = vadd.f32 %v1233, %v1323
  %v1329 = vadd.f32 %v1240, %v1323
  %v1330 = vadd.f32 %v1247, %v1323
  %v1331 = vadd.f32 %v1254, %v1323
  %v1332 = vadd.f32 %v1261, %v1323
  %v1333 = vadd.f32 %v1268, %v1323
  %v1334 = vadd.f32 %v1275, %v1323
  %v1335 = vadd.f32 %v1282, %v1323
  %v1336 = vadd.f32 %v1289, %v1323
  %v1337 = vadd.f32 %v1296, %v1323
  %v1338 = vadd.f32 %v1303, %v1323
  %v1339 = vadd.f32 %v1310, %v1323
  %v1340 = vadd.f32 %v1317, %v1323
  %v1341 = vmax.f32 %v1325, 0.0
  %v1342 = vmax.f32 %v1326, 0.0
  %v1343 = vmax.f32 %v1327, 0.0
  %v1344 = vmax.f32 %v1328, 0.0
  %v1345 = vmax.f32 %v1329, 0.0
  %v1346 = vmax.f32 %v1330, 0.0
  %v1347 = vmax.f32 %v1331, 0.0
  %v1348 = vmax.f32 %v1332, 0.0
  %v1349 = vmax.f32 %v1333, 0.0
  %v1350 = vmax.f32 %v1334, 0.0
  %v1351 = vmax.f32 %v1335, 0.0
  %v1352 = vmax.f32 %v1336, 0.0
  %v1353 = vmax.f32 %v1337, 0.0
  %v1354 = vmax.f32 %v1338, 0.0
  %v1355 = vmax.f32 %v1339, 0.0
  %v1356 = vmax.f32 %v1340, 0.0
  %1357 = vst.msk [vmem:[%s3] sm:$0xff] %vm1205, %v1341
  %1358 = vst.msk [vmem:[%s3 + $0x8] sm:$0xff] %vm1205, %v1342
  %1359 = vst.msk [vmem:[%s3 + $0x10] sm:$0xff] %vm1205, %v1343
  %1360 = vst.msk [vmem:[%s3 + $0x18] sm:$0xff] %vm1205, %v1344
  %1361 = vst.msk [vmem:[%s3 + $0x20] sm:$0xff] %vm1205, %v1345
  %1362 = vst.msk [vmem:[%s3 + $0x28] sm:$0xff] %vm1205, %v1346
  %1363 = vst.msk [vmem:[%s3 + $0x30] sm:$0xff] %vm1205, %v1347
  %1364 = vst.msk [vmem:[%s3 + $0x38] sm:$0xff] %vm1205, %v1348
  %1365 = vst.msk [vmem:[%s3 + $0x40] sm:$0xff] %vm1205, %v1349
  %1366 = vst.msk [vmem:[%s3 + $0x48] sm:$0xff] %vm1205, %v1350
  %1367 = vst.msk [vmem:[%s3 + $0x50] sm:$0xff] %vm1205, %v1351
  %1368 = vst.msk [vmem:[%s3 + $0x58] sm:$0xff] %vm1205, %v1352
  %1369 = vst.msk [vmem:[%s3 + $0x60] sm:$0xff] %vm1205, %v1353
  %1370 = vst.msk [vmem:[%s3 + $0x68] sm:$0xff] %vm1205, %v1354
  %1371 = vst.msk [vmem:[%s3 + $0x70] sm:$0xff] %vm1205, %v1355
  %1372 = vst.msk [vmem:[%s3 + $0x78] sm:$0xff] %vm1205, %v1356
  // Predicated region
  $region14: #{model_part0_2node.3} parent=0 // pred_check
    _
  $region15: #{model_part0_2node.3} parent=0 // pred_check_branch
    %1374 = sbr.rel (0) target = $region17
  $region16: #{model_part0_2node.3} parent=0 // pred_region
    _
  $region17: #{model_part0_2node.3} parent=0 // pred_fallthru
    _
  // Predicated region
  $region18: #{model_part0_2node.3} parent=0 // pred_check
    _
  $region19: #{model_part0_2node.3} parent=0 // pred_check_branch
    %1376 = sbr.rel (0) target = $region21
  $region20: #{model_part0_2node.3} parent=0 // pred_region
    _
  $region21: #{model_part0_2node.3} parent=0 // pred_fallthru
    _

</llo_original>
